<compile_context>
chip_gen: v5e
topology: v5e:2x2
jax: 0.10.0
libtpu: 0.0.40
codegen_flags: <defaults>
</compile_context>

<pallas_src>
import numpy as np
import jax
import jax.numpy as jnp
from jax import lax
from jax.experimental import pallas as pl
from jax.experimental.pallas import tpu as pltpu

HID = 32     # self.hid_dim
GCN = 32     # self.gcn_out
IN_DIM = 1   # self.in_dim
OUT_DIM = 1  # self.out_dim


def _gclstm_kernel(xf0_ref,                       # (bm, 32)  seed x feature = relu(fc_in(x[:,0]))
                   w_c_ref, b_c_ref,              # (32, 32), (1, 32)   ChebConv K=1 == Linear
                   w_xa_ref, w_xb_ref,            # (32, 128), (32, 128) x2h split (cols permuted)
                   w_h_ref, b_g_ref,              # (32, 128), (1, 128)  h2h (permuted), b_x+b_h
                   w_rec_ref, b_rec_ref,          # (32, 32), (1, 32)    folded fc_in∘fc_out
                   out_ref):                      # (T, bm, 32)  hn history (resident output)
    T = out_ref.shape[0]
    m = xf0_ref.shape[0]

    # Hoist all weight reads and bias broadcasts out of the time loop
    # (JAX does not CSE broadcast_in_dim).
    w_c = w_c_ref[...]
    b_c = jnp.broadcast_to(b_c_ref[...], (m, GCN))
    w_xa = w_xa_ref[...]
    w_xb = w_xb_ref[...]
    w_h = w_h_ref[...]
    b_g = jnp.broadcast_to(b_g_ref[...], (m, 4 * HID))
    w_rec = w_rec_ref[...]
    b_rec = jnp.broadcast_to(b_rec_ref[...], (m, HID))

    def step(t, carry):
        x, hn, cn = carry                                    # (m,32) each, f32

        # x_gcn = relu(ChebConv_{K=1}(x)) == relu(x @ Wc + bc)
        # TODO(synk): edge_index / adjacency is ignored because ChebConv with
        # K=1 only applies the identity (T_0) term, so the graph never affects
        # the output.
        x_gcn = jnp.maximum(
            jnp.dot(x, w_c, preferred_element_type=jnp.float32) + b_c, 0.0)

        # LSTMCell gates, concat-free: [x | x_gcn] @ Wx == x @ Wxa + x_gcn @ Wxb
        # Gate columns are host-permuted to [i, f, o | g].
        gates = (jnp.dot(x, w_xa, preferred_element_type=jnp.float32)
                 + jnp.dot(x_gcn, w_xb, preferred_element_type=jnp.float32)
                 + jnp.dot(hn, w_h, preferred_element_type=jnp.float32)
                 + b_g)                                       # (m, 128)

        sig = jax.nn.sigmoid(gates[:, :3 * HID])              # one lane-dense EUP pass
        i_g = sig[:, 0 * HID:1 * HID]
        f_g = sig[:, 1 * HID:2 * HID]
        o_g = sig[:, 2 * HID:3 * HID]
        g_g = jnp.tanh(gates[:, 3 * HID:4 * HID])

        cy = cn * f_g + i_g * g_g
        hy = o_g * jnp.tanh(cy)

        out_ref[t] = hy                                       # hn history (lane-dense 32)

        # next step's x feature: relu(fc_in(fc_out(hy))) folded to one matmul
        x_next = jnp.maximum(
            jnp.dot(hy, w_rec, preferred_element_type=jnp.float32) + b_rec, 0.0)
        return (x_next, hy, cy)

    zeros = jnp.zeros((m, HID), jnp.float32)
    lax.fori_loop(0, T, step, (xf0_ref[...], zeros, zeros), unroll=True)


def gc_lstm_forward(x, A_q, A_h, A, params):
    """x: (B, T, N) float32.  A_q, A_h, A accepted for API fidelity (unused: K=1)."""
    B, T, N = x.shape
    M = B * N

    w_in_t = params["w_in_t"]          # (1, 32)
    b_in = params["b_in"]              # (1, 32)
    w_o_t = params["w_o_t"]            # (32, 1)
    b_o = params["b_o"]                # (1, 1)

    # Seed x feature: relu(fc_in(x[:, 0]))  (in_dim == 1 -> broadcasted mul)
    x0 = x[:, 0].reshape(M, 1).astype(jnp.float32)
    x_feat0 = jnp.maximum(x0 @ w_in_t + b_in, 0.0)            # (M, 32)

    # --- host-side constant folding -------------------------------------
    # Permute gate columns from [i, f, g, o] to [i, f, o, g].
    perm = np.concatenate([np.arange(0, 2 * HID),
                           np.arange(3 * HID, 4 * HID),
                           np.arange(2 * HID, 3 * HID)])
    w_x = params["w_x_t"]                                     # (64, 128)
    w_xa = w_x[:HID][:, perm]                                 # (32, 128) for x
    w_xb = w_x[HID:][:, perm]                                 # (32, 128) for x_gcn
    w_h = params["w_h_t"][:, perm]                            # (32, 128)
    b_g = (params["b_x"] + params["b_h"])[:, perm]            # (1, 128)
    w_rec = w_o_t @ w_in_t                                    # (32, 32)  fc_in ∘ fc_out
    b_rec = b_o @ w_in_t + b_in                               # (1, 32)
    w_c = params["w_c_t"]                                     # (32, 32)
    b_c = params["b_c"]                                       # (1, 32)

    # Row-block parallel grid (uses both TensorCores on v7x; harmless elsewhere).
    if M >= 512 and M % 256 == 0:
        block_m = 256
    else:
        block_m = M
    n_blocks = M // block_m

    full = lambda shp: pl.BlockSpec(shp, lambda r, _s=len(shp): (0,) * _s)
    in_specs = [
        pl.BlockSpec((block_m, HID), lambda r: (r, 0)),       # x_feat0 row block
        full((HID, GCN)), full((1, GCN)),                     # w_c, b_c
        full((HID, 4 * HID)), full((GCN, 4 * HID)),           # w_xa, w_xb
        full((HID, 4 * HID)), full((1, 4 * HID)),             # w_h, b_g
        full((HID, HID)), full((1, HID)),                     # w_rec, b_rec
    ]
    out_spec = pl.BlockSpec((T, block_m, HID), lambda r: (0, r, 0))

    hn_hist = pl.pallas_call(
        _gclstm_kernel,
        out_shape=jax.ShapeDtypeStruct((T, M, HID), jnp.float32),
        grid_spec=pltpu.PrefetchScalarGridSpec(
            num_scalar_prefetch=0,
            grid=(n_blocks,),
            in_specs=in_specs,
            out_specs=out_spec,
        ),
        compiler_params=pltpu.CompilerParams(
            dimension_semantics=("parallel",)),
    )(x_feat0, w_c, b_c, w_xa, w_xb, w_h, b_g, w_rec, b_rec)   # (T, M, 32)

    # fc_out applied once as a single lane-dense batched matmul.
    preds = hn_hist.reshape(T * M, HID) @ w_o_t + b_o          # (T*M, 1)
    # rows are batch-major (row = b*N + n): (T, B, N) -> (B, T, N)
    return preds.reshape(T, B, N).transpose(1, 0, 2)


def reference_forward(x, params):
    """Pure-JAX reference of the ORIGINAL (unfolded, unpermuted) math."""
    B, T, N = x.shape
    M = B * N
    xn = x[:, 0].reshape(M, 1).astype(jnp.float32)
    hn = jnp.zeros((M, HID), jnp.float32)
    cn = jnp.zeros((M, HID), jnp.float32)
    preds = []
    for _ in range(T):
        xf = jnp.maximum(xn @ params["w_in_t"].reshape(IN_DIM, HID)
                         + params["b_in"], 0.0)
        xg = jnp.maximum(xf @ params["w_c_t"] + params["b_c"], 0.0)
        xc = jnp.concatenate([xf, xg], axis=-1)
        gates = xc @ params["w_x_t"] + params["b_x"] \
                + hn @ params["w_h_t"] + params["b_h"]
        i = jax.nn.sigmoid(gates[:, 0 * HID:1 * HID])
        f = jax.nn.sigmoid(gates[:, 1 * HID:2 * HID])
        g = jnp.tanh(gates[:, 2 * HID:3 * HID])
        o = jax.nn.sigmoid(gates[:, 3 * HID:4 * HID])
        cn = cn * f + i * g
        hn = o * jnp.tanh(cn)
        xn = hn @ params["w_o_t"] + params["b_o"]
        preds.append(xn)
    out = jnp.stack(preds, axis=0)          # (T, M, 1)
    return out[..., 0].reshape(T, B, N).transpose(1, 0, 2)


def init_params(key):
    """Deterministic synthetic parameters matching the PyTorch shapes.
    Linear(in, out) weight W is (out, in); we store W^T (in, out) + bias."""
    ks = jax.random.split(key, 12)
    u = lambda k, shp, s: jax.random.uniform(k, shp, jnp.float32, -s, s)
    s_in = 1.0 / np.sqrt(IN_DIM)
    s_c = 1.0 / np.sqrt(HID)
    s_lstm = 1.0 / np.sqrt(HID)          # LSTMCell.reset_parameters
    s_out = 1.0 / np.sqrt(HID)
    return {
        "w_in_t": u(ks[0], (IN_DIM, HID), s_in),          # fc_in W^T
        "b_in":   u(ks[1], (1, HID), s_in),
        "w_c_t":  u(ks[2], (HID, GCN), s_c),              # ChebConv K=1 (linear)
        "b_c":    u(ks[3], (1, GCN), s_c),
        "w_x_t":  u(ks[4], (HID + GCN, 4 * HID), s_lstm), # x2h W^T (gate order i,f,g,o)
        "b_x":    u(ks[5], (1, 4 * HID), s_lstm),
        "w_h_t":  u(ks[6], (HID, 4 * HID), s_lstm),       # h2h W^T
        "b_h":    u(ks[7], (1, 4 * HID), s_lstm),
        "w_o_t":  u(ks[8], (HID, OUT_DIM), s_out),        # fc_out W^T
        "b_o":    u(ks[9], (1, OUT_DIM), s_out),
    }


if __name__ == "__main__":
    key = jax.random.PRNGKey(0)
    k_x, k_a, k_p = jax.random.split(key, 3)

    B, T, N = 2, 8, 16                      # batch, num_steps, num_nodes
    x = jax.random.normal(k_x, (B, T, N), jnp.float32)
    A = (jax.random.uniform(k_a, (N, N)) > 0.5).astype(jnp.float32)  # unused (K=1)
    A_q = A
    A_h = A.T

    params = init_params(k_p)

    out = gc_lstm_forward(x, A_q, A_h, A, params)
    out = jax.block_until_ready(out)
    assert out.shape == (B, T, N), out.shape

    ref = jax.block_until_ready(reference_forward(x, params))
    assert np.allclose(np.asarray(out), np.asarray(ref), atol=1e-5, rtol=1e-5)

    print("KERNEL_OK")
</pallas_src>

<mosaic_0001>
module attributes {stable_mosaic.version = 11 : i64} {
  func.func @_gclstm_kernel(%arg0: i32, %arg1: memref<32x32xf32, #tpu.memory_space<vmem>>, %arg2: memref<32x32xf32, #tpu.memory_space<vmem>>, %arg3: memref<1x32xf32, #tpu.memory_space<vmem>>, %arg4: memref<32x128xf32, #tpu.memory_space<vmem>>, %arg5: memref<32x128xf32, #tpu.memory_space<vmem>>, %arg6: memref<32x128xf32, #tpu.memory_space<vmem>>, %arg7: memref<1x128xf32, #tpu.memory_space<vmem>>, %arg8: memref<32x32xf32, #tpu.memory_space<vmem>>, %arg9: memref<1x32xf32, #tpu.memory_space<vmem>>, %arg10: memref<8x32x32xf32, #tpu.memory_space<vmem>>) attributes {dimension_semantics = [#tpu.dimension_semantics<parallel>], iteration_bounds = array<i64: 1>, scalar_prefetch = 0 : i64, scratch_operands = 0 : i64, tpu.core_type = #tpu.core_type<tc>, window_params = [{transform_indices = @transform_0, window_bounds = array<i64: 32, 32>}, {pipeline_mode = #tpu.pipeline_mode<synchronous>, transform_indices = @transform_1, window_bounds = array<i64: 32, 32>}, {pipeline_mode = #tpu.pipeline_mode<synchronous>, transform_indices = @transform_2, window_bounds = array<i64: 1, 32>}, {pipeline_mode = #tpu.pipeline_mode<synchronous>, transform_indices = @transform_3, window_bounds = array<i64: 32, 128>}, {pipeline_mode = #tpu.pipeline_mode<synchronous>, transform_indices = @transform_4, window_bounds = array<i64: 32, 128>}, {pipeline_mode = #tpu.pipeline_mode<synchronous>, transform_indices = @transform_5, window_bounds = array<i64: 32, 128>}, {pipeline_mode = #tpu.pipeline_mode<synchronous>, transform_indices = @transform_6, window_bounds = array<i64: 1, 128>}, {pipeline_mode = #tpu.pipeline_mode<synchronous>, transform_indices = @transform_7, window_bounds = array<i64: 32, 32>}, {pipeline_mode = #tpu.pipeline_mode<synchronous>, transform_indices = @transform_8, window_bounds = array<i64: 1, 32>}, {transform_indices = @transform_9, window_bounds = array<i64: 8, 32, 32>}]} {
    %c0 = arith.constant 0 : index
    %c0_0 = arith.constant 0 : index
    %0 = vector.load %arg2[%c0, %c0_0] : memref<32x32xf32, #tpu.memory_space<vmem>>, vector<32x32xf32>
    %c0_1 = arith.constant 0 : index
    %c0_2 = arith.constant 0 : index
    %1 = vector.load %arg3[%c0_1, %c0_2] : memref<1x32xf32, #tpu.memory_space<vmem>>, vector<1x32xf32>
    %2 = vector.shape_cast %1 : vector<1x32xf32> to vector<1x32xf32>
    %3 = vector.broadcast %2 : vector<1x32xf32> to vector<32x32xf32>
    %c0_3 = arith.constant 0 : index
    %c0_4 = arith.constant 0 : index
    %4 = vector.load %arg4[%c0_3, %c0_4] : memref<32x128xf32, #tpu.memory_space<vmem>>, vector<32x128xf32>
    %c0_5 = arith.constant 0 : index
    %c0_6 = arith.constant 0 : index
    %5 = vector.load %arg5[%c0_5, %c0_6] : memref<32x128xf32, #tpu.memory_space<vmem>>, vector<32x128xf32>
    %c0_7 = arith.constant 0 : index
    %c0_8 = arith.constant 0 : index
    %6 = vector.load %arg6[%c0_7, %c0_8] : memref<32x128xf32, #tpu.memory_space<vmem>>, vector<32x128xf32>
    %c0_9 = arith.constant 0 : index
    %c0_10 = arith.constant 0 : index
    %7 = vector.load %arg7[%c0_9, %c0_10] : memref<1x128xf32, #tpu.memory_space<vmem>>, vector<1x128xf32>
    %8 = vector.shape_cast %7 : vector<1x128xf32> to vector<1x128xf32>
    %9 = vector.broadcast %8 : vector<1x128xf32> to vector<32x128xf32>
    %c0_11 = arith.constant 0 : index
    %c0_12 = arith.constant 0 : index
    %10 = vector.load %arg8[%c0_11, %c0_12] : memref<32x32xf32, #tpu.memory_space<vmem>>, vector<32x32xf32>
    %c0_13 = arith.constant 0 : index
    %c0_14 = arith.constant 0 : index
    %11 = vector.load %arg9[%c0_13, %c0_14] : memref<1x32xf32, #tpu.memory_space<vmem>>, vector<1x32xf32>
    %12 = vector.shape_cast %11 : vector<1x32xf32> to vector<1x32xf32>
    %13 = vector.broadcast %12 : vector<1x32xf32> to vector<32x32xf32>
    %cst = arith.constant 0.000000e+00 : f32
    %14 = vector.broadcast %cst : f32 to vector<32x32xf32>
    %c0_15 = arith.constant 0 : index
    %c0_16 = arith.constant 0 : index
    %15 = vector.load %arg1[%c0_15, %c0_16] : memref<32x32xf32, #tpu.memory_space<vmem>>, vector<32x32xf32>
    %c0_i32 = arith.constant 0 : i32
    %cst_17 = arith.constant dense<0.000000e+00> : vector<32x32xf32>
    %16 = tpu.matmul %15, %0, %cst_17 {dimension_numbers = #tpu.dot_dimension_numbers<[1], [0], [0], [1], [0, 0, 1, 1], [], []>} : vector<32x32xf32>, vector<32x32xf32>, vector<32x32xf32> -> vector<32x32xf32>
    %17 = arith.addf %16, %3 : vector<32x32xf32>
    %cst_18 = arith.constant 0.000000e+00 : f32
    %18 = vector.broadcast %cst_18 : f32 to vector<32x32xf32>
    %19 = arith.maximumf %17, %18 : vector<32x32xf32>
    %cst_19 = arith.constant dense<0.000000e+00> : vector<32x128xf32>
    %20 = tpu.matmul %15, %4, %cst_19 {dimension_numbers = #tpu.dot_dimension_numbers<[1], [0], [0], [1], [0, 0, 1, 1], [], []>} : vector<32x32xf32>, vector<32x128xf32>, vector<32x128xf32> -> vector<32x128xf32>
    %cst_20 = arith.constant dense<0.000000e+00> : vector<32x128xf32>
    %21 = tpu.matmul %19, %5, %cst_20 {dimension_numbers = #tpu.dot_dimension_numbers<[1], [0], [0], [1], [0, 0, 1, 1], [], []>} : vector<32x32xf32>, vector<32x128xf32>, vector<32x128xf32> -> vector<32x128xf32>
    %22 = arith.addf %20, %21 : vector<32x128xf32>
    %cst_21 = arith.constant dense<0.000000e+00> : vector<32x128xf32>
    %23 = tpu.matmul %14, %6, %cst_21 {dimension_numbers = #tpu.dot_dimension_numbers<[1], [0], [0], [1], [0, 0, 1, 1], [], []>} : vector<32x32xf32>, vector<32x128xf32>, vector<32x128xf32> -> vector<32x128xf32>
    %24 = arith.addf %22, %23 : vector<32x128xf32>
    %25 = arith.addf %24, %9 : vector<32x128xf32>
    %26 = vector.extract_strided_slice %25 {offsets = [0, 0], sizes = [32, 96], strides = [1, 1]} : vector<32x128xf32> to vector<32x96xf32>
    %27 = arith.negf %26 : vector<32x96xf32>
    %28 = math.exp %27 : vector<32x96xf32>
    %cst_22 = arith.constant 1.000000e+00 : f32
    %29 = vector.broadcast %cst_22 : f32 to vector<32x96xf32>
    %30 = arith.addf %29, %28 : vector<32x96xf32>
    %31 = arith.divf %29, %30 : vector<32x96xf32>
    %32 = vector.extract_strided_slice %31 {offsets = [0, 0], sizes = [32, 32], strides = [1, 1]} : vector<32x96xf32> to vector<32x32xf32>
    %33 = vector.extract_strided_slice %31 {offsets = [0, 32], sizes = [32, 32], strides = [1, 1]} : vector<32x96xf32> to vector<32x32xf32>
    %34 = vector.extract_strided_slice %31 {offsets = [0, 64], sizes = [32, 32], strides = [1, 1]} : vector<32x96xf32> to vector<32x32xf32>
    %35 = vector.extract_strided_slice %25 {offsets = [0, 96], sizes = [32, 32], strides = [1, 1]} : vector<32x128xf32> to vector<32x32xf32>
    %36 = math.tanh %35 : vector<32x32xf32>
    %37 = arith.mulf %14, %33 : vector<32x32xf32>
    %38 = arith.mulf %32, %36 : vector<32x32xf32>
    %39 = arith.addf %37, %38 : vector<32x32xf32>
    %40 = math.tanh %39 : vector<32x32xf32>
    %41 = arith.mulf %34, %40 : vector<32x32xf32>
    %42 = arith.index_cast %c0_i32 : i32 to index
    %c0_23 = arith.constant 0 : index
    %c0_24 = arith.constant 0 : index
    %43 = vector.load %arg10[%42, %c0_23, %c0_24] : memref<8x32x32xf32, #tpu.memory_space<vmem>>, vector<1x32x32xf32>
    %44 = vector.shape_cast %43 : vector<1x32x32xf32> to vector<32x32xf32>
    %45 = vector.shape_cast %41 : vector<32x32xf32> to vector<1x32x32xf32>
    tpu.vector_store %arg10[%42, %c0_23, %c0_24], %45 {strides = array<i32>} : memref<8x32x32xf32, #tpu.memory_space<vmem>>, vector<1x32x32xf32>,
    %cst_25 = arith.constant dense<0.000000e+00> : vector<32x32xf32>
    %46 = tpu.matmul %41, %10, %cst_25 {dimension_numbers = #tpu.dot_dimension_numbers<[1], [0], [0], [1], [0, 0, 1, 1], [], []>} : vector<32x32xf32>, vector<32x32xf32>, vector<32x32xf32> -> vector<32x32xf32>
    %47 = arith.addf %46, %13 : vector<32x32xf32>
    %cst_26 = arith.constant 0.000000e+00 : f32
    %48 = vector.broadcast %cst_26 : f32 to vector<32x32xf32>
    %49 = arith.maximumf %47, %48 : vector<32x32xf32>
    %c1_i32 = arith.constant 1 : i32
    %cst_27 = arith.constant dense<0.000000e+00> : vector<32x32xf32>
    %50 = tpu.matmul %49, %0, %cst_27 {dimension_numbers = #tpu.dot_dimension_numbers<[1], [0], [0], [1], [0, 0, 1, 1], [], []>} : vector<32x32xf32>, vector<32x32xf32>, vector<32x32xf32> -> vector<32x32xf32>
    %51 = arith.addf %50, %3 : vector<32x32xf32>
    %cst_28 = arith.constant 0.000000e+00 : f32
    %52 = vector.broadcast %cst_28 : f32 to vector<32x32xf32>
    %53 = arith.maximumf %51, %52 : vector<32x32xf32>
    %cst_29 = arith.constant dense<0.000000e+00> : vector<32x128xf32>
    %54 = tpu.matmul %49, %4, %cst_29 {dimension_numbers = #tpu.dot_dimension_numbers<[1], [0], [0], [1], [0, 0, 1, 1], [], []>} : vector<32x32xf32>, vector<32x128xf32>, vector<32x128xf32> -> vector<32x128xf32>
    %cst_30 = arith.constant dense<0.000000e+00> : vector<32x128xf32>
    %55 = tpu.matmul %53, %5, %cst_30 {dimension_numbers = #tpu.dot_dimension_numbers<[1], [0], [0], [1], [0, 0, 1, 1], [], []>} : vector<32x32xf32>, vector<32x128xf32>, vector<32x128xf32> -> vector<32x128xf32>
    %56 = arith.addf %54, %55 : vector<32x128xf32>
    %cst_31 = arith.constant dense<0.000000e+00> : vector<32x128xf32>
    %57 = tpu.matmul %41, %6, %cst_31 {dimension_numbers = #tpu.dot_dimension_numbers<[1], [0], [0], [1], [0, 0, 1, 1], [], []>} : vector<32x32xf32>, vector<32x128xf32>, vector<32x128xf32> -> vector<32x128xf32>
    %58 = arith.addf %56, %57 : vector<32x128xf32>
    %59 = arith.addf %58, %9 : vector<32x128xf32>
    %60 = vector.extract_strided_slice %59 {offsets = [0, 0], sizes = [32, 96], strides = [1, 1]} : vector<32x128xf32> to vector<32x96xf32>
    %61 = arith.negf %60 : vector<32x96xf32>
    %62 = math.exp %61 : vector<32x96xf32>
    %cst_32 = arith.constant 1.000000e+00 : f32
    %63 = vector.broadcast %cst_32 : f32 to vector<32x96xf32>
    %64 = arith.addf %63, %62 : vector<32x96xf32>
    %65 = arith.divf %63, %64 : vector<32x96xf32>
    %66 = vector.extract_strided_slice %65 {offsets = [0, 0], sizes = [32, 32], strides = [1, 1]} : vector<32x96xf32> to vector<32x32xf32>
    %67 = vector.extract_strided_slice %65 {offsets = [0, 32], sizes = [32, 32], strides = [1, 1]} : vector<32x96xf32> to vector<32x32xf32>
    %68 = vector.extract_strided_slice %65 {offsets = [0, 64], sizes = [32, 32], strides = [1, 1]} : vector<32x96xf32> to vector<32x32xf32>
    %69 = vector.extract_strided_slice %59 {offsets = [0, 96], sizes = [32, 32], strides = [1, 1]} : vector<32x128xf32> to vector<32x32xf32>
    %70 = math.tanh %69 : vector<32x32xf32>
    %71 = arith.mulf %39, %67 : vector<32x32xf32>
    %72 = arith.mulf %66, %70 : vector<32x32xf32>
    %73 = arith.addf %71, %72 : vector<32x32xf32>
    %74 = math.tanh %73 : vector<32x32xf32>
    %75 = arith.mulf %68, %74 : vector<32x32xf32>
    %76 = arith.index_cast %c1_i32 : i32 to index
    %c0_33 = arith.constant 0 : index
    %c0_34 = arith.constant 0 : index
    %77 = vector.load %arg10[%76, %c0_33, %c0_34] : memref<8x32x32xf32, #tpu.memory_space<vmem>>, vector<1x32x32xf32>
    %78 = vector.shape_cast %77 : vector<1x32x32xf32> to vector<32x32xf32>
    %79 = vector.shape_cast %75 : vector<32x32xf32> to vector<1x32x32xf32>
    tpu.vector_store %arg10[%76, %c0_33, %c0_34], %79 {strides = array<i32>} : memref<8x32x32xf32, #tpu.memory_space<vmem>>, vector<1x32x32xf32>,
    %cst_35 = arith.constant dense<0.000000e+00> : vector<32x32xf32>
    %80 = tpu.matmul %75, %10, %cst_35 {dimension_numbers = #tpu.dot_dimension_numbers<[1], [0], [0], [1], [0, 0, 1, 1], [], []>} : vector<32x32xf32>, vector<32x32xf32>, vector<32x32xf32> -> vector<32x32xf32>
    %81 = arith.addf %80, %13 : vector<32x32xf32>
    %cst_36 = arith.constant 0.000000e+00 : f32
    %82 = vector.broadcast %cst_36 : f32 to vector<32x32xf32>
    %83 = arith.maximumf %81, %82 : vector<32x32xf32>
    %c2_i32 = arith.constant 2 : i32
    %cst_37 = arith.constant dense<0.000000e+00> : vector<32x32xf32>
    %84 = tpu.matmul %83, %0, %cst_37 {dimension_numbers = #tpu.dot_dimension_numbers<[1], [0], [0], [1], [0, 0, 1, 1], [], []>} : vector<32x32xf32>, vector<32x32xf32>, vector<32x32xf32> -> vector<32x32xf32>
    %85 = arith.addf %84, %3 : vector<32x32xf32>
    %cst_38 = arith.constant 0.000000e+00 : f32
    %86 = vector.broadcast %cst_38 : f32 to vector<32x32xf32>
    %87 = arith.maximumf %85, %86 : vector<32x32xf32>
    %cst_39 = arith.constant dense<0.000000e+00> : vector<32x128xf32>
    %88 = tpu.matmul %83, %4, %cst_39 {dimension_numbers = #tpu.dot_dimension_numbers<[1], [0], [0], [1], [0, 0, 1, 1], [], []>} : vector<32x32xf32>, vector<32x128xf32>, vector<32x128xf32> -> vector<32x128xf32>
    %cst_40 = arith.constant dense<0.000000e+00> : vector<32x128xf32>
    %89 = tpu.matmul %87, %5, %cst_40 {dimension_numbers = #tpu.dot_dimension_numbers<[1], [0], [0], [1], [0, 0, 1, 1], [], []>} : vector<32x32xf32>, vector<32x128xf32>, vector<32x128xf32> -> vector<32x128xf32>
    %90 = arith.addf %88, %89 : vector<32x128xf32>
    %cst_41 = arith.constant dense<0.000000e+00> : vector<32x128xf32>
    %91 = tpu.matmul %75, %6, %cst_41 {dimension_numbers = #tpu.dot_dimension_numbers<[1], [0], [0], [1], [0, 0, 1, 1], [], []>} : vector<32x32xf32>, vector<32x128xf32>, vector<32x128xf32> -> vector<32x128xf32>
    %92 = arith.addf %90, %91 : vector<32x128xf32>
    %93 = arith.addf %92, %9 : vector<32x128xf32>
    %94 = vector.extract_strided_slice %93 {offsets = [0, 0], sizes = [32, 96], strides = [1, 1]} : vector<32x128xf32> to vector<32x96xf32>
    %95 = arith.negf %94 : vector<32x96xf32>
    %96 = math.exp %95 : vector<32x96xf32>
    %cst_42 = arith.constant 1.000000e+00 : f32
    %97 = vector.broadcast %cst_42 : f32 to vector<32x96xf32>
    %98 = arith.addf %97, %96 : vector<32x96xf32>
    %99 = arith.divf %97, %98 : vector<32x96xf32>
    %100 = vector.extract_strided_slice %99 {offsets = [0, 0], sizes = [32, 32], strides = [1, 1]} : vector<32x96xf32> to vector<32x32xf32>
    %101 = vector.extract_strided_slice %99 {offsets = [0, 32], sizes = [32, 32], strides = [1, 1]} : vector<32x96xf32> to vector<32x32xf32>
    %102 = vector.extract_strided_slice %99 {offsets = [0, 64], sizes = [32, 32], strides = [1, 1]} : vector<32x96xf32> to vector<32x32xf32>
    %103 = vector.extract_strided_slice %93 {offsets = [0, 96], sizes = [32, 32], strides = [1, 1]} : vector<32x128xf32> to vector<32x32xf32>
    %104 = math.tanh %103 : vector<32x32xf32>
    %105 = arith.mulf %73, %101 : vector<32x32xf32>
    %106 = arith.mulf %100, %104 : vector<32x32xf32>
    %107 = arith.addf %105, %106 : vector<32x32xf32>
    %108 = math.tanh %107 : vector<32x32xf32>
    %109 = arith.mulf %102, %108 : vector<32x32xf32>
    %110 = arith.index_cast %c2_i32 : i32 to index
    %c0_43 = arith.constant 0 : index
    %c0_44 = arith.constant 0 : index
    %111 = vector.load %arg10[%110, %c0_43, %c0_44] : memref<8x32x32xf32, #tpu.memory_space<vmem>>, vector<1x32x32xf32>
    %112 = vector.shape_cast %111 : vector<1x32x32xf32> to vector<32x32xf32>
    %113 = vector.shape_cast %109 : vector<32x32xf32> to vector<1x32x32xf32>
    tpu.vector_store %arg10[%110, %c0_43, %c0_44], %113 {strides = array<i32>} : memref<8x32x32xf32, #tpu.memory_space<vmem>>, vector<1x32x32xf32>,
    %cst_45 = arith.constant dense<0.000000e+00> : vector<32x32xf32>
    %114 = tpu.matmul %109, %10, %cst_45 {dimension_numbers = #tpu.dot_dimension_numbers<[1], [0], [0], [1], [0, 0, 1, 1], [], []>} : vector<32x32xf32>, vector<32x32xf32>, vector<32x32xf32> -> vector<32x32xf32>
    %115 = arith.addf %114, %13 : vector<32x32xf32>
    %cst_46 = arith.constant 0.000000e+00 : f32
    %116 = vector.broadcast %cst_46 : f32 to vector<32x32xf32>
    %117 = arith.maximumf %115, %116 : vector<32x32xf32>
    %c3_i32 = arith.constant 3 : i32
    %cst_47 = arith.constant dense<0.000000e+00> : vector<32x32xf32>
    %118 = tpu.matmul %117, %0, %cst_47 {dimension_numbers = #tpu.dot_dimension_numbers<[1], [0], [0], [1], [0, 0, 1, 1], [], []>} : vector<32x32xf32>, vector<32x32xf32>, vector<32x32xf32> -> vector<32x32xf32>
    %119 = arith.addf %118, %3 : vector<32x32xf32>
    %cst_48 = arith.constant 0.000000e+00 : f32
    %120 = vector.broadcast %cst_48 : f32 to vector<32x32xf32>
    %121 = arith.maximumf %119, %120 : vector<32x32xf32>
    %cst_49 = arith.constant dense<0.000000e+00> : vector<32x128xf32>
    %122 = tpu.matmul %117, %4, %cst_49 {dimension_numbers = #tpu.dot_dimension_numbers<[1], [0], [0], [1], [0, 0, 1, 1], [], []>} : vector<32x32xf32>, vector<32x128xf32>, vector<32x128xf32> -> vector<32x128xf32>
    %cst_50 = arith.constant dense<0.000000e+00> : vector<32x128xf32>
    %123 = tpu.matmul %121, %5, %cst_50 {dimension_numbers = #tpu.dot_dimension_numbers<[1], [0], [0], [1], [0, 0, 1, 1], [], []>} : vector<32x32xf32>, vector<32x128xf32>, vector<32x128xf32> -> vector<32x128xf32>
    %124 = arith.addf %122, %123 : vector<32x128xf32>
    %cst_51 = arith.constant dense<0.000000e+00> : vector<32x128xf32>
    %125 = tpu.matmul %109, %6, %cst_51 {dimension_numbers = #tpu.dot_dimension_numbers<[1], [0], [0], [1], [0, 0, 1, 1], [], []>} : vector<32x32xf32>, vector<32x128xf32>, vector<32x128xf32> -> vector<32x128xf32>
    %126 = arith.addf %124, %125 : vector<32x128xf32>
    %127 = arith.addf %126, %9 : vector<32x128xf32>
    %128 = vector.extract_strided_slice %127 {offsets = [0, 0], sizes = [32, 96], strides = [1, 1]} : vector<32x128xf32> to vector<32x96xf32>
    %129 = arith.negf %128 : vector<32x96xf32>
    %130 = math.exp %129 : vector<32x96xf32>
    %cst_52 = arith.constant 1.000000e+00 : f32
    %131 = vector.broadcast %cst_52 : f32 to vector<32x96xf32>
    %132 = arith.addf %131, %130 : vector<32x96xf32>
    %133 = arith.divf %131, %132 : vector<32x96xf32>
    %134 = vector.extract_strided_slice %133 {offsets = [0, 0], sizes = [32, 32], strides = [1, 1]} : vector<32x96xf32> to vector<32x32xf32>
    %135 = vector.extract_strided_slice %133 {offsets = [0, 32], sizes = [32, 32], strides = [1, 1]} : vector<32x96xf32> to vector<32x32xf32>
    %136 = vector.extract_strided_slice %133 {offsets = [0, 64], sizes = [32, 32], strides = [1, 1]} : vector<32x96xf32> to vector<32x32xf32>
    %137 = vector.extract_strided_slice %127 {offsets = [0, 96], sizes = [32, 32], strides = [1, 1]} : vector<32x128xf32> to vector<32x32xf32>
    %138 = math.tanh %137 : vector<32x32xf32>
    %139 = arith.mulf %107, %135 : vector<32x32xf32>
    %140 = arith.mulf %134, %138 : vector<32x32xf32>
    %141 = arith.addf %139, %140 : vector<32x32xf32>
    %142 = math.tanh %141 : vector<32x32xf32>
    %143 = arith.mulf %136, %142 : vector<32x32xf32>
    %144 = arith.index_cast %c3_i32 : i32 to index
    %c0_53 = arith.constant 0 : index
    %c0_54 = arith.constant 0 : index
    %145 = vector.load %arg10[%144, %c0_53, %c0_54] : memref<8x32x32xf32, #tpu.memory_space<vmem>>, vector<1x32x32xf32>
    %146 = vector.shape_cast %145 : vector<1x32x32xf32> to vector<32x32xf32>
    %147 = vector.shape_cast %143 : vector<32x32xf32> to vector<1x32x32xf32>
    tpu.vector_store %arg10[%144, %c0_53, %c0_54], %147 {strides = array<i32>} : memref<8x32x32xf32, #tpu.memory_space<vmem>>, vector<1x32x32xf32>,
    %cst_55 = arith.constant dense<0.000000e+00> : vector<32x32xf32>
    %148 = tpu.matmul %143, %10, %cst_55 {dimension_numbers = #tpu.dot_dimension_numbers<[1], [0], [0], [1], [0, 0, 1, 1], [], []>} : vector<32x32xf32>, vector<32x32xf32>, vector<32x32xf32> -> vector<32x32xf32>
    %149 = arith.addf %148, %13 : vector<32x32xf32>
    %cst_56 = arith.constant 0.000000e+00 : f32
    %150 = vector.broadcast %cst_56 : f32 to vector<32x32xf32>
    %151 = arith.maximumf %149, %150 : vector<32x32xf32>
    %c4_i32 = arith.constant 4 : i32
    %cst_57 = arith.constant dense<0.000000e+00> : vector<32x32xf32>
    %152 = tpu.matmul %151, %0, %cst_57 {dimension_numbers = #tpu.dot_dimension_numbers<[1], [0], [0], [1], [0, 0, 1, 1], [], []>} : vector<32x32xf32>, vector<32x32xf32>, vector<32x32xf32> -> vector<32x32xf32>
    %153 = arith.addf %152, %3 : vector<32x32xf32>
    %cst_58 = arith.constant 0.000000e+00 : f32
    %154 = vector.broadcast %cst_58 : f32 to vector<32x32xf32>
    %155 = arith.maximumf %153, %154 : vector<32x32xf32>
    %cst_59 = arith.constant dense<0.000000e+00> : vector<32x128xf32>
    %156 = tpu.matmul %151, %4, %cst_59 {dimension_numbers = #tpu.dot_dimension_numbers<[1], [0], [0], [1], [0, 0, 1, 1], [], []>} : vector<32x32xf32>, vector<32x128xf32>, vector<32x128xf32> -> vector<32x128xf32>
    %cst_60 = arith.constant dense<0.000000e+00> : vector<32x128xf32>
    %157 = tpu.matmul %155, %5, %cst_60 {dimension_numbers = #tpu.dot_dimension_numbers<[1], [0], [0], [1], [0, 0, 1, 1], [], []>} : vector<32x32xf32>, vector<32x128xf32>, vector<32x128xf32> -> vector<32x128xf32>
    %158 = arith.addf %156, %157 : vector<32x128xf32>
    %cst_61 = arith.constant dense<0.000000e+00> : vector<32x128xf32>
    %159 = tpu.matmul %143, %6, %cst_61 {dimension_numbers = #tpu.dot_dimension_numbers<[1], [0], [0], [1], [0, 0, 1, 1], [], []>} : vector<32x32xf32>, vector<32x128xf32>, vector<32x128xf32> -> vector<32x128xf32>
    %160 = arith.addf %158, %159 : vector<32x128xf32>
    %161 = arith.addf %160, %9 : vector<32x128xf32>
    %162 = vector.extract_strided_slice %161 {offsets = [0, 0], sizes = [32, 96], strides = [1, 1]} : vector<32x128xf32> to vector<32x96xf32>
    %163 = arith.negf %162 : vector<32x96xf32>
    %164 = math.exp %163 : vector<32x96xf32>
    %cst_62 = arith.constant 1.000000e+00 : f32
    %165 = vector.broadcast %cst_62 : f32 to vector<32x96xf32>
    %166 = arith.addf %165, %164 : vector<32x96xf32>
    %167 = arith.divf %165, %166 : vector<32x96xf32>
    %168 = vector.extract_strided_slice %167 {offsets = [0, 0], sizes = [32, 32], strides = [1, 1]} : vector<32x96xf32> to vector<32x32xf32>
    %169 = vector.extract_strided_slice %167 {offsets = [0, 32], sizes = [32, 32], strides = [1, 1]} : vector<32x96xf32> to vector<32x32xf32>
    %170 = vector.extract_strided_slice %167 {offsets = [0, 64], sizes = [32, 32], strides = [1, 1]} : vector<32x96xf32> to vector<32x32xf32>
    %171 = vector.extract_strided_slice %161 {offsets = [0, 96], sizes = [32, 32], strides = [1, 1]} : vector<32x128xf32> to vector<32x32xf32>
    %172 = math.tanh %171 : vector<32x32xf32>
    %173 = arith.mulf %141, %169 : vector<32x32xf32>
    %174 = arith.mulf %168, %172 : vector<32x32xf32>
    %175 = arith.addf %173, %174 : vector<32x32xf32>
    %176 = math.tanh %175 : vector<32x32xf32>
    %177 = arith.mulf %170, %176 : vector<32x32xf32>
    %178 = arith.index_cast %c4_i32 : i32 to index
    %c0_63 = arith.constant 0 : index
    %c0_64 = arith.constant 0 : index
    %179 = vector.load %arg10[%178, %c0_63, %c0_64] : memref<8x32x32xf32, #tpu.memory_space<vmem>>, vector<1x32x32xf32>
    %180 = vector.shape_cast %179 : vector<1x32x32xf32> to vector<32x32xf32>
    %181 = vector.shape_cast %177 : vector<32x32xf32> to vector<1x32x32xf32>
    tpu.vector_store %arg10[%178, %c0_63, %c0_64], %181 {strides = array<i32>} : memref<8x32x32xf32, #tpu.memory_space<vmem>>, vector<1x32x32xf32>,
    %cst_65 = arith.constant dense<0.000000e+00> : vector<32x32xf32>
    %182 = tpu.matmul %177, %10, %cst_65 {dimension_numbers = #tpu.dot_dimension_numbers<[1], [0], [0], [1], [0, 0, 1, 1], [], []>} : vector<32x32xf32>, vector<32x32xf32>, vector<32x32xf32> -> vector<32x32xf32>
    %183 = arith.addf %182, %13 : vector<32x32xf32>
    %cst_66 = arith.constant 0.000000e+00 : f32
    %184 = vector.broadcast %cst_66 : f32 to vector<32x32xf32>
    %185 = arith.maximumf %183, %184 : vector<32x32xf32>
    %c5_i32 = arith.constant 5 : i32
    %cst_67 = arith.constant dense<0.000000e+00> : vector<32x32xf32>
    %186 = tpu.matmul %185, %0, %cst_67 {dimension_numbers = #tpu.dot_dimension_numbers<[1], [0], [0], [1], [0, 0, 1, 1], [], []>} : vector<32x32xf32>, vector<32x32xf32>, vector<32x32xf32> -> vector<32x32xf32>
    %187 = arith.addf %186, %3 : vector<32x32xf32>
    %cst_68 = arith.constant 0.000000e+00 : f32
    %188 = vector.broadcast %cst_68 : f32 to vector<32x32xf32>
    %189 = arith.maximumf %187, %188 : vector<32x32xf32>
    %cst_69 = arith.constant dense<0.000000e+00> : vector<32x128xf32>
    %190 = tpu.matmul %185, %4, %cst_69 {dimension_numbers = #tpu.dot_dimension_numbers<[1], [0], [0], [1], [0, 0, 1, 1], [], []>} : vector<32x32xf32>, vector<32x128xf32>, vector<32x128xf32> -> vector<32x128xf32>
    %cst_70 = arith.constant dense<0.000000e+00> : vector<32x128xf32>
    %191 = tpu.matmul %189, %5, %cst_70 {dimension_numbers = #tpu.dot_dimension_numbers<[1], [0], [0], [1], [0, 0, 1, 1], [], []>} : vector<32x32xf32>, vector<32x128xf32>, vector<32x128xf32> -> vector<32x128xf32>
    %192 = arith.addf %190, %191 : vector<32x128xf32>
    %cst_71 = arith.constant dense<0.000000e+00> : vector<32x128xf32>
    %193 = tpu.matmul %177, %6, %cst_71 {dimension_numbers = #tpu.dot_dimension_numbers<[1], [0], [0], [1], [0, 0, 1, 1], [], []>} : vector<32x32xf32>, vector<32x128xf32>, vector<32x128xf32> -> vector<32x128xf32>
    %194 = arith.addf %192, %193 : vector<32x128xf32>
    %195 = arith.addf %194, %9 : vector<32x128xf32>
    %196 = vector.extract_strided_slice %195 {offsets = [0, 0], sizes = [32, 96], strides = [1, 1]} : vector<32x128xf32> to vector<32x96xf32>
    %197 = arith.negf %196 : vector<32x96xf32>
    %198 = math.exp %197 : vector<32x96xf32>
    %cst_72 = arith.constant 1.000000e+00 : f32
    %199 = vector.broadcast %cst_72 : f32 to vector<32x96xf32>
    %200 = arith.addf %199, %198 : vector<32x96xf32>
    %201 = arith.divf %199, %200 : vector<32x96xf32>
    %202 = vector.extract_strided_slice %201 {offsets = [0, 0], sizes = [32, 32], strides = [1, 1]} : vector<32x96xf32> to vector<32x32xf32>
    %203 = vector.extract_strided_slice %201 {offsets = [0, 32], sizes = [32, 32], strides = [1, 1]} : vector<32x96xf32> to vector<32x32xf32>
    %204 = vector.extract_strided_slice %201 {offsets = [0, 64], sizes = [32, 32], strides = [1, 1]} : vector<32x96xf32> to vector<32x32xf32>
    %205 = vector.extract_strided_slice %195 {offsets = [0, 96], sizes = [32, 32], strides = [1, 1]} : vector<32x128xf32> to vector<32x32xf32>
    %206 = math.tanh %205 : vector<32x32xf32>
    %207 = arith.mulf %175, %203 : vector<32x32xf32>
    %208 = arith.mulf %202, %206 : vector<32x32xf32>
    %209 = arith.addf %207, %208 : vector<32x32xf32>
    %210 = math.tanh %209 : vector<32x32xf32>
    %211 = arith.mulf %204, %210 : vector<32x32xf32>
    %212 = arith.index_cast %c5_i32 : i32 to index
    %c0_73 = arith.constant 0 : index
    %c0_74 = arith.constant 0 : index
    %213 = vector.load %arg10[%212, %c0_73, %c0_74] : memref<8x32x32xf32, #tpu.memory_space<vmem>>, vector<1x32x32xf32>
    %214 = vector.shape_cast %213 : vector<1x32x32xf32> to vector<32x32xf32>
    %215 = vector.shape_cast %211 : vector<32x32xf32> to vector<1x32x32xf32>
    tpu.vector_store %arg10[%212, %c0_73, %c0_74], %215 {strides = array<i32>} : memref<8x32x32xf32, #tpu.memory_space<vmem>>, vector<1x32x32xf32>,
    %cst_75 = arith.constant dense<0.000000e+00> : vector<32x32xf32>
    %216 = tpu.matmul %211, %10, %cst_75 {dimension_numbers = #tpu.dot_dimension_numbers<[1], [0], [0], [1], [0, 0, 1, 1], [], []>} : vector<32x32xf32>, vector<32x32xf32>, vector<32x32xf32> -> vector<32x32xf32>
    %217 = arith.addf %216, %13 : vector<32x32xf32>
    %cst_76 = arith.constant 0.000000e+00 : f32
    %218 = vector.broadcast %cst_76 : f32 to vector<32x32xf32>
    %219 = arith.maximumf %217, %218 : vector<32x32xf32>
    %c6_i32 = arith.constant 6 : i32
    %cst_77 = arith.constant dense<0.000000e+00> : vector<32x32xf32>
    %220 = tpu.matmul %219, %0, %cst_77 {dimension_numbers = #tpu.dot_dimension_numbers<[1], [0], [0], [1], [0, 0, 1, 1], [], []>} : vector<32x32xf32>, vector<32x32xf32>, vector<32x32xf32> -> vector<32x32xf32>
    %221 = arith.addf %220, %3 : vector<32x32xf32>
    %cst_78 = arith.constant 0.000000e+00 : f32
    %222 = vector.broadcast %cst_78 : f32 to vector<32x32xf32>
    %223 = arith.maximumf %221, %222 : vector<32x32xf32>
    %cst_79 = arith.constant dense<0.000000e+00> : vector<32x128xf32>
    %224 = tpu.matmul %219, %4, %cst_79 {dimension_numbers = #tpu.dot_dimension_numbers<[1], [0], [0], [1], [0, 0, 1, 1], [], []>} : vector<32x32xf32>, vector<32x128xf32>, vector<32x128xf32> -> vector<32x128xf32>
    %cst_80 = arith.constant dense<0.000000e+00> : vector<32x128xf32>
    %225 = tpu.matmul %223, %5, %cst_80 {dimension_numbers = #tpu.dot_dimension_numbers<[1], [0], [0], [1], [0, 0, 1, 1], [], []>} : vector<32x32xf32>, vector<32x128xf32>, vector<32x128xf32> -> vector<32x128xf32>
    %226 = arith.addf %224, %225 : vector<32x128xf32>
    %cst_81 = arith.constant dense<0.000000e+00> : vector<32x128xf32>
    %227 = tpu.matmul %211, %6, %cst_81 {dimension_numbers = #tpu.dot_dimension_numbers<[1], [0], [0], [1], [0, 0, 1, 1], [], []>} : vector<32x32xf32>, vector<32x128xf32>, vector<32x128xf32> -> vector<32x128xf32>
    %228 = arith.addf %226, %227 : vector<32x128xf32>
    %229 = arith.addf %228, %9 : vector<32x128xf32>
    %230 = vector.extract_strided_slice %229 {offsets = [0, 0], sizes = [32, 96], strides = [1, 1]} : vector<32x128xf32> to vector<32x96xf32>
    %231 = arith.negf %230 : vector<32x96xf32>
    %232 = math.exp %231 : vector<32x96xf32>
    %cst_82 = arith.constant 1.000000e+00 : f32
    %233 = vector.broadcast %cst_82 : f32 to vector<32x96xf32>
    %234 = arith.addf %233, %232 : vector<32x96xf32>
    %235 = arith.divf %233, %234 : vector<32x96xf32>
    %236 = vector.extract_strided_slice %235 {offsets = [0, 0], sizes = [32, 32], strides = [1, 1]} : vector<32x96xf32> to vector<32x32xf32>
    %237 = vector.extract_strided_slice %235 {offsets = [0, 32], sizes = [32, 32], strides = [1, 1]} : vector<32x96xf32> to vector<32x32xf32>
    %238 = vector.extract_strided_slice %235 {offsets = [0, 64], sizes = [32, 32], strides = [1, 1]} : vector<32x96xf32> to vector<32x32xf32>
    %239 = vector.extract_strided_slice %229 {offsets = [0, 96], sizes = [32, 32], strides = [1, 1]} : vector<32x128xf32> to vector<32x32xf32>
    %240 = math.tanh %239 : vector<32x32xf32>
    %241 = arith.mulf %209, %237 : vector<32x32xf32>
    %242 = arith.mulf %236, %240 : vector<32x32xf32>
    %243 = arith.addf %241, %242 : vector<32x32xf32>
    %244 = math.tanh %243 : vector<32x32xf32>
    %245 = arith.mulf %238, %244 : vector<32x32xf32>
    %246 = arith.index_cast %c6_i32 : i32 to index
    %c0_83 = arith.constant 0 : index
    %c0_84 = arith.constant 0 : index
    %247 = vector.load %arg10[%246, %c0_83, %c0_84] : memref<8x32x32xf32, #tpu.memory_space<vmem>>, vector<1x32x32xf32>
    %248 = vector.shape_cast %247 : vector<1x32x32xf32> to vector<32x32xf32>
    %249 = vector.shape_cast %245 : vector<32x32xf32> to vector<1x32x32xf32>
    tpu.vector_store %arg10[%246, %c0_83, %c0_84], %249 {strides = array<i32>} : memref<8x32x32xf32, #tpu.memory_space<vmem>>, vector<1x32x32xf32>,
    %cst_85 = arith.constant dense<0.000000e+00> : vector<32x32xf32>
    %250 = tpu.matmul %245, %10, %cst_85 {dimension_numbers = #tpu.dot_dimension_numbers<[1], [0], [0], [1], [0, 0, 1, 1], [], []>} : vector<32x32xf32>, vector<32x32xf32>, vector<32x32xf32> -> vector<32x32xf32>
    %251 = arith.addf %250, %13 : vector<32x32xf32>
    %cst_86 = arith.constant 0.000000e+00 : f32
    %252 = vector.broadcast %cst_86 : f32 to vector<32x32xf32>
    %253 = arith.maximumf %251, %252 : vector<32x32xf32>
    %c7_i32 = arith.constant 7 : i32
    %cst_87 = arith.constant dense<0.000000e+00> : vector<32x32xf32>
    %254 = tpu.matmul %253, %0, %cst_87 {dimension_numbers = #tpu.dot_dimension_numbers<[1], [0], [0], [1], [0, 0, 1, 1], [], []>} : vector<32x32xf32>, vector<32x32xf32>, vector<32x32xf32> -> vector<32x32xf32>
    %255 = arith.addf %254, %3 : vector<32x32xf32>
    %cst_88 = arith.constant 0.000000e+00 : f32
    %256 = vector.broadcast %cst_88 : f32 to vector<32x32xf32>
    %257 = arith.maximumf %255, %256 : vector<32x32xf32>
    %cst_89 = arith.constant dense<0.000000e+00> : vector<32x128xf32>
    %258 = tpu.matmul %253, %4, %cst_89 {dimension_numbers = #tpu.dot_dimension_numbers<[1], [0], [0], [1], [0, 0, 1, 1], [], []>} : vector<32x32xf32>, vector<32x128xf32>, vector<32x128xf32> -> vector<32x128xf32>
    %cst_90 = arith.constant dense<0.000000e+00> : vector<32x128xf32>
    %259 = tpu.matmul %257, %5, %cst_90 {dimension_numbers = #tpu.dot_dimension_numbers<[1], [0], [0], [1], [0, 0, 1, 1], [], []>} : vector<32x32xf32>, vector<32x128xf32>, vector<32x128xf32> -> vector<32x128xf32>
    %260 = arith.addf %258, %259 : vector<32x128xf32>
    %cst_91 = arith.constant dense<0.000000e+00> : vector<32x128xf32>
    %261 = tpu.matmul %245, %6, %cst_91 {dimension_numbers = #tpu.dot_dimension_numbers<[1], [0], [0], [1], [0, 0, 1, 1], [], []>} : vector<32x32xf32>, vector<32x128xf32>, vector<32x128xf32> -> vector<32x128xf32>
    %262 = arith.addf %260, %261 : vector<32x128xf32>
    %263 = arith.addf %262, %9 : vector<32x128xf32>
    %264 = vector.extract_strided_slice %263 {offsets = [0, 0], sizes = [32, 96], strides = [1, 1]} : vector<32x128xf32> to vector<32x96xf32>
    %265 = arith.negf %264 : vector<32x96xf32>
    %266 = math.exp %265 : vector<32x96xf32>
    %cst_92 = arith.constant 1.000000e+00 : f32
    %267 = vector.broadcast %cst_92 : f32 to vector<32x96xf32>
    %268 = arith.addf %267, %266 : vector<32x96xf32>
    %269 = arith.divf %267, %268 : vector<32x96xf32>
    %270 = vector.extract_strided_slice %269 {offsets = [0, 0], sizes = [32, 32], strides = [1, 1]} : vector<32x96xf32> to vector<32x32xf32>
    %271 = vector.extract_strided_slice %269 {offsets = [0, 32], sizes = [32, 32], strides = [1, 1]} : vector<32x96xf32> to vector<32x32xf32>
    %272 = vector.extract_strided_slice %269 {offsets = [0, 64], sizes = [32, 32], strides = [1, 1]} : vector<32x96xf32> to vector<32x32xf32>
    %273 = vector.extract_strided_slice %263 {offsets = [0, 96], sizes = [32, 32], strides = [1, 1]} : vector<32x128xf32> to vector<32x32xf32>
    %274 = math.tanh %273 : vector<32x32xf32>
    %275 = arith.mulf %243, %271 : vector<32x32xf32>
    %276 = arith.mulf %270, %274 : vector<32x32xf32>
    %277 = arith.addf %275, %276 : vector<32x32xf32>
    %278 = math.tanh %277 : vector<32x32xf32>
    %279 = arith.mulf %272, %278 : vector<32x32xf32>
    %280 = arith.index_cast %c7_i32 : i32 to index
    %c0_93 = arith.constant 0 : index
    %c0_94 = arith.constant 0 : index
    %281 = vector.load %arg10[%280, %c0_93, %c0_94] : memref<8x32x32xf32, #tpu.memory_space<vmem>>, vector<1x32x32xf32>
    %282 = vector.shape_cast %281 : vector<1x32x32xf32> to vector<32x32xf32>
    %283 = vector.shape_cast %279 : vector<32x32xf32> to vector<1x32x32xf32>
    tpu.vector_store %arg10[%280, %c0_93, %c0_94], %283 {strides = array<i32>} : memref<8x32x32xf32, #tpu.memory_space<vmem>>, vector<1x32x32xf32>,
    %cst_95 = arith.constant dense<0.000000e+00> : vector<32x32xf32>
    %284 = tpu.matmul %279, %10, %cst_95 {dimension_numbers = #tpu.dot_dimension_numbers<[1], [0], [0], [1], [0, 0, 1, 1], [], []>} : vector<32x32xf32>, vector<32x32xf32>, vector<32x32xf32> -> vector<32x32xf32>
    %285 = arith.addf %284, %13 : vector<32x32xf32>
    %cst_96 = arith.constant 0.000000e+00 : f32
    %286 = vector.broadcast %cst_96 : f32 to vector<32x32xf32>
    %287 = arith.maximumf %285, %286 : vector<32x32xf32>
    %c8_i32 = arith.constant 8 : i32
    return
  }
  func.func @transform_0(%arg0: i32) -> (i32, i32) {
    %c0_i32 = arith.constant 0 : i32
    %c0_i32_0 = arith.constant 0 : i32
    return %arg0, %c0_i32 : i32, i32
  }
  func.func @transform_1(%arg0: i32) -> (i32, i32) {
    %c0_i32 = arith.constant 0 : i32
    %c0_i32_0 = arith.constant 0 : i32
    %c0_i32_1 = arith.constant 0 : i32
    return %c0_i32, %c0_i32_0 : i32, i32
  }
  func.func @transform_2(%arg0: i32) -> (i32, i32) {
    %c0_i32 = arith.constant 0 : i32
    %c0_i32_0 = arith.constant 0 : i32
    %c0_i32_1 = arith.constant 0 : i32
    return %c0_i32, %c0_i32_0 : i32, i32
  }
  func.func @transform_3(%arg0: i32) -> (i32, i32) {
    %c0_i32 = arith.constant 0 : i32
    %c0_i32_0 = arith.constant 0 : i32
    %c0_i32_1 = arith.constant 0 : i32
    return %c0_i32, %c0_i32_0 : i32, i32
  }
  func.func @transform_4(%arg0: i32) -> (i32, i32) {
    %c0_i32 = arith.constant 0 : i32
    %c0_i32_0 = arith.constant 0 : i32
    %c0_i32_1 = arith.constant 0 : i32
    return %c0_i32, %c0_i32_0 : i32, i32
  }
  func.func @transform_5(%arg0: i32) -> (i32, i32) {
    %c0_i32 = arith.constant 0 : i32
    %c0_i32_0 = arith.constant 0 : i32
    %c0_i32_1 = arith.constant 0 : i32
    return %c0_i32, %c0_i32_0 : i32, i32
  }
  func.func @transform_6(%arg0: i32) -> (i32, i32) {
    %c0_i32 = arith.constant 0 : i32
    %c0_i32_0 = arith.constant 0 : i32
    %c0_i32_1 = arith.constant 0 : i32
    return %c0_i32, %c0_i32_0 : i32, i32
  }
  func.func @transform_7(%arg0: i32) -> (i32, i32) {
    %c0_i32 = arith.constant 0 : i32
    %c0_i32_0 = arith.constant 0 : i32
    %c0_i32_1 = arith.constant 0 : i32
    return %c0_i32, %c0_i32_0 : i32, i32
  }
  func.func @transform_8(%arg0: i32) -> (i32, i32) {
    %c0_i32 = arith.constant 0 : i32
    %c0_i32_0 = arith.constant 0 : i32
    %c0_i32_1 = arith.constant 0 : i32
    return %c0_i32, %c0_i32_0 : i32, i32
  }
  func.func @transform_9(%arg0: i32) -> (i32, i32, i32) {
    %c0_i32 = arith.constant 0 : i32
    %c0_i32_0 = arith.constant 0 : i32
    %c0_i32_1 = arith.constant 0 : i32
    return %c0_i32, %arg0, %c0_i32_0 : i32, i32, i32
  }
}

</mosaic_0001>

<llo_original>
// kernel: tpu_custom_call.1
$region0: #{tpu_custom_call.1}
  #allocation0 [shape = 'u32[]', space=smem, size = 0x4, offset = 0x4, fixed_abs, tag = 'smem constant byte address 0x4 - core index']
  #allocation1 [shape = 'u32[72,128]{1,0:T(1,128)}', space=vmem, size = 0x9000, scoped, tag = 'internal scratch']
  %s0 = inlined_call_operand.hbm [shape: f32[32,32], index: 0, kind: input, shape index: {}]
  %s1 = inlined_call_operand.hbm [shape: f32[32,32], index: 1, kind: input, shape index: {}]
  %s2 = inlined_call_operand.vmem [shape: f32[1,32], index: 2, kind: input, shape index: {}]
  %s3 = inlined_call_operand.hbm [shape: f32[32,128], index: 3, kind: input, shape index: {}]
  %s4 = inlined_call_operand.hbm [shape: f32[32,128], index: 4, kind: input, shape index: {}]
  %s5 = inlined_call_operand.hbm [shape: f32[32,128], index: 5, kind: input, shape index: {}]
  %s6 = inlined_call_operand.vmem [shape: f32[1,128], index: 6, kind: input, shape index: {}]
  %s7 = inlined_call_operand.hbm [shape: f32[32,32], index: 7, kind: input, shape index: {}]
  %s8 = inlined_call_operand.vmem [shape: f32[1,32], index: 8, kind: input, shape index: {}]
  %s9 = inlined_call_operand.hbm [shape: f32[8,32,32], index: 9, kind: output, shape index: {}]
  %s10 = sld [smem:[#allocation0]]
  $region70: #{tpu_custom_call.1} parent=0
    _
  %s12 = ssub.s32 1, %s10
  %s13 = scalar_select 0, %s12, %s10
  $region1: #{tpu_custom_call.1} parent=0
    #allocation2 [shape = 'u8[16384]{0}', space=vmem, size = 0x4000, scoped, tag = 'input window, operand 0, single buffered']
    #allocation3 [shape = 's32[1]{0}', space=sflag, size = 0x4, scoped, tag = 'scoped memory for tpu_custom_call.1']
    #allocation4 [shape = 's32[1]{0}', space=sflag, size = 0x4, scoped, tag = 'scoped memory for tpu_custom_call.1']
    #allocation5 [shape = 'u8[16384]{0}', space=vmem, size = 0x4000, scoped, tag = 'input window, operand 1, single buffered']
    #allocation6 [shape = 's32[1]{0}', space=sflag, size = 0x4, scoped, tag = 'scoped memory for tpu_custom_call.1']
    #allocation7 [shape = 'u8[16384]{0}', space=vmem, size = 0x4000, scoped, tag = 'input window, operand 3, single buffered']
    #allocation8 [shape = 'u8[16384]{0}', space=vmem, size = 0x4000, scoped, tag = 'input window, operand 4, single buffered']
    #allocation9 [shape = 's32[1]{0}', space=sflag, size = 0x4, scoped, tag = 'scoped memory for tpu_custom_call.1']
    #allocation10 [shape = 'u8[16384]{0}', space=vmem, size = 0x4000, scoped, tag = 'input window, operand 5, single buffered']
    #allocation11 [shape = 'u8[16384]{0}', space=vmem, size = 0x4000, scoped, tag = 'input window, operand 7, single buffered']
    #allocation12 [shape = 's32[1]{0}', space=sflag, size = 0x4, scoped, tag = 'scoped memory for tpu_custom_call.1']
    #allocation13 [shape = 'u8[131072]{0}', space=vmem, size = 0x20000, scoped, tag = 'output window, operand 0, single buffered']
    %14 = vsyncpa [#allocation3], 0
    %15 = vsyncpa [#allocation6], 0
    %16 = vsyncpa [#allocation9], 0
    %17 = vsyncpa [#allocation12], 0
    %18 = vsyncpa [#allocation4], 0
    // Predicated region
    $region2: #{tpu_custom_call.1} parent=1 // pred_check
      _
    $region3: #{tpu_custom_call.1} parent=1 // pred_check_branch
      %20 = sbr.rel (0) target = $region5
    $region4: #{tpu_custom_call.1} parent=1 // pred_region
      %22 = vsyncadd [#allocation3], 0
      %s23 = sshll.u32 %s0, 4
      %s24 = int_to_ptr.hbm [resolvable:$true] %s23
      %s25 = sshll.u32 [#allocation2], 4
      %s26 = int_to_ptr.vmem [resolvable:$true] %s25
      %31 = dma.hbm_to_vmem [thread:$0]  %s24, 512, %s26, [#allocation3], 128, 128, 8
    $region5: #{tpu_custom_call.1} parent=1 // pred_fallthru
      _
    // Predicated region
    $region6: #{tpu_custom_call.1} parent=1 // pred_check
      _
    $region7: #{tpu_custom_call.1} parent=1 // pred_check_branch
      %33 = sbr.rel (0) target = $region9
    $region8: #{tpu_custom_call.1} parent=1 // pred_region
      %35 = vsyncadd [#allocation6], 0
      %s36 = sshll.u32 %s1, 4
      %s37 = int_to_ptr.hbm [resolvable:$true] %s36
      %s38 = sshll.u32 [#allocation5], 4
      %s39 = int_to_ptr.vmem [resolvable:$true] %s38
      %44 = dma.hbm_to_vmem [thread:$0]  %s37, 512, %s39, [#allocation6], 128, 128, 8
    $region9: #{tpu_custom_call.1} parent=1 // pred_fallthru
      _
    // Predicated region
    $region10: #{tpu_custom_call.1} parent=1 // pred_check
      _
    $region11: #{tpu_custom_call.1} parent=1 // pred_check_branch
      %46 = sbr.rel (0) target = $region13
    $region12: #{tpu_custom_call.1} parent=1 // pred_region
      _
    $region13: #{tpu_custom_call.1} parent=1 // pred_fallthru
      _
    // Predicated region
    $region14: #{tpu_custom_call.1} parent=1 // pred_check
      _
    $region15: #{tpu_custom_call.1} parent=1 // pred_check_branch
      %48 = sbr.rel (0) target = $region17
    $region16: #{tpu_custom_call.1} parent=1 // pred_region
      %50 = vsyncadd [#allocation6], 0
      %s51 = sshll.u32 %s3, 4
      %s52 = int_to_ptr.hbm [resolvable:$true] %s51
      %s53 = sshll.u32 [#allocation7], 4
      %s54 = int_to_ptr.vmem [resolvable:$true] %s53
      %59 = dma.hbm_to_vmem [thread:$0]  %s52, 512, %s54, [#allocation6], 128, 128, 8
    $region17: #{tpu_custom_call.1} parent=1 // pred_fallthru
      _
    // Predicated region
    $region18: #{tpu_custom_call.1} parent=1 // pred_check
      _
    $region19: #{tpu_custom_call.1} parent=1 // pred_check_branch
      %61 = sbr.rel (0) target = $region21
    $region20: #{tpu_custom_call.1} parent=1 // pred_region
      %63 = vsyncadd [#allocation9], 0
      %s64 = sshll.u32 %s4, 4
      %s65 = int_to_ptr.hbm [resolvable:$true] %s64
      %s66 = sshll.u32 [#allocation8], 4
      %s67 = int_to_ptr.vmem [resolvable:$true] %s66
      %72 = dma.hbm_to_vmem [thread:$0]  %s65, 512, %s67, [#allocation9], 128, 128, 8
    $region21: #{tpu_custom_call.1} parent=1 // pred_fallthru
      _
    // Predicated region
    $region22: #{tpu_custom_call.1} parent=1 // pred_check
      _
    $region23: #{tpu_custom_call.1} parent=1 // pred_check_branch
      %74 = sbr.rel (0) target = $region25
    $region24: #{tpu_custom_call.1} parent=1 // pred_region
      %76 = vsyncadd [#allocation9], 0
      %s77 = sshll.u32 %s5, 4
      %s78 = int_to_ptr.hbm [resolvable:$true] %s77
      %s79 = sshll.u32 [#allocation10], 4
      %s80 = int_to_ptr.vmem [resolvable:$true] %s79
      %85 = dma.hbm_to_vmem [thread:$0]  %s78, 512, %s80, [#allocation9], 128, 128, 8
    $region25: #{tpu_custom_call.1} parent=1 // pred_fallthru
      _
    // Predicated region
    $region26: #{tpu_custom_call.1} parent=1 // pred_check
      _
    $region27: #{tpu_custom_call.1} parent=1 // pred_check_branch
      %87 = sbr.rel (0) target = $region29
    $region28: #{tpu_custom_call.1} parent=1 // pred_region
      _
    $region29: #{tpu_custom_call.1} parent=1 // pred_fallthru
      _
    // Predicated region
    $region30: #{tpu_custom_call.1} parent=1 // pred_check
      _
    $region31: #{tpu_custom_call.1} parent=1 // pred_check_branch
      %89 = sbr.rel (0) target = $region33
    $region32: #{tpu_custom_call.1} parent=1 // pred_region
      %91 = vsyncadd [#allocation12], 0
      %s92 = sshll.u32 %s7, 4
      %s93 = int_to_ptr.hbm [resolvable:$true] %s92
      %s94 = sshll.u32 [#allocation11], 4
      %s95 = int_to_ptr.vmem [resolvable:$true] %s94
      %100 = dma.hbm_to_vmem [thread:$0]  %s93, 512, %s95, [#allocation12], 128, 128, 8
    $region33: #{tpu_custom_call.1} parent=1 // pred_fallthru
      _
    // Predicated region
    $region34: #{tpu_custom_call.1} parent=1 // pred_check
      _
    $region35: #{tpu_custom_call.1} parent=1 // pred_check_branch
      %102 = sbr.rel (0) target = $region37
    $region36: #{tpu_custom_call.1} parent=1 // pred_region
      _
    $region37: #{tpu_custom_call.1} parent=1 // pred_fallthru
      _
    // Predicated region
    $region38: #{tpu_custom_call.1} parent=1 // pred_check
      _
    $region39: #{tpu_custom_call.1} parent=1 // pred_check_branch
      %104 = sbr.rel (0) target = $region41
    $region40: #{tpu_custom_call.1} parent=1 // pred_region
      %106 = dma.done [#allocation3], 512
    $region41: #{tpu_custom_call.1} parent=1 // pred_fallthru
      _
    // Predicated region
    $region42: #{tpu_custom_call.1} parent=1 // pred_check
      _
    $region43: #{tpu_custom_call.1} parent=1 // pred_check_branch
      %108 = sbr.rel (0) target = $region45
    $region44: #{tpu_custom_call.1} parent=1 // pred_region
      %110 = dma.done [#allocation6], 512
    $region45: #{tpu_custom_call.1} parent=1 // pred_fallthru
      _
    // Predicated region
    $region46: #{tpu_custom_call.1} parent=1 // pred_check
      _
    $region47: #{tpu_custom_call.1} parent=1 // pred_check_branch
      %112 = sbr.rel (0) target = $region49
    $region48: #{tpu_custom_call.1} parent=1 // pred_region
      %114 = dma.done [#allocation6], 512
    $region49: #{tpu_custom_call.1} parent=1 // pred_fallthru
      _
    // Predicated region
    $region50: #{tpu_custom_call.1} parent=1 // pred_check
      _
    $region51: #{tpu_custom_call.1} parent=1 // pred_check_branch
      %116 = sbr.rel (0) target = $region53
    $region52: #{tpu_custom_call.1} parent=1 // pred_region
      %118 = dma.done [#allocation9], 512
    $region53: #{tpu_custom_call.1} parent=1 // pred_fallthru
      _
    // Predicated region
    $region54: #{tpu_custom_call.1} parent=1 // pred_check
      _
    $region55: #{tpu_custom_call.1} parent=1 // pred_check_branch
      %120 = sbr.rel (0) target = $region57
    $region56: #{tpu_custom_call.1} parent=1 // pred_region
      %122 = dma.done [#allocation9], 512
    $region57: #{tpu_custom_call.1} parent=1 // pred_fallthru
      _
    // Predicated region
    $region58: #{tpu_custom_call.1} parent=1 // pred_check
      _
    $region59: #{tpu_custom_call.1} parent=1 // pred_check_branch
      %124 = sbr.rel (0) target = $region61
    $region60: #{tpu_custom_call.1} parent=1 // pred_region
      %126 = dma.done [#allocation12], 512
    $region61: #{tpu_custom_call.1} parent=1 // pred_fallthru
      _
    %v127 = vld [vmem:[#allocation5] sm:$0xff]
    %v128 = vld [vmem:[#allocation5 + $0x8] sm:$0xff]
    %v129 = vld [vmem:[#allocation5 + $0x10] sm:$0xff]
    %v130 = vld [vmem:[#allocation5 + $0x18] sm:$0xff]
    %v131 = vld [vmem:[%s2] sm:$0x1]
    %v133 = vperm.slane %v131, 0
    %v135 = vld [vmem:[#allocation7] sm:$0xff]
    %v136 = vld [vmem:[#allocation7 + $0x8] sm:$0xff]
    %v137 = vld [vmem:[#allocation7 + $0x10] sm:$0xff]
    %v138 = vld [vmem:[#allocation7 + $0x18] sm:$0xff]
    %v139 = vld [vmem:[#allocation8] sm:$0xff]
    %v140 = vld [vmem:[#allocation8 + $0x8] sm:$0xff]
    %v141 = vld [vmem:[#allocation8 + $0x10] sm:$0xff]
    %v142 = vld [vmem:[#allocation8 + $0x18] sm:$0xff]
    %v143 = vld [vmem:[#allocation10] sm:$0xff]
    %v144 = vld [vmem:[#allocation10 + $0x8] sm:$0xff]
    %v145 = vld [vmem:[#allocation10 + $0x10] sm:$0xff]
    %v146 = vld [vmem:[#allocation10 + $0x18] sm:$0xff]
    %v147 = vld [vmem:[%s6] sm:$0x1]
    %v149 = vperm.slane %v147, 0
    %v151 = vld [vmem:[#allocation11] sm:$0xff]
    %v152 = vld [vmem:[#allocation11 + $0x8] sm:$0xff]
    %v153 = vld [vmem:[#allocation11 + $0x10] sm:$0xff]
    %v154 = vld [vmem:[#allocation11 + $0x18] sm:$0xff]
    %v155 = vld [vmem:[%s8] sm:$0x1]
    %v157 = vperm.slane %v155, 0
    %v159 = vld [vmem:[#allocation2] sm:$0xff]
    %v160 = vld [vmem:[#allocation2 + $0x8] sm:$0xff]
    %v161 = vld [vmem:[#allocation2 + $0x10] sm:$0xff]
    %v162 = vld [vmem:[#allocation2 + $0x18] sm:$0xff]
    %vm163 = vcmask 261120
    %v165 = vsel %vm163, %v159, 0
    %v168 = vsel %vm163, %v160, 0
    %v171 = vsel %vm163, %v161, 0
    %v174 = vsel %vm163, %v162, 0
    %176 = vmatpush.msra.mxu0 0.0
    %177 = vmatpush.msra.mxu0 0.0
    %178 = vmatpush.msra.mxu0 0.0
    %179 = vmatpush.msra.mxu0 0.0
    %180 = vmatpush.msra.mxu0 0.0
    %181 = vmatpush.msra.mxu0 0.0
    %182 = vmatpush.msra.mxu0 0.0
    %183 = vmatpush.msra.mxu0 0.0
    %184 = vmatpush.msra.mxu0 0.0
    %185 = vmatpush.msra.mxu0 0.0
    %186 = vmatpush.msra.mxu0 0.0
    %187 = vmatpush.msra.mxu0 0.0
    %188 = vmatpush.msra.mxu0 %v130
    %189 = vmatpush.msra.mxu0 %v129
    %190 = vmatpush.msra.mxu0 %v128
    %191 = vmatpush.msra.mxu0 %v127
    %192 = vmatmul.f32.gmra.mxu0 %v165
    %v193 = vpop.f32.mrf.mxu0
    %v194 = vadd.f32 %v133, %v193
    %195 = vmatmul.f32.gmra.mxu0 %v168
    %v196 = vpop.f32.mrf.mxu0
    %v197 = vadd.f32 %v133, %v196
    %198 = vmatmul.f32.gmra.mxu0 %v171
    %v199 = vpop.f32.mrf.mxu0
    %v200 = vadd.f32 %v133, %v199
    %201 = vmatmul.f32.gmra.mxu0 %v174
    %v202 = vpop.f32.mrf.mxu0
    %v203 = vadd.f32 %v133, %v202
    %204 = vdwg.mxu0
    %v205 = vmax.f32 %v194, 0.0
    %v206 = vmax.f32 %v197, 0.0
    %v207 = vmax.f32 %v200, 0.0
    %v208 = vmax.f32 %v203, 0.0
    %v210 = vsel %vm163, %v205, 0
    %v213 = vsel %vm163, %v206, 0
    %v216 = vsel %vm163, %v207, 0
    %v219 = vsel %vm163, %v208, 0
    %221 = vmatpush.msra.mxu0 0.0
    %222 = vmatpush.msra.mxu0 0.0
    %223 = vmatpush.msra.mxu0 0.0
    %224 = vmatpush.msra.mxu0 0.0
    %225 = vmatpush.msra.mxu0 0.0
    %226 = vmatpush.msra.mxu0 0.0
    %227 = vmatpush.msra.mxu0 0.0
    %228 = vmatpush.msra.mxu0 0.0
    %229 = vmatpush.msra.mxu0 0.0
    %230 = vmatpush.msra.mxu0 0.0
    %231 = vmatpush.msra.mxu0 0.0
    %232 = vmatpush.msra.mxu0 0.0
    %233 = vmatpush.msra.mxu0 %v142
    %234 = vmatpush.msra.mxu0 %v141
    %235 = vmatpush.msra.mxu0 %v140
    %236 = vmatpush.msra.mxu0 %v139
    %237 = vmatmul.f32.gmra.mxu0 %v210
    %v238 = vpop.f32.mrf.mxu0
    %v239 = vadd.f32 0.0, %v238
    %240 = vmatmul.f32.gmra.mxu0 %v213
    %v241 = vpop.f32.mrf.mxu0
    %v242 = vadd.f32 0.0, %v241
    %243 = vmatmul.f32.gmra.mxu0 %v216
    %v244 = vpop.f32.mrf.mxu0
    %v245 = vadd.f32 0.0, %v244
    %246 = vmatmul.f32.gmra.mxu0 %v219
    %v247 = vpop.f32.mrf.mxu0
    %v248 = vadd.f32 0.0, %v247
    %249 = vdwg.mxu0
    %250 = vmatpush.msra.mxu0 0.0
    %251 = vmatpush.msra.mxu0 0.0
    %252 = vmatpush.msra.mxu0 0.0
    %253 = vmatpush.msra.mxu0 0.0
    %254 = vmatpush.msra.mxu0 0.0
    %255 = vmatpush.msra.mxu0 0.0
    %256 = vmatpush.msra.mxu0 0.0
    %257 = vmatpush.msra.mxu0 0.0
    %258 = vmatpush.msra.mxu0 0.0
    %259 = vmatpush.msra.mxu0 0.0
    %260 = vmatpush.msra.mxu0 0.0
    %261 = vmatpush.msra.mxu0 0.0
    %262 = vmatpush.msra.mxu0 %v138
    %263 = vmatpush.msra.mxu0 %v137
    %264 = vmatpush.msra.mxu0 %v136
    %265 = vmatpush.msra.mxu0 %v135
    %266 = vmatmul.f32.gmra.mxu0 %v165
    %v267 = vpop.f32.mrf.mxu0
    %v268 = vadd.f32 %v239, %v267
    %269 = vmatmul.f32.gmra.mxu0 %v168
    %v270 = vpop.f32.mrf.mxu0
    %v271 = vadd.f32 %v242, %v270
    %272 = vmatmul.f32.gmra.mxu0 %v171
    %v273 = vpop.f32.mrf.mxu0
    %v274 = vadd.f32 %v245, %v273
    %275 = vmatmul.f32.gmra.mxu0 %v174
    %v276 = vpop.f32.mrf.mxu0
    %v277 = vadd.f32 %v248, %v276
    %278 = vdwg.mxu0
    %v280 = vsel %vm163, 0.0, 0
    %282 = vmatpush.msra.mxu0 0.0
    %283 = vmatpush.msra.mxu0 0.0
    %284 = vmatpush.msra.mxu0 0.0
    %285 = vmatpush.msra.mxu0 0.0
    %286 = vmatpush.msra.mxu0 0.0
    %287 = vmatpush.msra.mxu0 0.0
    %288 = vmatpush.msra.mxu0 0.0
    %289 = vmatpush.msra.mxu0 0.0
    %290 = vmatpush.msra.mxu0 0.0
    %291 = vmatpush.msra.mxu0 0.0
    %292 = vmatpush.msra.mxu0 0.0
    %293 = vmatpush.msra.mxu0 0.0
    %294 = vmatpush.msra.mxu0 %v146
    %295 = vmatpush.msra.mxu0 %v145
    %296 = vmatpush.msra.mxu0 %v144
    %297 = vmatpush.msra.mxu0 %v143
    %298 = vmatmul.f32.gmra.mxu0 %v280
    %v299 = vpop.f32.mrf.mxu0
    %v300 = vadd.f32 0.0, %v299
    %301 = vmatmul.f32.gmra.mxu0 %v280
    %v302 = vpop.f32.mrf.mxu0
    %v303 = vadd.f32 0.0, %v302
    %304 = vmatmul.f32.gmra.mxu0 %v280
    %v305 = vpop.f32.mrf.mxu0
    %v306 = vadd.f32 0.0, %v305
    %307 = vmatmul.f32.gmra.mxu0 %v280
    %v308 = vpop.f32.mrf.mxu0
    %v309 = vadd.f32 0.0, %v308
    %310 = vdwg.mxu0
    %v311 = vadd.f32 %v268, %v300
    %v312 = vadd.f32 %v271, %v303
    %v313 = vadd.f32 %v274, %v306
    %v314 = vadd.f32 %v277, %v309
    %v315 = vadd.f32 %v311, %v149
    %v316 = vadd.f32 %v312, %v149
    %v317 = vadd.f32 %v313, %v149
    %v318 = vadd.f32 %v314, %v149
    %v319 = vxor.u32 %v315, 2147483648
    %v320 = vxor.u32 %v316, 2147483648
    %v321 = vxor.u32 %v317, 2147483648
    %v322 = vxor.u32 %v318, 2147483648
    %v323 = vmul.f32 %v319, 1.442695
    %v324 = vpow.pop %v323
    %v325 = vmul.f32 %v320, 1.442695
    %v326 = vpow.pop %v325
    %v327 = vmul.f32 %v321, 1.442695
    %v328 = vpow.pop %v327
    %v329 = vmul.f32 %v322, 1.442695
    %v330 = vpow.pop %v329
    %v331 = vadd.f32 %v324, 1.0
    %v332 = vadd.f32 %v326, 1.0
    %v333 = vadd.f32 %v328, 1.0
    %v334 = vadd.f32 %v330, 1.0
    %v335 = vrcp.pop %v331
    %v336 = vmul.f32 %v331, %v335
    %v337 = vsub.f32 1.0, %v336
    %v338 = vmul.f32 %v335, %v337
    %v339 = vadd.f32 %v335, %v338
    %vm340 = vweird.f32 %v331
    %vm341 = vweird.f32 %v335
    %vm342 = vmor %vm340, %vm341
    %v343 = vsel %vm342, %v335, %v339
    %v344 = vand.u32 2147483647, %v331
    %vm345 = vcmp.eq.f32.partialorder %v344, 8.507059e+37
    %v346 = vand.u32 %v331, 2147483648
    %v347 = vor.u32 1.1754944e-38, %v346
    %v348 = vsel %vm345, %v347, %v343
    %v349 = vmul.f32 1.0, %v348
    %v350 = vrcp.pop %v332
    %v351 = vmul.f32 %v332, %v350
    %v352 = vsub.f32 1.0, %v351
    %v353 = vmul.f32 %v350, %v352
    %v354 = vadd.f32 %v350, %v353
    %vm355 = vweird.f32 %v332
    %vm356 = vweird.f32 %v350
    %vm357 = vmor %vm355, %vm356
    %v358 = vsel %vm357, %v350, %v354
    %v359 = vand.u32 2147483647, %v332
    %vm360 = vcmp.eq.f32.partialorder %v359, 8.507059e+37
    %v361 = vand.u32 %v332, 2147483648
    %v362 = vor.u32 1.1754944e-38, %v361
    %v363 = vsel %vm360, %v362, %v358
    %v364 = vmul.f32 1.0, %v363
    %v365 = vrcp.pop %v333
    %v366 = vmul.f32 %v333, %v365
    %v367 = vsub.f32 1.0, %v366
    %v368 = vmul.f32 %v365, %v367
    %v369 = vadd.f32 %v365, %v368
    %vm370 = vweird.f32 %v333
    %vm371 = vweird.f32 %v365
    %vm372 = vmor %vm370, %vm371
    %v373 = vsel %vm372, %v365, %v369
    %v374 = vand.u32 2147483647, %v333
    %vm375 = vcmp.eq.f32.partialorder %v374, 8.507059e+37
    %v376 = vand.u32 %v333, 2147483648
    %v377 = vor.u32 1.1754944e-38, %v376
    %v378 = vsel %vm375, %v377, %v373
    %v379 = vmul.f32 1.0, %v378
    %v380 = vrcp.pop %v334
    %v381 = vmul.f32 %v334, %v380
    %v382 = vsub.f32 1.0, %v381
    %v383 = vmul.f32 %v380, %v382
    %v384 = vadd.f32 %v380, %v383
    %vm385 = vweird.f32 %v334
    %vm386 = vweird.f32 %v380
    %vm387 = vmor %vm385, %vm386
    %v388 = vsel %vm387, %v380, %v384
    %v389 = vand.u32 2147483647, %v334
    %vm390 = vcmp.eq.f32.partialorder %v389, 8.507059e+37
    %v391 = vand.u32 %v334, 2147483648
    %v392 = vor.u32 1.1754944e-38, %v391
    %v393 = vsel %vm390, %v392, %v388
    %v394 = vmul.f32 1.0, %v393
    %v395 = vtanh.pop %v315
    %v396 = vtanh.pop %v316
    %v397 = vtanh.pop %v317
    %v398 = vtanh.pop %v318
    %v399 = vmul.f32 %v349, 0.0
    %v400 = vmul.f32 %v364, 0.0
    %v401 = vmul.f32 %v379, 0.0
    %v402 = vmul.f32 %v394, 0.0
    %407 = vrot.lane.b32.xlu0 %v395, 32
    %v408 = vpop.permute.xlu0 %407
    %409 = vrot.lane.b32.xlu0 %v396, 32
    %v410 = vpop.permute.xlu0 %409
    %411 = vrot.lane.b32.xlu0 %v397, 32
    %v412 = vpop.permute.xlu0 %411
    %413 = vrot.lane.b32.xlu0 %v398, 32
    %v414 = vpop.permute.xlu0 %413
    %v419 = vmul.f32 %v349, %v408
    %v420 = vmul.f32 %v364, %v410
    %v421 = vmul.f32 %v379, %v412
    %v422 = vmul.f32 %v394, %v414
    %427 = vrot.lane.b32.xlu0 %v419, 32
    %v428 = vpop.permute.xlu0 %427
    %429 = vrot.lane.b32.xlu0 %v420, 32
    %v430 = vpop.permute.xlu0 %429
    %431 = vrot.lane.b32.xlu0 %v421, 32
    %v432 = vpop.permute.xlu0 %431
    %433 = vrot.lane.b32.xlu0 %v422, 32
    %v434 = vpop.permute.xlu0 %433
    %v439 = vadd.f32 %v399, %v428
    %v440 = vadd.f32 %v400, %v430
    %v441 = vadd.f32 %v401, %v432
    %v442 = vadd.f32 %v402, %v434
    %v443 = vtanh.pop %v439
    %v444 = vtanh.pop %v440
    %v445 = vtanh.pop %v441
    %v446 = vtanh.pop %v442
    %451 = vrot.lane.b32.xlu0 %v443, 32
    %v452 = vpop.permute.xlu0 %451
    %453 = vrot.lane.b32.xlu0 %v444, 32
    %v454 = vpop.permute.xlu0 %453
    %455 = vrot.lane.b32.xlu0 %v445, 32
    %v456 = vpop.permute.xlu0 %455
    %457 = vrot.lane.b32.xlu0 %v446, 32
    %v458 = vpop.permute.xlu0 %457
    %v463 = vmul.f32 %v349, %v452
    %v464 = vmul.f32 %v364, %v454
    %v465 = vmul.f32 %v379, %v456
    %v466 = vmul.f32 %v394, %v458
    %471 = vrot.lane.b32.xlu0 %v463, 64
    %v472 = vpop.permute.xlu0 %471
    %473 = vrot.lane.b32.xlu0 %v464, 64
    %v474 = vpop.permute.xlu0 %473
    %475 = vrot.lane.b32.xlu0 %v465, 64
    %v476 = vpop.permute.xlu0 %475
    %477 = vrot.lane.b32.xlu0 %v466, 64
    %v478 = vpop.permute.xlu0 %477
    %483 = vst.msk [vmem:[#allocation13] sm:$0xff] %vm163, %v472
    %484 = vst.msk [vmem:[#allocation13 + $0x8] sm:$0xff] %vm163, %v474
    %485 = vst.msk [vmem:[#allocation13 + $0x10] sm:$0xff] %vm163, %v476
    %486 = vst.msk [vmem:[#allocation13 + $0x18] sm:$0xff] %vm163, %v478
    %v487 = vsel %vm163, %v472, 0
    %v489 = vsel %vm163, %v474, 0
    %v491 = vsel %vm163, %v476, 0
    %v493 = vsel %vm163, %v478, 0
    %495 = vmatpush.msra.mxu0 0.0
    %496 = vmatpush.msra.mxu0 0.0
    %497 = vmatpush.msra.mxu0 0.0
    %498 = vmatpush.msra.mxu0 0.0
    %499 = vmatpush.msra.mxu0 0.0
    %500 = vmatpush.msra.mxu0 0.0
    %501 = vmatpush.msra.mxu0 0.0
    %502 = vmatpush.msra.mxu0 0.0
    %503 = vmatpush.msra.mxu0 0.0
    %504 = vmatpush.msra.mxu0 0.0
    %505 = vmatpush.msra.mxu0 0.0
    %506 = vmatpush.msra.mxu0 0.0
    %507 = vmatpush.msra.mxu0 %v154
    %508 = vmatpush.msra.mxu0 %v153
    %509 = vmatpush.msra.mxu0 %v152
    %510 = vmatpush.msra.mxu0 %v151
    %511 = vmatmul.f32.gmra.mxu0 %v487
    %v512 = vpop.f32.mrf.mxu0
    %v513 = vadd.f32 %v157, %v512
    %514 = vmatmul.f32.gmra.mxu0 %v489
    %v515 = vpop.f32.mrf.mxu0
    %v516 = vadd.f32 %v157, %v515
    %517 = vmatmul.f32.gmra.mxu0 %v491
    %v518 = vpop.f32.mrf.mxu0
    %v519 = vadd.f32 %v157, %v518
    %520 = vmatmul.f32.gmra.mxu0 %v493
    %v521 = vpop.f32.mrf.mxu0
    %v522 = vadd.f32 %v157, %v521
    %523 = vdwg.mxu0
    %v524 = vmax.f32 %v513, 0.0
    %v525 = vmax.f32 %v516, 0.0
    %v526 = vmax.f32 %v519, 0.0
    %v527 = vmax.f32 %v522, 0.0
    %v529 = vsel %vm163, %v524, 0
    %v532 = vsel %vm163, %v525, 0
    %v535 = vsel %vm163, %v526, 0
    %v538 = vsel %vm163, %v527, 0
    %540 = vmatpush.msra.mxu0 0.0
    %541 = vmatpush.msra.mxu0 0.0
    %542 = vmatpush.msra.mxu0 0.0
    %543 = vmatpush.msra.mxu0 0.0
    %544 = vmatpush.msra.mxu0 0.0
    %545 = vmatpush.msra.mxu0 0.0
    %546 = vmatpush.msra.mxu0 0.0
    %547 = vmatpush.msra.mxu0 0.0
    %548 = vmatpush.msra.mxu0 0.0
    %549 = vmatpush.msra.mxu0 0.0
    %550 = vmatpush.msra.mxu0 0.0
    %551 = vmatpush.msra.mxu0 0.0
    %552 = vmatpush.msra.mxu0 %v130
    %553 = vmatpush.msra.mxu0 %v129
    %554 = vmatpush.msra.mxu0 %v128
    %555 = vmatpush.msra.mxu0 %v127
    %556 = vmatmul.f32.gmra.mxu0 %v529
    %v557 = vpop.f32.mrf.mxu0
    %v558 = vadd.f32 %v133, %v557
    %559 = vmatmul.f32.gmra.mxu0 %v532
    %v560 = vpop.f32.mrf.mxu0
    %v561 = vadd.f32 %v133, %v560
    %562 = vmatmul.f32.gmra.mxu0 %v535
    %v563 = vpop.f32.mrf.mxu0
    %v564 = vadd.f32 %v133, %v563
    %565 = vmatmul.f32.gmra.mxu0 %v538
    %v566 = vpop.f32.mrf.mxu0
    %v567 = vadd.f32 %v133, %v566
    %568 = vdwg.mxu0
    %v569 = vmax.f32 %v558, 0.0
    %v570 = vmax.f32 %v561, 0.0
    %v571 = vmax.f32 %v564, 0.0
    %v572 = vmax.f32 %v567, 0.0
    %v574 = vsel %vm163, %v569, 0
    %v577 = vsel %vm163, %v570, 0
    %v580 = vsel %vm163, %v571, 0
    %v583 = vsel %vm163, %v572, 0
    %585 = vmatpush.msra.mxu0 0.0
    %586 = vmatpush.msra.mxu0 0.0
    %587 = vmatpush.msra.mxu0 0.0
    %588 = vmatpush.msra.mxu0 0.0
    %589 = vmatpush.msra.mxu0 0.0
    %590 = vmatpush.msra.mxu0 0.0
    %591 = vmatpush.msra.mxu0 0.0
    %592 = vmatpush.msra.mxu0 0.0
    %593 = vmatpush.msra.mxu0 0.0
    %594 = vmatpush.msra.mxu0 0.0
    %595 = vmatpush.msra.mxu0 0.0
    %596 = vmatpush.msra.mxu0 0.0
    %597 = vmatpush.msra.mxu0 %v142
    %598 = vmatpush.msra.mxu0 %v141
    %599 = vmatpush.msra.mxu0 %v140
    %600 = vmatpush.msra.mxu0 %v139
    %601 = vmatmul.f32.gmra.mxu0 %v574
    %v602 = vpop.f32.mrf.mxu0
    %v603 = vadd.f32 0.0, %v602
    %604 = vmatmul.f32.gmra.mxu0 %v577
    %v605 = vpop.f32.mrf.mxu0
    %v606 = vadd.f32 0.0, %v605
    %607 = vmatmul.f32.gmra.mxu0 %v580
    %v608 = vpop.f32.mrf.mxu0
    %v609 = vadd.f32 0.0, %v608
    %610 = vmatmul.f32.gmra.mxu0 %v583
    %v611 = vpop.f32.mrf.mxu0
    %v612 = vadd.f32 0.0, %v611
    %613 = vdwg.mxu0
    %614 = vmatpush.msra.mxu0 0.0
    %615 = vmatpush.msra.mxu0 0.0
    %616 = vmatpush.msra.mxu0 0.0
    %617 = vmatpush.msra.mxu0 0.0
    %618 = vmatpush.msra.mxu0 0.0
    %619 = vmatpush.msra.mxu0 0.0
    %620 = vmatpush.msra.mxu0 0.0
    %621 = vmatpush.msra.mxu0 0.0
    %622 = vmatpush.msra.mxu0 0.0
    %623 = vmatpush.msra.mxu0 0.0
    %624 = vmatpush.msra.mxu0 0.0
    %625 = vmatpush.msra.mxu0 0.0
    %626 = vmatpush.msra.mxu0 %v138
    %627 = vmatpush.msra.mxu0 %v137
    %628 = vmatpush.msra.mxu0 %v136
    %629 = vmatpush.msra.mxu0 %v135
    %630 = vmatmul.f32.gmra.mxu0 %v529
    %v631 = vpop.f32.mrf.mxu0
    %v632 = vadd.f32 %v603, %v631
    %633 = vmatmul.f32.gmra.mxu0 %v532
    %v634 = vpop.f32.mrf.mxu0
    %v635 = vadd.f32 %v606, %v634
    %636 = vmatmul.f32.gmra.mxu0 %v535
    %v637 = vpop.f32.mrf.mxu0
    %v638 = vadd.f32 %v609, %v637
    %639 = vmatmul.f32.gmra.mxu0 %v538
    %v640 = vpop.f32.mrf.mxu0
    %v641 = vadd.f32 %v612, %v640
    %642 = vdwg.mxu0
    %643 = vmatpush.msra.mxu0 0.0
    %644 = vmatpush.msra.mxu0 0.0
    %645 = vmatpush.msra.mxu0 0.0
    %646 = vmatpush.msra.mxu0 0.0
    %647 = vmatpush.msra.mxu0 0.0
    %648 = vmatpush.msra.mxu0 0.0
    %649 = vmatpush.msra.mxu0 0.0
    %650 = vmatpush.msra.mxu0 0.0
    %651 = vmatpush.msra.mxu0 0.0
    %652 = vmatpush.msra.mxu0 0.0
    %653 = vmatpush.msra.mxu0 0.0
    %654 = vmatpush.msra.mxu0 0.0
    %655 = vmatpush.msra.mxu0 %v146
    %656 = vmatpush.msra.mxu0 %v145
    %657 = vmatpush.msra.mxu0 %v144
    %658 = vmatpush.msra.mxu0 %v143
    %659 = vmatmul.f32.gmra.mxu0 %v487
    %v660 = vpop.f32.mrf.mxu0
    %v661 = vadd.f32 0.0, %v660
    %662 = vmatmul.f32.gmra.mxu0 %v489
    %v663 = vpop.f32.mrf.mxu0
    %v664 = vadd.f32 0.0, %v663
    %665 = vmatmul.f32.gmra.mxu0 %v491
    %v666 = vpop.f32.mrf.mxu0
    %v667 = vadd.f32 0.0, %v666
    %668 = vmatmul.f32.gmra.mxu0 %v493
    %v669 = vpop.f32.mrf.mxu0
    %v670 = vadd.f32 0.0, %v669
    %671 = vdwg.mxu0
    %v672 = vadd.f32 %v632, %v661
    %v673 = vadd.f32 %v635, %v664
    %v674 = vadd.f32 %v638, %v667
    %v675 = vadd.f32 %v641, %v670
    %v676 = vadd.f32 %v672, %v149
    %v677 = vadd.f32 %v673, %v149
    %v678 = vadd.f32 %v674, %v149
    %v679 = vadd.f32 %v675, %v149
    %v680 = vxor.u32 %v676, 2147483648
    %v681 = vxor.u32 %v677, 2147483648
    %v682 = vxor.u32 %v678, 2147483648
    %v683 = vxor.u32 %v679, 2147483648
    %v684 = vmul.f32 %v680, 1.442695
    %v685 = vpow.pop %v684
    %v686 = vmul.f32 %v681, 1.442695
    %v687 = vpow.pop %v686
    %v688 = vmul.f32 %v682, 1.442695
    %v689 = vpow.pop %v688
    %v690 = vmul.f32 %v683, 1.442695
    %v691 = vpow.pop %v690
    %v692 = vadd.f32 %v685, 1.0
    %v693 = vadd.f32 %v687, 1.0
    %v694 = vadd.f32 %v689, 1.0
    %v695 = vadd.f32 %v691, 1.0
    %v696 = vrcp.pop %v692
    %v697 = vmul.f32 %v692, %v696
    %v698 = vsub.f32 1.0, %v697
    %v699 = vmul.f32 %v696, %v698
    %v700 = vadd.f32 %v696, %v699
    %vm701 = vweird.f32 %v692
    %vm702 = vweird.f32 %v696
    %vm703 = vmor %vm701, %vm702
    %v704 = vsel %vm703, %v696, %v700
    %v705 = vand.u32 2147483647, %v692
    %vm706 = vcmp.eq.f32.partialorder %v705, 8.507059e+37
    %v707 = vand.u32 %v692, 2147483648
    %v708 = vor.u32 1.1754944e-38, %v707
    %v709 = vsel %vm706, %v708, %v704
    %v710 = vmul.f32 1.0, %v709
    %v711 = vrcp.pop %v693
    %v712 = vmul.f32 %v693, %v711
    %v713 = vsub.f32 1.0, %v712
    %v714 = vmul.f32 %v711, %v713
    %v715 = vadd.f32 %v711, %v714
    %vm716 = vweird.f32 %v693
    %vm717 = vweird.f32 %v711
    %vm718 = vmor %vm716, %vm717
    %v719 = vsel %vm718, %v711, %v715
    %v720 = vand.u32 2147483647, %v693
    %vm721 = vcmp.eq.f32.partialorder %v720, 8.507059e+37
    %v722 = vand.u32 %v693, 2147483648
    %v723 = vor.u32 1.1754944e-38, %v722
    %v724 = vsel %vm721, %v723, %v719
    %v725 = vmul.f32 1.0, %v724
    %v726 = vrcp.pop %v694
    %v727 = vmul.f32 %v694, %v726
    %v728 = vsub.f32 1.0, %v727
    %v729 = vmul.f32 %v726, %v728
    %v730 = vadd.f32 %v726, %v729
    %vm731 = vweird.f32 %v694
    %vm732 = vweird.f32 %v726
    %vm733 = vmor %vm731, %vm732
    %v734 = vsel %vm733, %v726, %v730
    %v735 = vand.u32 2147483647, %v694
    %vm736 = vcmp.eq.f32.partialorder %v735, 8.507059e+37
    %v737 = vand.u32 %v694, 2147483648
    %v738 = vor.u32 1.1754944e-38, %v737
    %v739 = vsel %vm736, %v738, %v734
    %v740 = vmul.f32 1.0, %v739
    %v741 = vrcp.pop %v695
    %v742 = vmul.f32 %v695, %v741
    %v743 = vsub.f32 1.0, %v742
    %v744 = vmul.f32 %v741, %v743
    %v745 = vadd.f32 %v741, %v744
    %vm746 = vweird.f32 %v695
    %vm747 = vweird.f32 %v741
    %vm748 = vmor %vm746, %vm747
    %v749 = vsel %vm748, %v741, %v745
    %v750 = vand.u32 2147483647, %v695
    %vm751 = vcmp.eq.f32.partialorder %v750, 8.507059e+37
    %v752 = vand.u32 %v695, 2147483648
    %v753 = vor.u32 1.1754944e-38, %v752
    %v754 = vsel %vm751, %v753, %v749
    %v755 = vmul.f32 1.0, %v754
    %v756 = vtanh.pop %v676
    %v757 = vtanh.pop %v677
    %v758 = vtanh.pop %v678
    %v759 = vtanh.pop %v679
    %v760 = vmul.f32 %v439, %v710
    %v761 = vmul.f32 %v440, %v725
    %v762 = vmul.f32 %v441, %v740
    %v763 = vmul.f32 %v442, %v755
    %768 = vrot.lane.b32.xlu0 %v756, 32
    %v769 = vpop.permute.xlu0 %768
    %770 = vrot.lane.b32.xlu0 %v757, 32
    %v771 = vpop.permute.xlu0 %770
    %772 = vrot.lane.b32.xlu0 %v758, 32
    %v773 = vpop.permute.xlu0 %772
    %774 = vrot.lane.b32.xlu0 %v759, 32
    %v775 = vpop.permute.xlu0 %774
    %v780 = vmul.f32 %v710, %v769
    %v781 = vmul.f32 %v725, %v771
    %v782 = vmul.f32 %v740, %v773
    %v783 = vmul.f32 %v755, %v775
    %788 = vrot.lane.b32.xlu0 %v780, 32
    %v789 = vpop.permute.xlu0 %788
    %790 = vrot.lane.b32.xlu0 %v781, 32
    %v791 = vpop.permute.xlu0 %790
    %792 = vrot.lane.b32.xlu0 %v782, 32
    %v793 = vpop.permute.xlu0 %792
    %794 = vrot.lane.b32.xlu0 %v783, 32
    %v795 = vpop.permute.xlu0 %794
    %v800 = vadd.f32 %v760, %v789
    %v801 = vadd.f32 %v761, %v791
    %v802 = vadd.f32 %v762, %v793
    %v803 = vadd.f32 %v763, %v795
    %v804 = vtanh.pop %v800
    %v805 = vtanh.pop %v801
    %v806 = vtanh.pop %v802
    %v807 = vtanh.pop %v803
    %812 = vrot.lane.b32.xlu0 %v804, 32
    %v813 = vpop.permute.xlu0 %812
    %814 = vrot.lane.b32.xlu0 %v805, 32
    %v815 = vpop.permute.xlu0 %814
    %816 = vrot.lane.b32.xlu0 %v806, 32
    %v817 = vpop.permute.xlu0 %816
    %818 = vrot.lane.b32.xlu0 %v807, 32
    %v819 = vpop.permute.xlu0 %818
    %v824 = vmul.f32 %v710, %v813
    %v825 = vmul.f32 %v725, %v815
    %v826 = vmul.f32 %v740, %v817
    %v827 = vmul.f32 %v755, %v819
    %832 = vrot.lane.b32.xlu0 %v824, 64
    %v833 = vpop.permute.xlu0 %832
    %834 = vrot.lane.b32.xlu0 %v825, 64
    %v835 = vpop.permute.xlu0 %834
    %836 = vrot.lane.b32.xlu0 %v826, 64
    %v837 = vpop.permute.xlu0 %836
    %838 = vrot.lane.b32.xlu0 %v827, 64
    %v839 = vpop.permute.xlu0 %838
    %s844 = scalar_lea.vmem [#allocation13], 32
    %845 = vst.msk [vmem:[%s844] sm:$0xff] %vm163, %v833
    %846 = vst.msk [vmem:[%s844 + $0x8] sm:$0xff] %vm163, %v835
    %847 = vst.msk [vmem:[%s844 + $0x10] sm:$0xff] %vm163, %v837
    %848 = vst.msk [vmem:[%s844 + $0x18] sm:$0xff] %vm163, %v839
    %v849 = vsel %vm163, %v833, 0
    %v851 = vsel %vm163, %v835, 0
    %v853 = vsel %vm163, %v837, 0
    %v855 = vsel %vm163, %v839, 0
    %857 = vmatpush.msra.mxu0 0.0
    %858 = vmatpush.msra.mxu0 0.0
    %859 = vmatpush.msra.mxu0 0.0
    %860 = vmatpush.msra.mxu0 0.0
    %861 = vmatpush.msra.mxu0 0.0
    %862 = vmatpush.msra.mxu0 0.0
    %863 = vmatpush.msra.mxu0 0.0
    %864 = vmatpush.msra.mxu0 0.0
    %865 = vmatpush.msra.mxu0 0.0
    %866 = vmatpush.msra.mxu0 0.0
    %867 = vmatpush.msra.mxu0 0.0
    %868 = vmatpush.msra.mxu0 0.0
    %869 = vmatpush.msra.mxu0 %v154
    %870 = vmatpush.msra.mxu0 %v153
    %871 = vmatpush.msra.mxu0 %v152
    %872 = vmatpush.msra.mxu0 %v151
    %873 = vmatmul.f32.gmra.mxu0 %v849
    %v874 = vpop.f32.mrf.mxu0
    %v875 = vadd.f32 %v157, %v874
    %876 = vmatmul.f32.gmra.mxu0 %v851
    %v877 = vpop.f32.mrf.mxu0
    %v878 = vadd.f32 %v157, %v877
    %879 = vmatmul.f32.gmra.mxu0 %v853
    %v880 = vpop.f32.mrf.mxu0
    %v881 = vadd.f32 %v157, %v880
    %882 = vmatmul.f32.gmra.mxu0 %v855
    %v883 = vpop.f32.mrf.mxu0
    %v884 = vadd.f32 %v157, %v883
    %885 = vdwg.mxu0
    %v886 = vmax.f32 %v875, 0.0
    %v887 = vmax.f32 %v878, 0.0
    %v888 = vmax.f32 %v881, 0.0
    %v889 = vmax.f32 %v884, 0.0
    %v891 = vsel %vm163, %v886, 0
    %v894 = vsel %vm163, %v887, 0
    %v897 = vsel %vm163, %v888, 0
    %v900 = vsel %vm163, %v889, 0
    %902 = vmatpush.msra.mxu0 0.0
    %903 = vmatpush.msra.mxu0 0.0
    %904 = vmatpush.msra.mxu0 0.0
    %905 = vmatpush.msra.mxu0 0.0
    %906 = vmatpush.msra.mxu0 0.0
    %907 = vmatpush.msra.mxu0 0.0
    %908 = vmatpush.msra.mxu0 0.0
    %909 = vmatpush.msra.mxu0 0.0
    %910 = vmatpush.msra.mxu0 0.0
    %911 = vmatpush.msra.mxu0 0.0
    %912 = vmatpush.msra.mxu0 0.0
    %913 = vmatpush.msra.mxu0 0.0
    %914 = vmatpush.msra.mxu0 %v130
    %915 = vmatpush.msra.mxu0 %v129
    %916 = vmatpush.msra.mxu0 %v128
    %917 = vmatpush.msra.mxu0 %v127
    %918 = vmatmul.f32.gmra.mxu0 %v891
    %v919 = vpop.f32.mrf.mxu0
    %v920 = vadd.f32 %v133, %v919
    %921 = vmatmul.f32.gmra.mxu0 %v894
    %v922 = vpop.f32.mrf.mxu0
    %v923 = vadd.f32 %v133, %v922
    %924 = vmatmul.f32.gmra.mxu0 %v897
    %v925 = vpop.f32.mrf.mxu0
    %v926 = vadd.f32 %v133, %v925
    %927 = vmatmul.f32.gmra.mxu0 %v900
    %v928 = vpop.f32.mrf.mxu0
    %v929 = vadd.f32 %v133, %v928
    %930 = vdwg.mxu0
    %v931 = vmax.f32 %v920, 0.0
    %v932 = vmax.f32 %v923, 0.0
    %v933 = vmax.f32 %v926, 0.0
    %v934 = vmax.f32 %v929, 0.0
    %v936 = vsel %vm163, %v931, 0
    %v939 = vsel %vm163, %v932, 0
    %v942 = vsel %vm163, %v933, 0
    %v945 = vsel %vm163, %v934, 0
    %947 = vmatpush.msra.mxu0 0.0
    %948 = vmatpush.msra.mxu0 0.0
    %949 = vmatpush.msra.mxu0 0.0
    %950 = vmatpush.msra.mxu0 0.0
    %951 = vmatpush.msra.mxu0 0.0
    %952 = vmatpush.msra.mxu0 0.0
    %953 = vmatpush.msra.mxu0 0.0
    %954 = vmatpush.msra.mxu0 0.0
    %955 = vmatpush.msra.mxu0 0.0
    %956 = vmatpush.msra.mxu0 0.0
    %957 = vmatpush.msra.mxu0 0.0
    %958 = vmatpush.msra.mxu0 0.0
    %959 = vmatpush.msra.mxu0 %v142
    %960 = vmatpush.msra.mxu0 %v141
    %961 = vmatpush.msra.mxu0 %v140
    %962 = vmatpush.msra.mxu0 %v139
    %963 = vmatmul.f32.gmra.mxu0 %v936
    %v964 = vpop.f32.mrf.mxu0
    %v965 = vadd.f32 0.0, %v964
    %966 = vmatmul.f32.gmra.mxu0 %v939
    %v967 = vpop.f32.mrf.mxu0
    %v968 = vadd.f32 0.0, %v967
    %969 = vmatmul.f32.gmra.mxu0 %v942
    %v970 = vpop.f32.mrf.mxu0
    %v971 = vadd.f32 0.0, %v970
    %972 = vmatmul.f32.gmra.mxu0 %v945
    %v973 = vpop.f32.mrf.mxu0
    %v974 = vadd.f32 0.0, %v973
    %975 = vdwg.mxu0
    %976 = vmatpush.msra.mxu0 0.0
    %977 = vmatpush.msra.mxu0 0.0
    %978 = vmatpush.msra.mxu0 0.0
    %979 = vmatpush.msra.mxu0 0.0
    %980 = vmatpush.msra.mxu0 0.0
    %981 = vmatpush.msra.mxu0 0.0
    %982 = vmatpush.msra.mxu0 0.0
    %983 = vmatpush.msra.mxu0 0.0
    %984 = vmatpush.msra.mxu0 0.0
    %985 = vmatpush.msra.mxu0 0.0
    %986 = vmatpush.msra.mxu0 0.0
    %987 = vmatpush.msra.mxu0 0.0
    %988 = vmatpush.msra.mxu0 %v138
    %989 = vmatpush.msra.mxu0 %v137
    %990 = vmatpush.msra.mxu0 %v136
    %991 = vmatpush.msra.mxu0 %v135
    %992 = vmatmul.f32.gmra.mxu0 %v891
    %v993 = vpop.f32.mrf.mxu0
    %v994 = vadd.f32 %v965, %v993
    %995 = vmatmul.f32.gmra.mxu0 %v894
    %v996 = vpop.f32.mrf.mxu0
    %v997 = vadd.f32 %v968, %v996
    %998 = vmatmul.f32.gmra.mxu0 %v897
    %v999 = vpop.f32.mrf.mxu0
    %v1000 = vadd.f32 %v971, %v999
    %1001 = vmatmul.f32.gmra.mxu0 %v900
    %v1002 = vpop.f32.mrf.mxu0
    %v1003 = vadd.f32 %v974, %v1002
    %1004 = vdwg.mxu0
    %1005 = vmatpush.msra.mxu0 0.0
    %1006 = vmatpush.msra.mxu0 0.0
    %1007 = vmatpush.msra.mxu0 0.0
    %1008 = vmatpush.msra.mxu0 0.0
    %1009 = vmatpush.msra.mxu0 0.0
    %1010 = vmatpush.msra.mxu0 0.0
    %1011 = vmatpush.msra.mxu0 0.0
    %1012 = vmatpush.msra.mxu0 0.0
    %1013 = vmatpush.msra.mxu0 0.0
    %1014 = vmatpush.msra.mxu0 0.0
    %1015 = vmatpush.msra.mxu0 0.0
    %1016 = vmatpush.msra.mxu0 0.0
    %1017 = vmatpush.msra.mxu0 %v146
    %1018 = vmatpush.msra.mxu0 %v145
    %1019 = vmatpush.msra.mxu0 %v144
    %1020 = vmatpush.msra.mxu0 %v143
    %1021 = vmatmul.f32.gmra.mxu0 %v849
    %v1022 = vpop.f32.mrf.mxu0
    %v1023 = vadd.f32 0.0, %v1022
    %1024 = vmatmul.f32.gmra.mxu0 %v851
    %v1025 = vpop.f32.mrf.mxu0
    %v1026 = vadd.f32 0.0, %v1025
    %1027 = vmatmul.f32.gmra.mxu0 %v853
    %v1028 = vpop.f32.mrf.mxu0
    %v1029 = vadd.f32 0.0, %v1028
    %1030 = vmatmul.f32.gmra.mxu0 %v855
    %v1031 = vpop.f32.mrf.mxu0
    %v1032 = vadd.f32 0.0, %v1031
    %1033 = vdwg.mxu0
    %v1034 = vadd.f32 %v994, %v1023
    %v1035 = vadd.f32 %v997, %v1026
    %v1036 = vadd.f32 %v1000, %v1029
    %v1037 = vadd.f32 %v1003, %v1032
    %v1038 = vadd.f32 %v1034, %v149
    %v1039 = vadd.f32 %v1035, %v149
    %v1040 = vadd.f32 %v1036, %v149
    %v1041 = vadd.f32 %v1037, %v149
    %v1042 = vxor.u32 %v1038, 2147483648
    %v1043 = vxor.u32 %v1039, 2147483648
    %v1044 = vxor.u32 %v1040, 2147483648
    %v1045 = vxor.u32 %v1041, 2147483648
    %v1046 = vmul.f32 %v1042, 1.442695
    %v1047 = vpow.pop %v1046
    %v1048 = vmul.f32 %v1043, 1.442695
    %v1049 = vpow.pop %v1048
    %v1050 = vmul.f32 %v1044, 1.442695
    %v1051 = vpow.pop %v1050
    %v1052 = vmul.f32 %v1045, 1.442695
    %v1053 = vpow.pop %v1052
    %v1054 = vadd.f32 %v1047, 1.0
    %v1055 = vadd.f32 %v1049, 1.0
    %v1056 = vadd.f32 %v1051, 1.0
    %v1057 = vadd.f32 %v1053, 1.0
    %v1058 = vrcp.pop %v1054
    %v1059 = vmul.f32 %v1054, %v1058
    %v1060 = vsub.f32 1.0, %v1059
    %v1061 = vmul.f32 %v1058, %v1060
    %v1062 = vadd.f32 %v1058, %v1061
    %vm1063 = vweird.f32 %v1054
    %vm1064 = vweird.f32 %v1058
    %vm1065 = vmor %vm1063, %vm1064
    %v1066 = vsel %vm1065, %v1058, %v1062
    %v1067 = vand.u32 2147483647, %v1054
    %vm1068 = vcmp.eq.f32.partialorder %v1067, 8.507059e+37
    %v1069 = vand.u32 %v1054, 2147483648
    %v1070 = vor.u32 1.1754944e-38, %v1069
    %v1071 = vsel %vm1068, %v1070, %v1066
    %v1072 = vmul.f32 1.0, %v1071
    %v1073 = vrcp.pop %v1055
    %v1074 = vmul.f32 %v1055, %v1073
    %v1075 = vsub.f32 1.0, %v1074
    %v1076 = vmul.f32 %v1073, %v1075
    %v1077 = vadd.f32 %v1073, %v1076
    %vm1078 = vweird.f32 %v1055
    %vm1079 = vweird.f32 %v1073
    %vm1080 = vmor %vm1078, %vm1079
    %v1081 = vsel %vm1080, %v1073, %v1077
    %v1082 = vand.u32 2147483647, %v1055
    %vm1083 = vcmp.eq.f32.partialorder %v1082, 8.507059e+37
    %v1084 = vand.u32 %v1055, 2147483648
    %v1085 = vor.u32 1.1754944e-38, %v1084
    %v1086 = vsel %vm1083, %v1085, %v1081
    %v1087 = vmul.f32 1.0, %v1086
    %v1088 = vrcp.pop %v1056
    %v1089 = vmul.f32 %v1056, %v1088
    %v1090 = vsub.f32 1.0, %v1089
    %v1091 = vmul.f32 %v1088, %v1090
    %v1092 = vadd.f32 %v1088, %v1091
    %vm1093 = vweird.f32 %v1056
    %vm1094 = vweird.f32 %v1088
    %vm1095 = vmor %vm1093, %vm1094
    %v1096 = vsel %vm1095, %v1088, %v1092
    %v1097 = vand.u32 2147483647, %v1056
    %vm1098 = vcmp.eq.f32.partialorder %v1097, 8.507059e+37
    %v1099 = vand.u32 %v1056, 2147483648
    %v1100 = vor.u32 1.1754944e-38, %v1099
    %v1101 = vsel %vm1098, %v1100, %v1096
    %v1102 = vmul.f32 1.0, %v1101
    %v1103 = vrcp.pop %v1057
    %v1104 = vmul.f32 %v1057, %v1103
    %v1105 = vsub.f32 1.0, %v1104
    %v1106 = vmul.f32 %v1103, %v1105
    %v1107 = vadd.f32 %v1103, %v1106
    %vm1108 = vweird.f32 %v1057
    %vm1109 = vweird.f32 %v1103
    %vm1110 = vmor %vm1108, %vm1109
    %v1111 = vsel %vm1110, %v1103, %v1107
    %v1112 = vand.u32 2147483647, %v1057
    %vm1113 = vcmp.eq.f32.partialorder %v1112, 8.507059e+37
    %v1114 = vand.u32 %v1057, 2147483648
    %v1115 = vor.u32 1.1754944e-38, %v1114
    %v1116 = vsel %vm1113, %v1115, %v1111
    %v1117 = vmul.f32 1.0, %v1116
    %v1118 = vtanh.pop %v1038
    %v1119 = vtanh.pop %v1039
    %v1120 = vtanh.pop %v1040
    %v1121 = vtanh.pop %v1041
    %v1122 = vmul.f32 %v800, %v1072
    %v1123 = vmul.f32 %v801, %v1087
    %v1124 = vmul.f32 %v802, %v1102
    %v1125 = vmul.f32 %v803, %v1117
    %1130 = vrot.lane.b32.xlu0 %v1118, 32
    %v1131 = vpop.permute.xlu0 %1130
    %1132 = vrot.lane.b32.xlu0 %v1119, 32
    %v1133 = vpop.permute.xlu0 %1132
    %1134 = vrot.lane.b32.xlu0 %v1120, 32
    %v1135 = vpop.permute.xlu0 %1134
    %1136 = vrot.lane.b32.xlu0 %v1121, 32
    %v1137 = vpop.permute.xlu0 %1136
    %v1142 = vmul.f32 %v1072, %v1131
    %v1143 = vmul.f32 %v1087, %v1133
    %v1144 = vmul.f32 %v1102, %v1135
    %v1145 = vmul.f32 %v1117, %v1137
    %1150 = vrot.lane.b32.xlu0 %v1142, 32
    %v1151 = vpop.permute.xlu0 %1150
    %1152 = vrot.lane.b32.xlu0 %v1143, 32
    %v1153 = vpop.permute.xlu0 %1152
    %1154 = vrot.lane.b32.xlu0 %v1144, 32
    %v1155 = vpop.permute.xlu0 %1154
    %1156 = vrot.lane.b32.xlu0 %v1145, 32
    %v1157 = vpop.permute.xlu0 %1156
    %v1162 = vadd.f32 %v1122, %v1151
    %v1163 = vadd.f32 %v1123, %v1153
    %v1164 = vadd.f32 %v1124, %v1155
    %v1165 = vadd.f32 %v1125, %v1157
    %v1166 = vtanh.pop %v1162
    %v1167 = vtanh.pop %v1163
    %v1168 = vtanh.pop %v1164
    %v1169 = vtanh.pop %v1165
    %1174 = vrot.lane.b32.xlu0 %v1166, 32
    %v1175 = vpop.permute.xlu0 %1174
    %1176 = vrot.lane.b32.xlu0 %v1167, 32
    %v1177 = vpop.permute.xlu0 %1176
    %1178 = vrot.lane.b32.xlu0 %v1168, 32
    %v1179 = vpop.permute.xlu0 %1178
    %1180 = vrot.lane.b32.xlu0 %v1169, 32
    %v1181 = vpop.permute.xlu0 %1180
    %v1186 = vmul.f32 %v1072, %v1175
    %v1187 = vmul.f32 %v1087, %v1177
    %v1188 = vmul.f32 %v1102, %v1179
    %v1189 = vmul.f32 %v1117, %v1181
    %1194 = vrot.lane.b32.xlu0 %v1186, 64
    %v1195 = vpop.permute.xlu0 %1194
    %1196 = vrot.lane.b32.xlu0 %v1187, 64
    %v1197 = vpop.permute.xlu0 %1196
    %1198 = vrot.lane.b32.xlu0 %v1188, 64
    %v1199 = vpop.permute.xlu0 %1198
    %1200 = vrot.lane.b32.xlu0 %v1189, 64
    %v1201 = vpop.permute.xlu0 %1200
    %s1206 = scalar_lea.vmem [#allocation13], 64
    %1207 = vst.msk [vmem:[%s1206] sm:$0xff] %vm163, %v1195
    %1208 = vst.msk [vmem:[%s1206 + $0x8] sm:$0xff] %vm163, %v1197
    %1209 = vst.msk [vmem:[%s1206 + $0x10] sm:$0xff] %vm163, %v1199
    %1210 = vst.msk [vmem:[%s1206 + $0x18] sm:$0xff] %vm163, %v1201
    %v1211 = vsel %vm163, %v1195, 0
    %v1213 = vsel %vm163, %v1197, 0
    %v1215 = vsel %vm163, %v1199, 0
    %v1217 = vsel %vm163, %v1201, 0
    %1219 = vmatpush.msra.mxu0 0.0
    %1220 = vmatpush.msra.mxu0 0.0
    %1221 = vmatpush.msra.mxu0 0.0
    %1222 = vmatpush.msra.mxu0 0.0
    %1223 = vmatpush.msra.mxu0 0.0
    %1224 = vmatpush.msra.mxu0 0.0
    %1225 = vmatpush.msra.mxu0 0.0
    %1226 = vmatpush.msra.mxu0 0.0
    %1227 = vmatpush.msra.mxu0 0.0
    %1228 = vmatpush.msra.mxu0 0.0
    %1229 = vmatpush.msra.mxu0 0.0
    %1230 = vmatpush.msra.mxu0 0.0
    %1231 = vmatpush.msra.mxu0 %v154
    %1232 = vmatpush.msra.mxu0 %v153
    %1233 = vmatpush.msra.mxu0 %v152
    %1234 = vmatpush.msra.mxu0 %v151
    %1235 = vmatmul.f32.gmra.mxu0 %v1211
    %v1236 = vpop.f32.mrf.mxu0
    %v1237 = vadd.f32 %v157, %v1236
    %1238 = vmatmul.f32.gmra.mxu0 %v1213
    %v1239 = vpop.f32.mrf.mxu0
    %v1240 = vadd.f32 %v157, %v1239
    %1241 = vmatmul.f32.gmra.mxu0 %v1215
    %v1242 = vpop.f32.mrf.mxu0
    %v1243 = vadd.f32 %v157, %v1242
    %1244 = vmatmul.f32.gmra.mxu0 %v1217
    %v1245 = vpop.f32.mrf.mxu0
    %v1246 = vadd.f32 %v157, %v1245
    %1247 = vdwg.mxu0
    %v1248 = vmax.f32 %v1237, 0.0
    %v1249 = vmax.f32 %v1240, 0.0
    %v1250 = vmax.f32 %v1243, 0.0
    %v1251 = vmax.f32 %v1246, 0.0
    %v1253 = vsel %vm163, %v1248, 0
    %v1256 = vsel %vm163, %v1249, 0
    %v1259 = vsel %vm163, %v1250, 0
    %v1262 = vsel %vm163, %v1251, 0
    %1264 = vmatpush.msra.mxu0 0.0
    %1265 = vmatpush.msra.mxu0 0.0
    %1266 = vmatpush.msra.mxu0 0.0
    %1267 = vmatpush.msra.mxu0 0.0
    %1268 = vmatpush.msra.mxu0 0.0
    %1269 = vmatpush.msra.mxu0 0.0
    %1270 = vmatpush.msra.mxu0 0.0
    %1271 = vmatpush.msra.mxu0 0.0
    %1272 = vmatpush.msra.mxu0 0.0
    %1273 = vmatpush.msra.mxu0 0.0
    %1274 = vmatpush.msra.mxu0 0.0
    %1275 = vmatpush.msra.mxu0 0.0
    %1276 = vmatpush.msra.mxu0 %v130
    %1277 = vmatpush.msra.mxu0 %v129
    %1278 = vmatpush.msra.mxu0 %v128
    %1279 = vmatpush.msra.mxu0 %v127
    %1280 = vmatmul.f32.gmra.mxu0 %v1253
    %v1281 = vpop.f32.mrf.mxu0
    %v1282 = vadd.f32 %v133, %v1281
    %1283 = vmatmul.f32.gmra.mxu0 %v1256
    %v1284 = vpop.f32.mrf.mxu0
    %v1285 = vadd.f32 %v133, %v1284
    %1286 = vmatmul.f32.gmra.mxu0 %v1259
    %v1287 = vpop.f32.mrf.mxu0
    %v1288 = vadd.f32 %v133, %v1287
    %1289 = vmatmul.f32.gmra.mxu0 %v1262
    %v1290 = vpop.f32.mrf.mxu0
    %v1291 = vadd.f32 %v133, %v1290
    %1292 = vdwg.mxu0
    %v1293 = vmax.f32 %v1282, 0.0
    %v1294 = vmax.f32 %v1285, 0.0
    %v1295 = vmax.f32 %v1288, 0.0
    %v1296 = vmax.f32 %v1291, 0.0
    %v1298 = vsel %vm163, %v1293, 0
    %v1301 = vsel %vm163, %v1294, 0
    %v1304 = vsel %vm163, %v1295, 0
    %v1307 = vsel %vm163, %v1296, 0
    %1309 = vmatpush.msra.mxu0 0.0
    %1310 = vmatpush.msra.mxu0 0.0
    %1311 = vmatpush.msra.mxu0 0.0
    %1312 = vmatpush.msra.mxu0 0.0
    %1313 = vmatpush.msra.mxu0 0.0
    %1314 = vmatpush.msra.mxu0 0.0
    %1315 = vmatpush.msra.mxu0 0.0
    %1316 = vmatpush.msra.mxu0 0.0
    %1317 = vmatpush.msra.mxu0 0.0
    %1318 = vmatpush.msra.mxu0 0.0
    %1319 = vmatpush.msra.mxu0 0.0
    %1320 = vmatpush.msra.mxu0 0.0
    %1321 = vmatpush.msra.mxu0 %v142
    %1322 = vmatpush.msra.mxu0 %v141
    %1323 = vmatpush.msra.mxu0 %v140
    %1324 = vmatpush.msra.mxu0 %v139
    %1325 = vmatmul.f32.gmra.mxu0 %v1298
    %v1326 = vpop.f32.mrf.mxu0
    %v1327 = vadd.f32 0.0, %v1326
    %1328 = vmatmul.f32.gmra.mxu0 %v1301
    %v1329 = vpop.f32.mrf.mxu0
    %v1330 = vadd.f32 0.0, %v1329
    %1331 = vmatmul.f32.gmra.mxu0 %v1304
    %v1332 = vpop.f32.mrf.mxu0
    %v1333 = vadd.f32 0.0, %v1332
    %1334 = vmatmul.f32.gmra.mxu0 %v1307
    %v1335 = vpop.f32.mrf.mxu0
    %v1336 = vadd.f32 0.0, %v1335
    %1337 = vdwg.mxu0
    %1338 = vmatpush.msra.mxu0 0.0
    %1339 = vmatpush.msra.mxu0 0.0
    %1340 = vmatpush.msra.mxu0 0.0
    %1341 = vmatpush.msra.mxu0 0.0
    %1342 = vmatpush.msra.mxu0 0.0
    %1343 = vmatpush.msra.mxu0 0.0
    %1344 = vmatpush.msra.mxu0 0.0
    %1345 = vmatpush.msra.mxu0 0.0
    %1346 = vmatpush.msra.mxu0 0.0
    %1347 = vmatpush.msra.mxu0 0.0
    %1348 = vmatpush.msra.mxu0 0.0
    %1349 = vmatpush.msra.mxu0 0.0
    %1350 = vmatpush.msra.mxu0 %v138
    %1351 = vmatpush.msra.mxu0 %v137
    %1352 = vmatpush.msra.mxu0 %v136
    %1353 = vmatpush.msra.mxu0 %v135
    %1354 = vmatmul.f32.gmra.mxu0 %v1253
    %v1355 = vpop.f32.mrf.mxu0
    %v1356 = vadd.f32 %v1327, %v1355
    %1357 = vmatmul.f32.gmra.mxu0 %v1256
    %v1358 = vpop.f32.mrf.mxu0
    %v1359 = vadd.f32 %v1330, %v1358
    %1360 = vmatmul.f32.gmra.mxu0 %v1259
    %v1361 = vpop.f32.mrf.mxu0
    %v1362 = vadd.f32 %v1333, %v1361
    %1363 = vmatmul.f32.gmra.mxu0 %v1262
    %v1364 = vpop.f32.mrf.mxu0
    %v1365 = vadd.f32 %v1336, %v1364
    %1366 = vdwg.mxu0
    %1367 = vmatpush.msra.mxu0 0.0
    %1368 = vmatpush.msra.mxu0 0.0
    %1369 = vmatpush.msra.mxu0 0.0
    %1370 = vmatpush.msra.mxu0 0.0
    %1371 = vmatpush.msra.mxu0 0.0
    %1372 = vmatpush.msra.mxu0 0.0
    %1373 = vmatpush.msra.mxu0 0.0
    %1374 = vmatpush.msra.mxu0 0.0
    %1375 = vmatpush.msra.mxu0 0.0
    %1376 = vmatpush.msra.mxu0 0.0
    %1377 = vmatpush.msra.mxu0 0.0
    %1378 = vmatpush.msra.mxu0 0.0
    %1379 = vmatpush.msra.mxu0 %v146
    %1380 = vmatpush.msra.mxu0 %v145
    %1381 = vmatpush.msra.mxu0 %v144
    %1382 = vmatpush.msra.mxu0 %v143
    %1383 = vmatmul.f32.gmra.mxu0 %v1211
    %v1384 = vpop.f32.mrf.mxu0
    %v1385 = vadd.f32 0.0, %v1384
    %1386 = vmatmul.f32.gmra.mxu0 %v1213
    %v1387 = vpop.f32.mrf.mxu0
    %v1388 = vadd.f32 0.0, %v1387
    %1389 = vmatmul.f32.gmra.mxu0 %v1215
    %v1390 = vpop.f32.mrf.mxu0
    %v1391 = vadd.f32 0.0, %v1390
    %1392 = vmatmul.f32.gmra.mxu0 %v1217
    %v1393 = vpop.f32.mrf.mxu0
    %v1394 = vadd.f32 0.0, %v1393
    %1395 = vdwg.mxu0
    %v1396 = vadd.f32 %v1356, %v1385
    %v1397 = vadd.f32 %v1359, %v1388
    %v1398 = vadd.f32 %v1362, %v1391
    %v1399 = vadd.f32 %v1365, %v1394
    %v1400 = vadd.f32 %v1396, %v149
    %v1401 = vadd.f32 %v1397, %v149
    %v1402 = vadd.f32 %v1398, %v149
    %v1403 = vadd.f32 %v1399, %v149
    %v1404 = vxor.u32 %v1400, 2147483648
    %v1405 = vxor.u32 %v1401, 2147483648
    %v1406 = vxor.u32 %v1402, 2147483648
    %v1407 = vxor.u32 %v1403, 2147483648
    %v1408 = vmul.f32 %v1404, 1.442695
    %v1409 = vpow.pop %v1408
    %v1410 = vmul.f32 %v1405, 1.442695
    %v1411 = vpow.pop %v1410
    %v1412 = vmul.f32 %v1406, 1.442695
    %v1413 = vpow.pop %v1412
    %v1414 = vmul.f32 %v1407, 1.442695
    %v1415 = vpow.pop %v1414
    %v1416 = vadd.f32 %v1409, 1.0
    %v1417 = vadd.f32 %v1411, 1.0
    %v1418 = vadd.f32 %v1413, 1.0
    %v1419 = vadd.f32 %v1415, 1.0
    %v1420 = vrcp.pop %v1416
    %v1421 = vmul.f32 %v1416, %v1420
    %v1422 = vsub.f32 1.0, %v1421
    %v1423 = vmul.f32 %v1420, %v1422
    %v1424 = vadd.f32 %v1420, %v1423
    %vm1425 = vweird.f32 %v1416
    %vm1426 = vweird.f32 %v1420
    %vm1427 = vmor %vm1425, %vm1426
    %v1428 = vsel %vm1427, %v1420, %v1424
    %v1429 = vand.u32 2147483647, %v1416
    %vm1430 = vcmp.eq.f32.partialorder %v1429, 8.507059e+37
    %v1431 = vand.u32 %v1416, 2147483648
    %v1432 = vor.u32 1.1754944e-38, %v1431
    %v1433 = vsel %vm1430, %v1432, %v1428
    %v1434 = vmul.f32 1.0, %v1433
    %v1435 = vrcp.pop %v1417
    %v1436 = vmul.f32 %v1417, %v1435
    %v1437 = vsub.f32 1.0, %v1436
    %v1438 = vmul.f32 %v1435, %v1437
    %v1439 = vadd.f32 %v1435, %v1438
    %vm1440 = vweird.f32 %v1417
    %vm1441 = vweird.f32 %v1435
    %vm1442 = vmor %vm1440, %vm1441
    %v1443 = vsel %vm1442, %v1435, %v1439
    %v1444 = vand.u32 2147483647, %v1417
    %vm1445 = vcmp.eq.f32.partialorder %v1444, 8.507059e+37
    %v1446 = vand.u32 %v1417, 2147483648
    %v1447 = vor.u32 1.1754944e-38, %v1446
    %v1448 = vsel %vm1445, %v1447, %v1443
    %v1449 = vmul.f32 1.0, %v1448
    %v1450 = vrcp.pop %v1418
    %v1451 = vmul.f32 %v1418, %v1450
    %v1452 = vsub.f32 1.0, %v1451
    %v1453 = vmul.f32 %v1450, %v1452
    %v1454 = vadd.f32 %v1450, %v1453
    %vm1455 = vweird.f32 %v1418
    %vm1456 = vweird.f32 %v1450
    %vm1457 = vmor %vm1455, %vm1456
    %v1458 = vsel %vm1457, %v1450, %v1454
    %v1459 = vand.u32 2147483647, %v1418
    %vm1460 = vcmp.eq.f32.partialorder %v1459, 8.507059e+37
    %v1461 = vand.u32 %v1418, 2147483648
    %v1462 = vor.u32 1.1754944e-38, %v1461
    %v1463 = vsel %vm1460, %v1462, %v1458
    %v1464 = vmul.f32 1.0, %v1463
    %v1465 = vrcp.pop %v1419
    %v1466 = vmul.f32 %v1419, %v1465
    %v1467 = vsub.f32 1.0, %v1466
    %v1468 = vmul.f32 %v1465, %v1467
    %v1469 = vadd.f32 %v1465, %v1468
    %vm1470 = vweird.f32 %v1419
    %vm1471 = vweird.f32 %v1465
    %vm1472 = vmor %vm1470, %vm1471
    %v1473 = vsel %vm1472, %v1465, %v1469
    %v1474 = vand.u32 2147483647, %v1419
    %vm1475 = vcmp.eq.f32.partialorder %v1474, 8.507059e+37
    %v1476 = vand.u32 %v1419, 2147483648
    %v1477 = vor.u32 1.1754944e-38, %v1476
    %v1478 = vsel %vm1475, %v1477, %v1473
    %v1479 = vmul.f32 1.0, %v1478
    %v1480 = vtanh.pop %v1400
    %v1481 = vtanh.pop %v1401
    %v1482 = vtanh.pop %v1402
    %v1483 = vtanh.pop %v1403
    %v1484 = vmul.f32 %v1162, %v1434
    %v1485 = vmul.f32 %v1163, %v1449
    %v1486 = vmul.f32 %v1164, %v1464
    %v1487 = vmul.f32 %v1165, %v1479
    %1492 = vrot.lane.b32.xlu0 %v1480, 32
    %v1493 = vpop.permute.xlu0 %1492
    %1494 = vrot.lane.b32.xlu0 %v1481, 32
    %v1495 = vpop.permute.xlu0 %1494
    %1496 = vrot.lane.b32.xlu0 %v1482, 32
    %v1497 = vpop.permute.xlu0 %1496
    %1498 = vrot.lane.b32.xlu0 %v1483, 32
    %v1499 = vpop.permute.xlu0 %1498
    %v1504 = vmul.f32 %v1434, %v1493
    %v1505 = vmul.f32 %v1449, %v1495
    %v1506 = vmul.f32 %v1464, %v1497
    %v1507 = vmul.f32 %v1479, %v1499
    %1512 = vrot.lane.b32.xlu0 %v1504, 32
    %v1513 = vpop.permute.xlu0 %1512
    %1514 = vrot.lane.b32.xlu0 %v1505, 32
    %v1515 = vpop.permute.xlu0 %1514
    %1516 = vrot.lane.b32.xlu0 %v1506, 32
    %v1517 = vpop.permute.xlu0 %1516
    %1518 = vrot.lane.b32.xlu0 %v1507, 32
    %v1519 = vpop.permute.xlu0 %1518
    %v1524 = vadd.f32 %v1484, %v1513
    %v1525 = vadd.f32 %v1485, %v1515
    %v1526 = vadd.f32 %v1486, %v1517
    %v1527 = vadd.f32 %v1487, %v1519
    %v1528 = vtanh.pop %v1524
    %v1529 = vtanh.pop %v1525
    %v1530 = vtanh.pop %v1526
    %v1531 = vtanh.pop %v1527
    %1536 = vrot.lane.b32.xlu0 %v1528, 32
    %v1537 = vpop.permute.xlu0 %1536
    %1538 = vrot.lane.b32.xlu0 %v1529, 32
    %v1539 = vpop.permute.xlu0 %1538
    %1540 = vrot.lane.b32.xlu0 %v1530, 32
    %v1541 = vpop.permute.xlu0 %1540
    %1542 = vrot.lane.b32.xlu0 %v1531, 32
    %v1543 = vpop.permute.xlu0 %1542
    %v1548 = vmul.f32 %v1434, %v1537
    %v1549 = vmul.f32 %v1449, %v1539
    %v1550 = vmul.f32 %v1464, %v1541
    %v1551 = vmul.f32 %v1479, %v1543
    %1556 = vrot.lane.b32.xlu0 %v1548, 64
    %v1557 = vpop.permute.xlu0 %1556
    %1558 = vrot.lane.b32.xlu0 %v1549, 64
    %v1559 = vpop.permute.xlu0 %1558
    %1560 = vrot.lane.b32.xlu0 %v1550, 64
    %v1561 = vpop.permute.xlu0 %1560
    %1562 = vrot.lane.b32.xlu0 %v1551, 64
    %v1563 = vpop.permute.xlu0 %1562
    %s1568 = scalar_lea.vmem [#allocation13], 96
    %1569 = vst.msk [vmem:[%s1568] sm:$0xff] %vm163, %v1557
    %1570 = vst.msk [vmem:[%s1568 + $0x8] sm:$0xff] %vm163, %v1559
    %1571 = vst.msk [vmem:[%s1568 + $0x10] sm:$0xff] %vm163, %v1561
    %1572 = vst.msk [vmem:[%s1568 + $0x18] sm:$0xff] %vm163, %v1563
    %v1573 = vsel %vm163, %v1557, 0
    %v1575 = vsel %vm163, %v1559, 0
    %v1577 = vsel %vm163, %v1561, 0
    %v1579 = vsel %vm163, %v1563, 0
    %1581 = vmatpush.msra.mxu0 0.0
    %1582 = vmatpush.msra.mxu0 0.0
    %1583 = vmatpush.msra.mxu0 0.0
    %1584 = vmatpush.msra.mxu0 0.0
    %1585 = vmatpush.msra.mxu0 0.0
    %1586 = vmatpush.msra.mxu0 0.0
    %1587 = vmatpush.msra.mxu0 0.0
    %1588 = vmatpush.msra.mxu0 0.0
    %1589 = vmatpush.msra.mxu0 0.0
    %1590 = vmatpush.msra.mxu0 0.0
    %1591 = vmatpush.msra.mxu0 0.0
    %1592 = vmatpush.msra.mxu0 0.0
    %1593 = vmatpush.msra.mxu0 %v154
    %1594 = vmatpush.msra.mxu0 %v153
    %1595 = vmatpush.msra.mxu0 %v152
    %1596 = vmatpush.msra.mxu0 %v151
    %1597 = vmatmul.f32.gmra.mxu0 %v1573
    %v1598 = vpop.f32.mrf.mxu0
    %v1599 = vadd.f32 %v157, %v1598
    %1600 = vmatmul.f32.gmra.mxu0 %v1575
    %v1601 = vpop.f32.mrf.mxu0
    %v1602 = vadd.f32 %v157, %v1601
    %1603 = vmatmul.f32.gmra.mxu0 %v1577
    %v1604 = vpop.f32.mrf.mxu0
    %v1605 = vadd.f32 %v157, %v1604
    %1606 = vmatmul.f32.gmra.mxu0 %v1579
    %v1607 = vpop.f32.mrf.mxu0
    %v1608 = vadd.f32 %v157, %v1607
    %1609 = vdwg.mxu0
    %v1610 = vmax.f32 %v1599, 0.0
    %v1611 = vmax.f32 %v1602, 0.0
    %v1612 = vmax.f32 %v1605, 0.0
    %v1613 = vmax.f32 %v1608, 0.0
    %v1615 = vsel %vm163, %v1610, 0
    %v1618 = vsel %vm163, %v1611, 0
    %v1621 = vsel %vm163, %v1612, 0
    %v1624 = vsel %vm163, %v1613, 0
    %1626 = vmatpush.msra.mxu0 0.0
    %1627 = vmatpush.msra.mxu0 0.0
    %1628 = vmatpush.msra.mxu0 0.0
    %1629 = vmatpush.msra.mxu0 0.0
    %1630 = vmatpush.msra.mxu0 0.0
    %1631 = vmatpush.msra.mxu0 0.0
    %1632 = vmatpush.msra.mxu0 0.0
    %1633 = vmatpush.msra.mxu0 0.0
    %1634 = vmatpush.msra.mxu0 0.0
    %1635 = vmatpush.msra.mxu0 0.0
    %1636 = vmatpush.msra.mxu0 0.0
    %1637 = vmatpush.msra.mxu0 0.0
    %1638 = vmatpush.msra.mxu0 %v130
    %1639 = vmatpush.msra.mxu0 %v129
    %1640 = vmatpush.msra.mxu0 %v128
    %1641 = vmatpush.msra.mxu0 %v127
    %1642 = vmatmul.f32.gmra.mxu0 %v1615
    %v1643 = vpop.f32.mrf.mxu0
    %v1644 = vadd.f32 %v133, %v1643
    %1645 = vmatmul.f32.gmra.mxu0 %v1618
    %v1646 = vpop.f32.mrf.mxu0
    %v1647 = vadd.f32 %v133, %v1646
    %1648 = vmatmul.f32.gmra.mxu0 %v1621
    %v1649 = vpop.f32.mrf.mxu0
    %v1650 = vadd.f32 %v133, %v1649
    %1651 = vmatmul.f32.gmra.mxu0 %v1624
    %v1652 = vpop.f32.mrf.mxu0
    %v1653 = vadd.f32 %v133, %v1652
    %1654 = vdwg.mxu0
    %v1655 = vmax.f32 %v1644, 0.0
    %v1656 = vmax.f32 %v1647, 0.0
    %v1657 = vmax.f32 %v1650, 0.0
    %v1658 = vmax.f32 %v1653, 0.0
    %v1660 = vsel %vm163, %v1655, 0
    %v1663 = vsel %vm163, %v1656, 0
    %v1666 = vsel %vm163, %v1657, 0
    %v1669 = vsel %vm163, %v1658, 0
    %1671 = vmatpush.msra.mxu0 0.0
    %1672 = vmatpush.msra.mxu0 0.0
    %1673 = vmatpush.msra.mxu0 0.0
    %1674 = vmatpush.msra.mxu0 0.0
    %1675 = vmatpush.msra.mxu0 0.0
    %1676 = vmatpush.msra.mxu0 0.0
    %1677 = vmatpush.msra.mxu0 0.0
    %1678 = vmatpush.msra.mxu0 0.0
    %1679 = vmatpush.msra.mxu0 0.0
    %1680 = vmatpush.msra.mxu0 0.0
    %1681 = vmatpush.msra.mxu0 0.0
    %1682 = vmatpush.msra.mxu0 0.0
    %1683 = vmatpush.msra.mxu0 %v142
    %1684 = vmatpush.msra.mxu0 %v141
    %1685 = vmatpush.msra.mxu0 %v140
    %1686 = vmatpush.msra.mxu0 %v139
    %1687 = vmatmul.f32.gmra.mxu0 %v1660
    %v1688 = vpop.f32.mrf.mxu0
    %v1689 = vadd.f32 0.0, %v1688
    %1690 = vmatmul.f32.gmra.mxu0 %v1663
    %v1691 = vpop.f32.mrf.mxu0
    %v1692 = vadd.f32 0.0, %v1691
    %1693 = vmatmul.f32.gmra.mxu0 %v1666
    %v1694 = vpop.f32.mrf.mxu0
    %v1695 = vadd.f32 0.0, %v1694
    %1696 = vmatmul.f32.gmra.mxu0 %v1669
    %v1697 = vpop.f32.mrf.mxu0
    %v1698 = vadd.f32 0.0, %v1697
    %1699 = vdwg.mxu0
    %1700 = vmatpush.msra.mxu0 0.0
    %1701 = vmatpush.msra.mxu0 0.0
    %1702 = vmatpush.msra.mxu0 0.0
    %1703 = vmatpush.msra.mxu0 0.0
    %1704 = vmatpush.msra.mxu0 0.0
    %1705 = vmatpush.msra.mxu0 0.0
    %1706 = vmatpush.msra.mxu0 0.0
    %1707 = vmatpush.msra.mxu0 0.0
    %1708 = vmatpush.msra.mxu0 0.0
    %1709 = vmatpush.msra.mxu0 0.0
    %1710 = vmatpush.msra.mxu0 0.0
    %1711 = vmatpush.msra.mxu0 0.0
    %1712 = vmatpush.msra.mxu0 %v138
    %1713 = vmatpush.msra.mxu0 %v137
    %1714 = vmatpush.msra.mxu0 %v136
    %1715 = vmatpush.msra.mxu0 %v135
    %1716 = vmatmul.f32.gmra.mxu0 %v1615
    %v1717 = vpop.f32.mrf.mxu0
    %v1718 = vadd.f32 %v1689, %v1717
    %1719 = vmatmul.f32.gmra.mxu0 %v1618
    %v1720 = vpop.f32.mrf.mxu0
    %v1721 = vadd.f32 %v1692, %v1720
    %1722 = vmatmul.f32.gmra.mxu0 %v1621
    %v1723 = vpop.f32.mrf.mxu0
    %v1724 = vadd.f32 %v1695, %v1723
    %1725 = vmatmul.f32.gmra.mxu0 %v1624
    %v1726 = vpop.f32.mrf.mxu0
    %v1727 = vadd.f32 %v1698, %v1726
    %1728 = vdwg.mxu0
    %1729 = vmatpush.msra.mxu0 0.0
    %1730 = vmatpush.msra.mxu0 0.0
    %1731 = vmatpush.msra.mxu0 0.0
    %1732 = vmatpush.msra.mxu0 0.0
    %1733 = vmatpush.msra.mxu0 0.0
    %1734 = vmatpush.msra.mxu0 0.0
    %1735 = vmatpush.msra.mxu0 0.0
    %1736 = vmatpush.msra.mxu0 0.0
    %1737 = vmatpush.msra.mxu0 0.0
    %1738 = vmatpush.msra.mxu0 0.0
    %1739 = vmatpush.msra.mxu0 0.0
    %1740 = vmatpush.msra.mxu0 0.0
    %1741 = vmatpush.msra.mxu0 %v146
    %1742 = vmatpush.msra.mxu0 %v145
    %1743 = vmatpush.msra.mxu0 %v144
    %1744 = vmatpush.msra.mxu0 %v143
    %1745 = vmatmul.f32.gmra.mxu0 %v1573
    %v1746 = vpop.f32.mrf.mxu0
    %v1747 = vadd.f32 0.0, %v1746
    %1748 = vmatmul.f32.gmra.mxu0 %v1575
    %v1749 = vpop.f32.mrf.mxu0
    %v1750 = vadd.f32 0.0, %v1749
    %1751 = vmatmul.f32.gmra.mxu0 %v1577
    %v1752 = vpop.f32.mrf.mxu0
    %v1753 = vadd.f32 0.0, %v1752
    %1754 = vmatmul.f32.gmra.mxu0 %v1579
    %v1755 = vpop.f32.mrf.mxu0
    %v1756 = vadd.f32 0.0, %v1755
    %1757 = vdwg.mxu0
    %v1758 = vadd.f32 %v1718, %v1747
    %v1759 = vadd.f32 %v1721, %v1750
    %v1760 = vadd.f32 %v1724, %v1753
    %v1761 = vadd.f32 %v1727, %v1756
    %v1762 = vadd.f32 %v1758, %v149
    %v1763 = vadd.f32 %v1759, %v149
    %v1764 = vadd.f32 %v1760, %v149
    %v1765 = vadd.f32 %v1761, %v149
    %v1766 = vxor.u32 %v1762, 2147483648
    %v1767 = vxor.u32 %v1763, 2147483648
    %v1768 = vxor.u32 %v1764, 2147483648
    %v1769 = vxor.u32 %v1765, 2147483648
    %v1770 = vmul.f32 %v1766, 1.442695
    %v1771 = vpow.pop %v1770
    %v1772 = vmul.f32 %v1767, 1.442695
    %v1773 = vpow.pop %v1772
    %v1774 = vmul.f32 %v1768, 1.442695
    %v1775 = vpow.pop %v1774
    %v1776 = vmul.f32 %v1769, 1.442695
    %v1777 = vpow.pop %v1776
    %v1778 = vadd.f32 %v1771, 1.0
    %v1779 = vadd.f32 %v1773, 1.0
    %v1780 = vadd.f32 %v1775, 1.0
    %v1781 = vadd.f32 %v1777, 1.0
    %v1782 = vrcp.pop %v1778
    %v1783 = vmul.f32 %v1778, %v1782
    %v1784 = vsub.f32 1.0, %v1783
    %v1785 = vmul.f32 %v1782, %v1784
    %v1786 = vadd.f32 %v1782, %v1785
    %vm1787 = vweird.f32 %v1778
    %vm1788 = vweird.f32 %v1782
    %vm1789 = vmor %vm1787, %vm1788
    %v1790 = vsel %vm1789, %v1782, %v1786
    %v1791 = vand.u32 2147483647, %v1778
    %vm1792 = vcmp.eq.f32.partialorder %v1791, 8.507059e+37
    %v1793 = vand.u32 %v1778, 2147483648
    %v1794 = vor.u32 1.1754944e-38, %v1793
    %v1795 = vsel %vm1792, %v1794, %v1790
    %v1796 = vmul.f32 1.0, %v1795
    %v1797 = vrcp.pop %v1779
    %v1798 = vmul.f32 %v1779, %v1797
    %v1799 = vsub.f32 1.0, %v1798
    %v1800 = vmul.f32 %v1797, %v1799
    %v1801 = vadd.f32 %v1797, %v1800
    %vm1802 = vweird.f32 %v1779
    %vm1803 = vweird.f32 %v1797
    %vm1804 = vmor %vm1802, %vm1803
    %v1805 = vsel %vm1804, %v1797, %v1801
    %v1806 = vand.u32 2147483647, %v1779
    %vm1807 = vcmp.eq.f32.partialorder %v1806, 8.507059e+37
    %v1808 = vand.u32 %v1779, 2147483648
    %v1809 = vor.u32 1.1754944e-38, %v1808
    %v1810 = vsel %vm1807, %v1809, %v1805
    %v1811 = vmul.f32 1.0, %v1810
    %v1812 = vrcp.pop %v1780
    %v1813 = vmul.f32 %v1780, %v1812
    %v1814 = vsub.f32 1.0, %v1813
    %v1815 = vmul.f32 %v1812, %v1814
    %v1816 = vadd.f32 %v1812, %v1815
    %vm1817 = vweird.f32 %v1780
    %vm1818 = vweird.f32 %v1812
    %vm1819 = vmor %vm1817, %vm1818
    %v1820 = vsel %vm1819, %v1812, %v1816
    %v1821 = vand.u32 2147483647, %v1780
    %vm1822 = vcmp.eq.f32.partialorder %v1821, 8.507059e+37
    %v1823 = vand.u32 %v1780, 2147483648
    %v1824 = vor.u32 1.1754944e-38, %v1823
    %v1825 = vsel %vm1822, %v1824, %v1820
    %v1826 = vmul.f32 1.0, %v1825
    %v1827 = vrcp.pop %v1781
    %v1828 = vmul.f32 %v1781, %v1827
    %v1829 = vsub.f32 1.0, %v1828
    %v1830 = vmul.f32 %v1827, %v1829
    %v1831 = vadd.f32 %v1827, %v1830
    %vm1832 = vweird.f32 %v1781
    %vm1833 = vweird.f32 %v1827
    %vm1834 = vmor %vm1832, %vm1833
    %v1835 = vsel %vm1834, %v1827, %v1831
    %v1836 = vand.u32 2147483647, %v1781
    %vm1837 = vcmp.eq.f32.partialorder %v1836, 8.507059e+37
    %v1838 = vand.u32 %v1781, 2147483648
    %v1839 = vor.u32 1.1754944e-38, %v1838
    %v1840 = vsel %vm1837, %v1839, %v1835
    %v1841 = vmul.f32 1.0, %v1840
    %v1842 = vtanh.pop %v1762
    %v1843 = vtanh.pop %v1763
    %v1844 = vtanh.pop %v1764
    %v1845 = vtanh.pop %v1765
    %v1846 = vmul.f32 %v1524, %v1796
    %v1847 = vmul.f32 %v1525, %v1811
    %v1848 = vmul.f32 %v1526, %v1826
    %v1849 = vmul.f32 %v1527, %v1841
    %1854 = vrot.lane.b32.xlu0 %v1842, 32
    %v1855 = vpop.permute.xlu0 %1854
    %1856 = vrot.lane.b32.xlu0 %v1843, 32
    %v1857 = vpop.permute.xlu0 %1856
    %1858 = vrot.lane.b32.xlu0 %v1844, 32
    %v1859 = vpop.permute.xlu0 %1858
    %1860 = vrot.lane.b32.xlu0 %v1845, 32
    %v1861 = vpop.permute.xlu0 %1860
    %v1866 = vmul.f32 %v1796, %v1855
    %v1867 = vmul.f32 %v1811, %v1857
    %v1868 = vmul.f32 %v1826, %v1859
    %v1869 = vmul.f32 %v1841, %v1861
    %1874 = vrot.lane.b32.xlu0 %v1866, 32
    %v1875 = vpop.permute.xlu0 %1874
    %1876 = vrot.lane.b32.xlu0 %v1867, 32
    %v1877 = vpop.permute.xlu0 %1876
    %1878 = vrot.lane.b32.xlu0 %v1868, 32
    %v1879 = vpop.permute.xlu0 %1878
    %1880 = vrot.lane.b32.xlu0 %v1869, 32
    %v1881 = vpop.permute.xlu0 %1880
    %v1886 = vadd.f32 %v1846, %v1875
    %v1887 = vadd.f32 %v1847, %v1877
    %v1888 = vadd.f32 %v1848, %v1879
    %v1889 = vadd.f32 %v1849, %v1881
    %v1890 = vtanh.pop %v1886
    %v1891 = vtanh.pop %v1887
    %v1892 = vtanh.pop %v1888
    %v1893 = vtanh.pop %v1889
    %1898 = vrot.lane.b32.xlu0 %v1890, 32
    %v1899 = vpop.permute.xlu0 %1898
    %1900 = vrot.lane.b32.xlu0 %v1891, 32
    %v1901 = vpop.permute.xlu0 %1900
    %1902 = vrot.lane.b32.xlu0 %v1892, 32
    %v1903 = vpop.permute.xlu0 %1902
    %1904 = vrot.lane.b32.xlu0 %v1893, 32
    %v1905 = vpop.permute.xlu0 %1904
    %v1910 = vmul.f32 %v1796, %v1899
    %v1911 = vmul.f32 %v1811, %v1901
    %v1912 = vmul.f32 %v1826, %v1903
    %v1913 = vmul.f32 %v1841, %v1905
    %1918 = vrot.lane.b32.xlu0 %v1910, 64
    %v1919 = vpop.permute.xlu0 %1918
    %1920 = vrot.lane.b32.xlu0 %v1911, 64
    %v1921 = vpop.permute.xlu0 %1920
    %1922 = vrot.lane.b32.xlu0 %v1912, 64
    %v1923 = vpop.permute.xlu0 %1922
    %1924 = vrot.lane.b32.xlu0 %v1913, 64
    %v1925 = vpop.permute.xlu0 %1924
    %s1930 = scalar_lea.vmem [#allocation13], 128
    %1931 = vst.msk [vmem:[%s1930] sm:$0xff] %vm163, %v1919
    %1932 = vst.msk [vmem:[%s1930 + $0x8] sm:$0xff] %vm163, %v1921
    %1933 = vst.msk [vmem:[%s1930 + $0x10] sm:$0xff] %vm163, %v1923
    %1934 = vst.msk [vmem:[%s1930 + $0x18] sm:$0xff] %vm163, %v1925
    %v1935 = vsel %vm163, %v1919, 0
    %v1937 = vsel %vm163, %v1921, 0
    %v1939 = vsel %vm163, %v1923, 0
    %v1941 = vsel %vm163, %v1925, 0
    %1943 = vmatpush.msra.mxu0 0.0
    %1944 = vmatpush.msra.mxu0 0.0
    %1945 = vmatpush.msra.mxu0 0.0
    %1946 = vmatpush.msra.mxu0 0.0
    %1947 = vmatpush.msra.mxu0 0.0
    %1948 = vmatpush.msra.mxu0 0.0
    %1949 = vmatpush.msra.mxu0 0.0
    %1950 = vmatpush.msra.mxu0 0.0
    %1951 = vmatpush.msra.mxu0 0.0
    %1952 = vmatpush.msra.mxu0 0.0
    %1953 = vmatpush.msra.mxu0 0.0
    %1954 = vmatpush.msra.mxu0 0.0
    %1955 = vmatpush.msra.mxu0 %v154
    %1956 = vmatpush.msra.mxu0 %v153
    %1957 = vmatpush.msra.mxu0 %v152
    %1958 = vmatpush.msra.mxu0 %v151
    %1959 = vmatmul.f32.gmra.mxu0 %v1935
    %v1960 = vpop.f32.mrf.mxu0
    %v1961 = vadd.f32 %v157, %v1960
    %1962 = vmatmul.f32.gmra.mxu0 %v1937
    %v1963 = vpop.f32.mrf.mxu0
    %v1964 = vadd.f32 %v157, %v1963
    %1965 = vmatmul.f32.gmra.mxu0 %v1939
    %v1966 = vpop.f32.mrf.mxu0
    %v1967 = vadd.f32 %v157, %v1966
    %1968 = vmatmul.f32.gmra.mxu0 %v1941
    %v1969 = vpop.f32.mrf.mxu0
    %v1970 = vadd.f32 %v157, %v1969
    %1971 = vdwg.mxu0
    %v1972 = vmax.f32 %v1961, 0.0
    %v1973 = vmax.f32 %v1964, 0.0
    %v1974 = vmax.f32 %v1967, 0.0
    %v1975 = vmax.f32 %v1970, 0.0
    %v1977 = vsel %vm163, %v1972, 0
    %v1980 = vsel %vm163, %v1973, 0
    %v1983 = vsel %vm163, %v1974, 0
    %v1986 = vsel %vm163, %v1975, 0
    %1988 = vmatpush.msra.mxu0 0.0
    %1989 = vmatpush.msra.mxu0 0.0
    %1990 = vmatpush.msra.mxu0 0.0
    %1991 = vmatpush.msra.mxu0 0.0
    %1992 = vmatpush.msra.mxu0 0.0
    %1993 = vmatpush.msra.mxu0 0.0
    %1994 = vmatpush.msra.mxu0 0.0
    %1995 = vmatpush.msra.mxu0 0.0
    %1996 = vmatpush.msra.mxu0 0.0
    %1997 = vmatpush.msra.mxu0 0.0
    %1998 = vmatpush.msra.mxu0 0.0
    %1999 = vmatpush.msra.mxu0 0.0
    %2000 = vmatpush.msra.mxu0 %v130
    %2001 = vmatpush.msra.mxu0 %v129
    %2002 = vmatpush.msra.mxu0 %v128
    %2003 = vmatpush.msra.mxu0 %v127
    %2004 = vmatmul.f32.gmra.mxu0 %v1977
    %v2005 = vpop.f32.mrf.mxu0
    %v2006 = vadd.f32 %v133, %v2005
    %2007 = vmatmul.f32.gmra.mxu0 %v1980
    %v2008 = vpop.f32.mrf.mxu0
    %v2009 = vadd.f32 %v133, %v2008
    %2010 = vmatmul.f32.gmra.mxu0 %v1983
    %v2011 = vpop.f32.mrf.mxu0
    %v2012 = vadd.f32 %v133, %v2011
    %2013 = vmatmul.f32.gmra.mxu0 %v1986
    %v2014 = vpop.f32.mrf.mxu0
    %v2015 = vadd.f32 %v133, %v2014
    %2016 = vdwg.mxu0
    %v2017 = vmax.f32 %v2006, 0.0
    %v2018 = vmax.f32 %v2009, 0.0
    %v2019 = vmax.f32 %v2012, 0.0
    %v2020 = vmax.f32 %v2015, 0.0
    %v2022 = vsel %vm163, %v2017, 0
    %v2025 = vsel %vm163, %v2018, 0
    %v2028 = vsel %vm163, %v2019, 0
    %v2031 = vsel %vm163, %v2020, 0
    %2033 = vmatpush.msra.mxu0 0.0
    %2034 = vmatpush.msra.mxu0 0.0
    %2035 = vmatpush.msra.mxu0 0.0
    %2036 = vmatpush.msra.mxu0 0.0
    %2037 = vmatpush.msra.mxu0 0.0
    %2038 = vmatpush.msra.mxu0 0.0
    %2039 = vmatpush.msra.mxu0 0.0
    %2040 = vmatpush.msra.mxu0 0.0
    %2041 = vmatpush.msra.mxu0 0.0
    %2042 = vmatpush.msra.mxu0 0.0
    %2043 = vmatpush.msra.mxu0 0.0
    %2044 = vmatpush.msra.mxu0 0.0
    %2045 = vmatpush.msra.mxu0 %v142
    %2046 = vmatpush.msra.mxu0 %v141
    %2047 = vmatpush.msra.mxu0 %v140
    %2048 = vmatpush.msra.mxu0 %v139
    %2049 = vmatmul.f32.gmra.mxu0 %v2022
    %v2050 = vpop.f32.mrf.mxu0
    %v2051 = vadd.f32 0.0, %v2050
    %2052 = vmatmul.f32.gmra.mxu0 %v2025
    %v2053 = vpop.f32.mrf.mxu0
    %v2054 = vadd.f32 0.0, %v2053
    %2055 = vmatmul.f32.gmra.mxu0 %v2028
    %v2056 = vpop.f32.mrf.mxu0
    %v2057 = vadd.f32 0.0, %v2056
    %2058 = vmatmul.f32.gmra.mxu0 %v2031
    %v2059 = vpop.f32.mrf.mxu0
    %v2060 = vadd.f32 0.0, %v2059
    %2061 = vdwg.mxu0
    %2062 = vmatpush.msra.mxu0 0.0
    %2063 = vmatpush.msra.mxu0 0.0
    %2064 = vmatpush.msra.mxu0 0.0
    %2065 = vmatpush.msra.mxu0 0.0
    %2066 = vmatpush.msra.mxu0 0.0
    %2067 = vmatpush.msra.mxu0 0.0
    %2068 = vmatpush.msra.mxu0 0.0
    %2069 = vmatpush.msra.mxu0 0.0
    %2070 = vmatpush.msra.mxu0 0.0
    %2071 = vmatpush.msra.mxu0 0.0
    %2072 = vmatpush.msra.mxu0 0.0
    %2073 = vmatpush.msra.mxu0 0.0
    %2074 = vmatpush.msra.mxu0 %v138
    %2075 = vmatpush.msra.mxu0 %v137
    %2076 = vmatpush.msra.mxu0 %v136
    %2077 = vmatpush.msra.mxu0 %v135
    %2078 = vmatmul.f32.gmra.mxu0 %v1977
    %v2079 = vpop.f32.mrf.mxu0
    %v2080 = vadd.f32 %v2051, %v2079
    %2081 = vmatmul.f32.gmra.mxu0 %v1980
    %v2082 = vpop.f32.mrf.mxu0
    %v2083 = vadd.f32 %v2054, %v2082
    %2084 = vmatmul.f32.gmra.mxu0 %v1983
    %v2085 = vpop.f32.mrf.mxu0
    %v2086 = vadd.f32 %v2057, %v2085
    %2087 = vmatmul.f32.gmra.mxu0 %v1986
    %v2088 = vpop.f32.mrf.mxu0
    %v2089 = vadd.f32 %v2060, %v2088
    %2090 = vdwg.mxu0
    %2091 = vmatpush.msra.mxu0 0.0
    %2092 = vmatpush.msra.mxu0 0.0
    %2093 = vmatpush.msra.mxu0 0.0
    %2094 = vmatpush.msra.mxu0 0.0
    %2095 = vmatpush.msra.mxu0 0.0
    %2096 = vmatpush.msra.mxu0 0.0
    %2097 = vmatpush.msra.mxu0 0.0
    %2098 = vmatpush.msra.mxu0 0.0
    %2099 = vmatpush.msra.mxu0 0.0
    %2100 = vmatpush.msra.mxu0 0.0
    %2101 = vmatpush.msra.mxu0 0.0
    %2102 = vmatpush.msra.mxu0 0.0
    %2103 = vmatpush.msra.mxu0 %v146
    %2104 = vmatpush.msra.mxu0 %v145
    %2105 = vmatpush.msra.mxu0 %v144
    %2106 = vmatpush.msra.mxu0 %v143
    %2107 = vmatmul.f32.gmra.mxu0 %v1935
    %v2108 = vpop.f32.mrf.mxu0
    %v2109 = vadd.f32 0.0, %v2108
    %2110 = vmatmul.f32.gmra.mxu0 %v1937
    %v2111 = vpop.f32.mrf.mxu0
    %v2112 = vadd.f32 0.0, %v2111
    %2113 = vmatmul.f32.gmra.mxu0 %v1939
    %v2114 = vpop.f32.mrf.mxu0
    %v2115 = vadd.f32 0.0, %v2114
    %2116 = vmatmul.f32.gmra.mxu0 %v1941
    %v2117 = vpop.f32.mrf.mxu0
    %v2118 = vadd.f32 0.0, %v2117
    %2119 = vdwg.mxu0
    %v2120 = vadd.f32 %v2080, %v2109
    %v2121 = vadd.f32 %v2083, %v2112
    %v2122 = vadd.f32 %v2086, %v2115
    %v2123 = vadd.f32 %v2089, %v2118
    %v2124 = vadd.f32 %v2120, %v149
    %v2125 = vadd.f32 %v2121, %v149
    %v2126 = vadd.f32 %v2122, %v149
    %v2127 = vadd.f32 %v2123, %v149
    %v2128 = vxor.u32 %v2124, 2147483648
    %v2129 = vxor.u32 %v2125, 2147483648
    %v2130 = vxor.u32 %v2126, 2147483648
    %v2131 = vxor.u32 %v2127, 2147483648
    %v2132 = vmul.f32 %v2128, 1.442695
    %v2133 = vpow.pop %v2132
    %v2134 = vmul.f32 %v2129, 1.442695
    %v2135 = vpow.pop %v2134
    %v2136 = vmul.f32 %v2130, 1.442695
    %v2137 = vpow.pop %v2136
    %v2138 = vmul.f32 %v2131, 1.442695
    %v2139 = vpow.pop %v2138
    %v2140 = vadd.f32 %v2133, 1.0
    %v2141 = vadd.f32 %v2135, 1.0
    %v2142 = vadd.f32 %v2137, 1.0
    %v2143 = vadd.f32 %v2139, 1.0
    %v2144 = vrcp.pop %v2140
    %v2145 = vmul.f32 %v2140, %v2144
    %v2146 = vsub.f32 1.0, %v2145
    %v2147 = vmul.f32 %v2144, %v2146
    %v2148 = vadd.f32 %v2144, %v2147
    %vm2149 = vweird.f32 %v2140
    %vm2150 = vweird.f32 %v2144
    %vm2151 = vmor %vm2149, %vm2150
    %v2152 = vsel %vm2151, %v2144, %v2148
    %v2153 = vand.u32 2147483647, %v2140
    %vm2154 = vcmp.eq.f32.partialorder %v2153, 8.507059e+37
    %v2155 = vand.u32 %v2140, 2147483648
    %v2156 = vor.u32 1.1754944e-38, %v2155
    %v2157 = vsel %vm2154, %v2156, %v2152
    %v2158 = vmul.f32 1.0, %v2157
    %v2159 = vrcp.pop %v2141
    %v2160 = vmul.f32 %v2141, %v2159
    %v2161 = vsub.f32 1.0, %v2160
    %v2162 = vmul.f32 %v2159, %v2161
    %v2163 = vadd.f32 %v2159, %v2162
    %vm2164 = vweird.f32 %v2141
    %vm2165 = vweird.f32 %v2159
    %vm2166 = vmor %vm2164, %vm2165
    %v2167 = vsel %vm2166, %v2159, %v2163
    %v2168 = vand.u32 2147483647, %v2141
    %vm2169 = vcmp.eq.f32.partialorder %v2168, 8.507059e+37
    %v2170 = vand.u32 %v2141, 2147483648
    %v2171 = vor.u32 1.1754944e-38, %v2170
    %v2172 = vsel %vm2169, %v2171, %v2167
    %v2173 = vmul.f32 1.0, %v2172
    %v2174 = vrcp.pop %v2142
    %v2175 = vmul.f32 %v2142, %v2174
    %v2176 = vsub.f32 1.0, %v2175
    %v2177 = vmul.f32 %v2174, %v2176
    %v2178 = vadd.f32 %v2174, %v2177
    %vm2179 = vweird.f32 %v2142
    %vm2180 = vweird.f32 %v2174
    %vm2181 = vmor %vm2179, %vm2180
    %v2182 = vsel %vm2181, %v2174, %v2178
    %v2183 = vand.u32 2147483647, %v2142
    %vm2184 = vcmp.eq.f32.partialorder %v2183, 8.507059e+37
    %v2185 = vand.u32 %v2142, 2147483648
    %v2186 = vor.u32 1.1754944e-38, %v2185
    %v2187 = vsel %vm2184, %v2186, %v2182
    %v2188 = vmul.f32 1.0, %v2187
    %v2189 = vrcp.pop %v2143
    %v2190 = vmul.f32 %v2143, %v2189
    %v2191 = vsub.f32 1.0, %v2190
    %v2192 = vmul.f32 %v2189, %v2191
    %v2193 = vadd.f32 %v2189, %v2192
    %vm2194 = vweird.f32 %v2143
    %vm2195 = vweird.f32 %v2189
    %vm2196 = vmor %vm2194, %vm2195
    %v2197 = vsel %vm2196, %v2189, %v2193
    %v2198 = vand.u32 2147483647, %v2143
    %vm2199 = vcmp.eq.f32.partialorder %v2198, 8.507059e+37
    %v2200 = vand.u32 %v2143, 2147483648
    %v2201 = vor.u32 1.1754944e-38, %v2200
    %v2202 = vsel %vm2199, %v2201, %v2197
    %v2203 = vmul.f32 1.0, %v2202
    %v2204 = vtanh.pop %v2124
    %v2205 = vtanh.pop %v2125
    %v2206 = vtanh.pop %v2126
    %v2207 = vtanh.pop %v2127
    %v2208 = vmul.f32 %v1886, %v2158
    %v2209 = vmul.f32 %v1887, %v2173
    %v2210 = vmul.f32 %v1888, %v2188
    %v2211 = vmul.f32 %v1889, %v2203
    %2216 = vrot.lane.b32.xlu0 %v2204, 32
    %v2217 = vpop.permute.xlu0 %2216
    %2218 = vrot.lane.b32.xlu0 %v2205, 32
    %v2219 = vpop.permute.xlu0 %2218
    %2220 = vrot.lane.b32.xlu0 %v2206, 32
    %v2221 = vpop.permute.xlu0 %2220
    %2222 = vrot.lane.b32.xlu0 %v2207, 32
    %v2223 = vpop.permute.xlu0 %2222
    %v2228 = vmul.f32 %v2158, %v2217
    %v2229 = vmul.f32 %v2173, %v2219
    %v2230 = vmul.f32 %v2188, %v2221
    %v2231 = vmul.f32 %v2203, %v2223
    %2236 = vrot.lane.b32.xlu0 %v2228, 32
    %v2237 = vpop.permute.xlu0 %2236
    %2238 = vrot.lane.b32.xlu0 %v2229, 32
    %v2239 = vpop.permute.xlu0 %2238
    %2240 = vrot.lane.b32.xlu0 %v2230, 32
    %v2241 = vpop.permute.xlu0 %2240
    %2242 = vrot.lane.b32.xlu0 %v2231, 32
    %v2243 = vpop.permute.xlu0 %2242
    %v2248 = vadd.f32 %v2208, %v2237
    %v2249 = vadd.f32 %v2209, %v2239
    %v2250 = vadd.f32 %v2210, %v2241
    %v2251 = vadd.f32 %v2211, %v2243
    %v2252 = vtanh.pop %v2248
    %v2253 = vtanh.pop %v2249
    %v2254 = vtanh.pop %v2250
    %v2255 = vtanh.pop %v2251
    %2260 = vrot.lane.b32.xlu0 %v2252, 32
    %v2261 = vpop.permute.xlu0 %2260
    %2262 = vrot.lane.b32.xlu0 %v2253, 32
    %v2263 = vpop.permute.xlu0 %2262
    %2264 = vrot.lane.b32.xlu0 %v2254, 32
    %v2265 = vpop.permute.xlu0 %2264
    %2266 = vrot.lane.b32.xlu0 %v2255, 32
    %v2267 = vpop.permute.xlu0 %2266
    %v2272 = vmul.f32 %v2158, %v2261
    %v2273 = vmul.f32 %v2173, %v2263
    %v2274 = vmul.f32 %v2188, %v2265
    %v2275 = vmul.f32 %v2203, %v2267
    %2280 = vrot.lane.b32.xlu0 %v2272, 64
    %v2281 = vpop.permute.xlu0 %2280
    %2282 = vrot.lane.b32.xlu0 %v2273, 64
    %v2283 = vpop.permute.xlu0 %2282
    %2284 = vrot.lane.b32.xlu0 %v2274, 64
    %v2285 = vpop.permute.xlu0 %2284
    %2286 = vrot.lane.b32.xlu0 %v2275, 64
    %v2287 = vpop.permute.xlu0 %2286
    %s2292 = scalar_lea.vmem [#allocation13], 160
    %2293 = vst.msk [vmem:[%s2292] sm:$0xff] %vm163, %v2281
    %2294 = vst.msk [vmem:[%s2292 + $0x8] sm:$0xff] %vm163, %v2283
    %2295 = vst.msk [vmem:[%s2292 + $0x10] sm:$0xff] %vm163, %v2285
    %2296 = vst.msk [vmem:[%s2292 + $0x18] sm:$0xff] %vm163, %v2287
    %v2297 = vsel %vm163, %v2281, 0
    %v2299 = vsel %vm163, %v2283, 0
    %v2301 = vsel %vm163, %v2285, 0
    %v2303 = vsel %vm163, %v2287, 0
    %2305 = vmatpush.msra.mxu0 0.0
    %2306 = vmatpush.msra.mxu0 0.0
    %2307 = vmatpush.msra.mxu0 0.0
    %2308 = vmatpush.msra.mxu0 0.0
    %2309 = vmatpush.msra.mxu0 0.0
    %2310 = vmatpush.msra.mxu0 0.0
    %2311 = vmatpush.msra.mxu0 0.0
    %2312 = vmatpush.msra.mxu0 0.0
    %2313 = vmatpush.msra.mxu0 0.0
    %2314 = vmatpush.msra.mxu0 0.0
    %2315 = vmatpush.msra.mxu0 0.0
    %2316 = vmatpush.msra.mxu0 0.0
    %2317 = vmatpush.msra.mxu0 %v154
    %2318 = vmatpush.msra.mxu0 %v153
    %2319 = vmatpush.msra.mxu0 %v152
    %2320 = vmatpush.msra.mxu0 %v151
    %2321 = vmatmul.f32.gmra.mxu0 %v2297
    %v2322 = vpop.f32.mrf.mxu0
    %v2323 = vadd.f32 %v157, %v2322
    %2324 = vmatmul.f32.gmra.mxu0 %v2299
    %v2325 = vpop.f32.mrf.mxu0
    %v2326 = vadd.f32 %v157, %v2325
    %2327 = vmatmul.f32.gmra.mxu0 %v2301
    %v2328 = vpop.f32.mrf.mxu0
    %v2329 = vadd.f32 %v157, %v2328
    %2330 = vmatmul.f32.gmra.mxu0 %v2303
    %v2331 = vpop.f32.mrf.mxu0
    %v2332 = vadd.f32 %v157, %v2331
    %2333 = vdwg.mxu0
    %v2334 = vmax.f32 %v2323, 0.0
    %v2335 = vmax.f32 %v2326, 0.0
    %v2336 = vmax.f32 %v2329, 0.0
    %v2337 = vmax.f32 %v2332, 0.0
    %v2339 = vsel %vm163, %v2334, 0
    %v2342 = vsel %vm163, %v2335, 0
    %v2345 = vsel %vm163, %v2336, 0
    %v2348 = vsel %vm163, %v2337, 0
    %2350 = vmatpush.msra.mxu0 0.0
    %2351 = vmatpush.msra.mxu0 0.0
    %2352 = vmatpush.msra.mxu0 0.0
    %2353 = vmatpush.msra.mxu0 0.0
    %2354 = vmatpush.msra.mxu0 0.0
    %2355 = vmatpush.msra.mxu0 0.0
    %2356 = vmatpush.msra.mxu0 0.0
    %2357 = vmatpush.msra.mxu0 0.0
    %2358 = vmatpush.msra.mxu0 0.0
    %2359 = vmatpush.msra.mxu0 0.0
    %2360 = vmatpush.msra.mxu0 0.0
    %2361 = vmatpush.msra.mxu0 0.0
    %2362 = vmatpush.msra.mxu0 %v130
    %2363 = vmatpush.msra.mxu0 %v129
    %2364 = vmatpush.msra.mxu0 %v128
    %2365 = vmatpush.msra.mxu0 %v127
    %2366 = vmatmul.f32.gmra.mxu0 %v2339
    %v2367 = vpop.f32.mrf.mxu0
    %v2368 = vadd.f32 %v133, %v2367
    %2369 = vmatmul.f32.gmra.mxu0 %v2342
    %v2370 = vpop.f32.mrf.mxu0
    %v2371 = vadd.f32 %v133, %v2370
    %2372 = vmatmul.f32.gmra.mxu0 %v2345
    %v2373 = vpop.f32.mrf.mxu0
    %v2374 = vadd.f32 %v133, %v2373
    %2375 = vmatmul.f32.gmra.mxu0 %v2348
    %v2376 = vpop.f32.mrf.mxu0
    %v2377 = vadd.f32 %v133, %v2376
    %2378 = vdwg.mxu0
    %v2379 = vmax.f32 %v2368, 0.0
    %v2380 = vmax.f32 %v2371, 0.0
    %v2381 = vmax.f32 %v2374, 0.0
    %v2382 = vmax.f32 %v2377, 0.0
    %v2384 = vsel %vm163, %v2379, 0
    %v2387 = vsel %vm163, %v2380, 0
    %v2390 = vsel %vm163, %v2381, 0
    %v2393 = vsel %vm163, %v2382, 0
    %2395 = vmatpush.msra.mxu0 0.0
    %2396 = vmatpush.msra.mxu0 0.0
    %2397 = vmatpush.msra.mxu0 0.0
    %2398 = vmatpush.msra.mxu0 0.0
    %2399 = vmatpush.msra.mxu0 0.0
    %2400 = vmatpush.msra.mxu0 0.0
    %2401 = vmatpush.msra.mxu0 0.0
    %2402 = vmatpush.msra.mxu0 0.0
    %2403 = vmatpush.msra.mxu0 0.0
    %2404 = vmatpush.msra.mxu0 0.0
    %2405 = vmatpush.msra.mxu0 0.0
    %2406 = vmatpush.msra.mxu0 0.0
    %2407 = vmatpush.msra.mxu0 %v142
    %2408 = vmatpush.msra.mxu0 %v141
    %2409 = vmatpush.msra.mxu0 %v140
    %2410 = vmatpush.msra.mxu0 %v139
    %2411 = vmatmul.f32.gmra.mxu0 %v2384
    %v2412 = vpop.f32.mrf.mxu0
    %v2413 = vadd.f32 0.0, %v2412
    %2414 = vmatmul.f32.gmra.mxu0 %v2387
    %v2415 = vpop.f32.mrf.mxu0
    %v2416 = vadd.f32 0.0, %v2415
    %2417 = vmatmul.f32.gmra.mxu0 %v2390
    %v2418 = vpop.f32.mrf.mxu0
    %v2419 = vadd.f32 0.0, %v2418
    %2420 = vmatmul.f32.gmra.mxu0 %v2393
    %v2421 = vpop.f32.mrf.mxu0
    %v2422 = vadd.f32 0.0, %v2421
    %2423 = vdwg.mxu0
    %2424 = vmatpush.msra.mxu0 0.0
    %2425 = vmatpush.msra.mxu0 0.0
    %2426 = vmatpush.msra.mxu0 0.0
    %2427 = vmatpush.msra.mxu0 0.0
    %2428 = vmatpush.msra.mxu0 0.0
    %2429 = vmatpush.msra.mxu0 0.0
    %2430 = vmatpush.msra.mxu0 0.0
    %2431 = vmatpush.msra.mxu0 0.0
    %2432 = vmatpush.msra.mxu0 0.0
    %2433 = vmatpush.msra.mxu0 0.0
    %2434 = vmatpush.msra.mxu0 0.0
    %2435 = vmatpush.msra.mxu0 0.0
    %2436 = vmatpush.msra.mxu0 %v138
    %2437 = vmatpush.msra.mxu0 %v137
    %2438 = vmatpush.msra.mxu0 %v136
    %2439 = vmatpush.msra.mxu0 %v135
    %2440 = vmatmul.f32.gmra.mxu0 %v2339
    %v2441 = vpop.f32.mrf.mxu0
    %v2442 = vadd.f32 %v2413, %v2441
    %2443 = vmatmul.f32.gmra.mxu0 %v2342
    %v2444 = vpop.f32.mrf.mxu0
    %v2445 = vadd.f32 %v2416, %v2444
    %2446 = vmatmul.f32.gmra.mxu0 %v2345
    %v2447 = vpop.f32.mrf.mxu0
    %v2448 = vadd.f32 %v2419, %v2447
    %2449 = vmatmul.f32.gmra.mxu0 %v2348
    %v2450 = vpop.f32.mrf.mxu0
    %v2451 = vadd.f32 %v2422, %v2450
    %2452 = vdwg.mxu0
    %2453 = vmatpush.msra.mxu0 0.0
    %2454 = vmatpush.msra.mxu0 0.0
    %2455 = vmatpush.msra.mxu0 0.0
    %2456 = vmatpush.msra.mxu0 0.0
    %2457 = vmatpush.msra.mxu0 0.0
    %2458 = vmatpush.msra.mxu0 0.0
    %2459 = vmatpush.msra.mxu0 0.0
    %2460 = vmatpush.msra.mxu0 0.0
    %2461 = vmatpush.msra.mxu0 0.0
    %2462 = vmatpush.msra.mxu0 0.0
    %2463 = vmatpush.msra.mxu0 0.0
    %2464 = vmatpush.msra.mxu0 0.0
    %2465 = vmatpush.msra.mxu0 %v146
    %2466 = vmatpush.msra.mxu0 %v145
    %2467 = vmatpush.msra.mxu0 %v144
    %2468 = vmatpush.msra.mxu0 %v143
    %2469 = vmatmul.f32.gmra.mxu0 %v2297
    %v2470 = vpop.f32.mrf.mxu0
    %v2471 = vadd.f32 0.0, %v2470
    %2472 = vmatmul.f32.gmra.mxu0 %v2299
    %v2473 = vpop.f32.mrf.mxu0
    %v2474 = vadd.f32 0.0, %v2473
    %2475 = vmatmul.f32.gmra.mxu0 %v2301
    %v2476 = vpop.f32.mrf.mxu0
    %v2477 = vadd.f32 0.0, %v2476
    %2478 = vmatmul.f32.gmra.mxu0 %v2303
    %v2479 = vpop.f32.mrf.mxu0
    %v2480 = vadd.f32 0.0, %v2479
    %2481 = vdwg.mxu0
    %v2482 = vadd.f32 %v2442, %v2471
    %v2483 = vadd.f32 %v2445, %v2474
    %v2484 = vadd.f32 %v2448, %v2477
    %v2485 = vadd.f32 %v2451, %v2480
    %v2486 = vadd.f32 %v2482, %v149
    %v2487 = vadd.f32 %v2483, %v149
    %v2488 = vadd.f32 %v2484, %v149
    %v2489 = vadd.f32 %v2485, %v149
    %v2490 = vxor.u32 %v2486, 2147483648
    %v2491 = vxor.u32 %v2487, 2147483648
    %v2492 = vxor.u32 %v2488, 2147483648
    %v2493 = vxor.u32 %v2489, 2147483648
    %v2494 = vmul.f32 %v2490, 1.442695
    %v2495 = vpow.pop %v2494
    %v2496 = vmul.f32 %v2491, 1.442695
    %v2497 = vpow.pop %v2496
    %v2498 = vmul.f32 %v2492, 1.442695
    %v2499 = vpow.pop %v2498
    %v2500 = vmul.f32 %v2493, 1.442695
    %v2501 = vpow.pop %v2500
    %v2502 = vadd.f32 %v2495, 1.0
    %v2503 = vadd.f32 %v2497, 1.0
    %v2504 = vadd.f32 %v2499, 1.0
    %v2505 = vadd.f32 %v2501, 1.0
    %v2506 = vrcp.pop %v2502
    %v2507 = vmul.f32 %v2502, %v2506
    %v2508 = vsub.f32 1.0, %v2507
    %v2509 = vmul.f32 %v2506, %v2508
    %v2510 = vadd.f32 %v2506, %v2509
    %vm2511 = vweird.f32 %v2502
    %vm2512 = vweird.f32 %v2506
    %vm2513 = vmor %vm2511, %vm2512
    %v2514 = vsel %vm2513, %v2506, %v2510
    %v2515 = vand.u32 2147483647, %v2502
    %vm2516 = vcmp.eq.f32.partialorder %v2515, 8.507059e+37
    %v2517 = vand.u32 %v2502, 2147483648
    %v2518 = vor.u32 1.1754944e-38, %v2517
    %v2519 = vsel %vm2516, %v2518, %v2514
    %v2520 = vmul.f32 1.0, %v2519
    %v2521 = vrcp.pop %v2503
    %v2522 = vmul.f32 %v2503, %v2521
    %v2523 = vsub.f32 1.0, %v2522
    %v2524 = vmul.f32 %v2521, %v2523
    %v2525 = vadd.f32 %v2521, %v2524
    %vm2526 = vweird.f32 %v2503
    %vm2527 = vweird.f32 %v2521
    %vm2528 = vmor %vm2526, %vm2527
    %v2529 = vsel %vm2528, %v2521, %v2525
    %v2530 = vand.u32 2147483647, %v2503
    %vm2531 = vcmp.eq.f32.partialorder %v2530, 8.507059e+37
    %v2532 = vand.u32 %v2503, 2147483648
    %v2533 = vor.u32 1.1754944e-38, %v2532
    %v2534 = vsel %vm2531, %v2533, %v2529
    %v2535 = vmul.f32 1.0, %v2534
    %v2536 = vrcp.pop %v2504
    %v2537 = vmul.f32 %v2504, %v2536
    %v2538 = vsub.f32 1.0, %v2537
    %v2539 = vmul.f32 %v2536, %v2538
    %v2540 = vadd.f32 %v2536, %v2539
    %vm2541 = vweird.f32 %v2504
    %vm2542 = vweird.f32 %v2536
    %vm2543 = vmor %vm2541, %vm2542
    %v2544 = vsel %vm2543, %v2536, %v2540
    %v2545 = vand.u32 2147483647, %v2504
    %vm2546 = vcmp.eq.f32.partialorder %v2545, 8.507059e+37
    %v2547 = vand.u32 %v2504, 2147483648
    %v2548 = vor.u32 1.1754944e-38, %v2547
    %v2549 = vsel %vm2546, %v2548, %v2544
    %v2550 = vmul.f32 1.0, %v2549
    %v2551 = vrcp.pop %v2505
    %v2552 = vmul.f32 %v2505, %v2551
    %v2553 = vsub.f32 1.0, %v2552
    %v2554 = vmul.f32 %v2551, %v2553
    %v2555 = vadd.f32 %v2551, %v2554
    %vm2556 = vweird.f32 %v2505
    %vm2557 = vweird.f32 %v2551
    %vm2558 = vmor %vm2556, %vm2557
    %v2559 = vsel %vm2558, %v2551, %v2555
    %v2560 = vand.u32 2147483647, %v2505
    %vm2561 = vcmp.eq.f32.partialorder %v2560, 8.507059e+37
    %v2562 = vand.u32 %v2505, 2147483648
    %v2563 = vor.u32 1.1754944e-38, %v2562
    %v2564 = vsel %vm2561, %v2563, %v2559
    %v2565 = vmul.f32 1.0, %v2564
    %v2566 = vtanh.pop %v2486
    %v2567 = vtanh.pop %v2487
    %v2568 = vtanh.pop %v2488
    %v2569 = vtanh.pop %v2489
    %v2570 = vmul.f32 %v2248, %v2520
    %v2571 = vmul.f32 %v2249, %v2535
    %v2572 = vmul.f32 %v2250, %v2550
    %v2573 = vmul.f32 %v2251, %v2565
    %2578 = vrot.lane.b32.xlu0 %v2566, 32
    %v2579 = vpop.permute.xlu0 %2578
    %2580 = vrot.lane.b32.xlu0 %v2567, 32
    %v2581 = vpop.permute.xlu0 %2580
    %2582 = vrot.lane.b32.xlu0 %v2568, 32
    %v2583 = vpop.permute.xlu0 %2582
    %2584 = vrot.lane.b32.xlu0 %v2569, 32
    %v2585 = vpop.permute.xlu0 %2584
    %v2590 = vmul.f32 %v2520, %v2579
    %v2591 = vmul.f32 %v2535, %v2581
    %v2592 = vmul.f32 %v2550, %v2583
    %v2593 = vmul.f32 %v2565, %v2585
    %2598 = vrot.lane.b32.xlu0 %v2590, 32
    %v2599 = vpop.permute.xlu0 %2598
    %2600 = vrot.lane.b32.xlu0 %v2591, 32
    %v2601 = vpop.permute.xlu0 %2600
    %2602 = vrot.lane.b32.xlu0 %v2592, 32
    %v2603 = vpop.permute.xlu0 %2602
    %2604 = vrot.lane.b32.xlu0 %v2593, 32
    %v2605 = vpop.permute.xlu0 %2604
    %v2610 = vadd.f32 %v2570, %v2599
    %v2611 = vadd.f32 %v2571, %v2601
    %v2612 = vadd.f32 %v2572, %v2603
    %v2613 = vadd.f32 %v2573, %v2605
    %v2614 = vtanh.pop %v2610
    %v2615 = vtanh.pop %v2611
    %v2616 = vtanh.pop %v2612
    %v2617 = vtanh.pop %v2613
    %2622 = vrot.lane.b32.xlu0 %v2614, 32
    %v2623 = vpop.permute.xlu0 %2622
    %2624 = vrot.lane.b32.xlu0 %v2615, 32
    %v2625 = vpop.permute.xlu0 %2624
    %2626 = vrot.lane.b32.xlu0 %v2616, 32
    %v2627 = vpop.permute.xlu0 %2626
    %2628 = vrot.lane.b32.xlu0 %v2617, 32
    %v2629 = vpop.permute.xlu0 %2628
    %v2634 = vmul.f32 %v2520, %v2623
    %v2635 = vmul.f32 %v2535, %v2625
    %v2636 = vmul.f32 %v2550, %v2627
    %v2637 = vmul.f32 %v2565, %v2629
    %2642 = vrot.lane.b32.xlu0 %v2634, 64
    %v2643 = vpop.permute.xlu0 %2642
    %2644 = vrot.lane.b32.xlu0 %v2635, 64
    %v2645 = vpop.permute.xlu0 %2644
    %2646 = vrot.lane.b32.xlu0 %v2636, 64
    %v2647 = vpop.permute.xlu0 %2646
    %2648 = vrot.lane.b32.xlu0 %v2637, 64
    %v2649 = vpop.permute.xlu0 %2648
    %s2654 = scalar_lea.vmem [#allocation13], 192
    %2655 = vst.msk [vmem:[%s2654] sm:$0xff] %vm163, %v2643
    %2656 = vst.msk [vmem:[%s2654 + $0x8] sm:$0xff] %vm163, %v2645
    %2657 = vst.msk [vmem:[%s2654 + $0x10] sm:$0xff] %vm163, %v2647
    %2658 = vst.msk [vmem:[%s2654 + $0x18] sm:$0xff] %vm163, %v2649
    %v2659 = vsel %vm163, %v2643, 0
    %v2661 = vsel %vm163, %v2645, 0
    %v2663 = vsel %vm163, %v2647, 0
    %v2665 = vsel %vm163, %v2649, 0
    %2667 = vmatpush.msra.mxu0 0.0
    %2668 = vmatpush.msra.mxu0 0.0
    %2669 = vmatpush.msra.mxu0 0.0
    %2670 = vmatpush.msra.mxu0 0.0
    %2671 = vmatpush.msra.mxu0 0.0
    %2672 = vmatpush.msra.mxu0 0.0
    %2673 = vmatpush.msra.mxu0 0.0
    %2674 = vmatpush.msra.mxu0 0.0
    %2675 = vmatpush.msra.mxu0 0.0
    %2676 = vmatpush.msra.mxu0 0.0
    %2677 = vmatpush.msra.mxu0 0.0
    %2678 = vmatpush.msra.mxu0 0.0
    %2679 = vmatpush.msra.mxu0 %v154
    %2680 = vmatpush.msra.mxu0 %v153
    %2681 = vmatpush.msra.mxu0 %v152
    %2682 = vmatpush.msra.mxu0 %v151
    %2683 = vmatmul.f32.gmra.mxu0 %v2659
    %v2684 = vpop.f32.mrf.mxu0
    %v2685 = vadd.f32 %v157, %v2684
    %2686 = vmatmul.f32.gmra.mxu0 %v2661
    %v2687 = vpop.f32.mrf.mxu0
    %v2688 = vadd.f32 %v157, %v2687
    %2689 = vmatmul.f32.gmra.mxu0 %v2663
    %v2690 = vpop.f32.mrf.mxu0
    %v2691 = vadd.f32 %v157, %v2690
    %2692 = vmatmul.f32.gmra.mxu0 %v2665
    %v2693 = vpop.f32.mrf.mxu0
    %v2694 = vadd.f32 %v157, %v2693
    %2695 = vdwg.mxu0
    %v2696 = vmax.f32 %v2685, 0.0
    %v2697 = vmax.f32 %v2688, 0.0
    %v2698 = vmax.f32 %v2691, 0.0
    %v2699 = vmax.f32 %v2694, 0.0
    %v2701 = vsel %vm163, %v2696, 0
    %v2704 = vsel %vm163, %v2697, 0
    %v2707 = vsel %vm163, %v2698, 0
    %v2710 = vsel %vm163, %v2699, 0
    %2712 = vmatpush.msra.mxu0 0.0
    %2713 = vmatpush.msra.mxu0 0.0
    %2714 = vmatpush.msra.mxu0 0.0
    %2715 = vmatpush.msra.mxu0 0.0
    %2716 = vmatpush.msra.mxu0 0.0
    %2717 = vmatpush.msra.mxu0 0.0
    %2718 = vmatpush.msra.mxu0 0.0
    %2719 = vmatpush.msra.mxu0 0.0
    %2720 = vmatpush.msra.mxu0 0.0
    %2721 = vmatpush.msra.mxu0 0.0
    %2722 = vmatpush.msra.mxu0 0.0
    %2723 = vmatpush.msra.mxu0 0.0
    %2724 = vmatpush.msra.mxu0 %v130
    %2725 = vmatpush.msra.mxu0 %v129
    %2726 = vmatpush.msra.mxu0 %v128
    %2727 = vmatpush.msra.mxu0 %v127
    %2728 = vmatmul.f32.gmra.mxu0 %v2701
    %v2729 = vpop.f32.mrf.mxu0
    %v2730 = vadd.f32 %v133, %v2729
    %2731 = vmatmul.f32.gmra.mxu0 %v2704
    %v2732 = vpop.f32.mrf.mxu0
    %v2733 = vadd.f32 %v133, %v2732
    %2734 = vmatmul.f32.gmra.mxu0 %v2707
    %v2735 = vpop.f32.mrf.mxu0
    %v2736 = vadd.f32 %v133, %v2735
    %2737 = vmatmul.f32.gmra.mxu0 %v2710
    %v2738 = vpop.f32.mrf.mxu0
    %v2739 = vadd.f32 %v133, %v2738
    %2740 = vdwg.mxu0
    %v2741 = vmax.f32 %v2730, 0.0
    %v2742 = vmax.f32 %v2733, 0.0
    %v2743 = vmax.f32 %v2736, 0.0
    %v2744 = vmax.f32 %v2739, 0.0
    %v2746 = vsel %vm163, %v2741, 0
    %v2749 = vsel %vm163, %v2742, 0
    %v2752 = vsel %vm163, %v2743, 0
    %v2755 = vsel %vm163, %v2744, 0
    %2757 = vmatpush.msra.mxu0 0.0
    %2758 = vmatpush.msra.mxu0 0.0
    %2759 = vmatpush.msra.mxu0 0.0
    %2760 = vmatpush.msra.mxu0 0.0
    %2761 = vmatpush.msra.mxu0 0.0
    %2762 = vmatpush.msra.mxu0 0.0
    %2763 = vmatpush.msra.mxu0 0.0
    %2764 = vmatpush.msra.mxu0 0.0
    %2765 = vmatpush.msra.mxu0 0.0
    %2766 = vmatpush.msra.mxu0 0.0
    %2767 = vmatpush.msra.mxu0 0.0
    %2768 = vmatpush.msra.mxu0 0.0
    %2769 = vmatpush.msra.mxu0 %v142
    %2770 = vmatpush.msra.mxu0 %v141
    %2771 = vmatpush.msra.mxu0 %v140
    %2772 = vmatpush.msra.mxu0 %v139
    %2773 = vmatmul.f32.gmra.mxu0 %v2746
    %v2774 = vpop.f32.mrf.mxu0
    %v2775 = vadd.f32 0.0, %v2774
    %2776 = vmatmul.f32.gmra.mxu0 %v2749
    %v2777 = vpop.f32.mrf.mxu0
    %v2778 = vadd.f32 0.0, %v2777
    %2779 = vmatmul.f32.gmra.mxu0 %v2752
    %v2780 = vpop.f32.mrf.mxu0
    %v2781 = vadd.f32 0.0, %v2780
    %2782 = vmatmul.f32.gmra.mxu0 %v2755
    %v2783 = vpop.f32.mrf.mxu0
    %v2784 = vadd.f32 0.0, %v2783
    %2785 = vdwg.mxu0
    %2786 = vmatpush.msra.mxu0 0.0
    %2787 = vmatpush.msra.mxu0 0.0
    %2788 = vmatpush.msra.mxu0 0.0
    %2789 = vmatpush.msra.mxu0 0.0
    %2790 = vmatpush.msra.mxu0 0.0
    %2791 = vmatpush.msra.mxu0 0.0
    %2792 = vmatpush.msra.mxu0 0.0
    %2793 = vmatpush.msra.mxu0 0.0
    %2794 = vmatpush.msra.mxu0 0.0
    %2795 = vmatpush.msra.mxu0 0.0
    %2796 = vmatpush.msra.mxu0 0.0
    %2797 = vmatpush.msra.mxu0 0.0
    %2798 = vmatpush.msra.mxu0 %v138
    %2799 = vmatpush.msra.mxu0 %v137
    %2800 = vmatpush.msra.mxu0 %v136
    %2801 = vmatpush.msra.mxu0 %v135
    %2802 = vmatmul.f32.gmra.mxu0 %v2701
    %v2803 = vpop.f32.mrf.mxu0
    %v2804 = vadd.f32 %v2775, %v2803
    %2805 = vmatmul.f32.gmra.mxu0 %v2704
    %v2806 = vpop.f32.mrf.mxu0
    %v2807 = vadd.f32 %v2778, %v2806
    %2808 = vmatmul.f32.gmra.mxu0 %v2707
    %v2809 = vpop.f32.mrf.mxu0
    %v2810 = vadd.f32 %v2781, %v2809
    %2811 = vmatmul.f32.gmra.mxu0 %v2710
    %v2812 = vpop.f32.mrf.mxu0
    %v2813 = vadd.f32 %v2784, %v2812
    %2814 = vdwg.mxu0
    %2815 = vmatpush.msra.mxu0 0.0
    %2816 = vmatpush.msra.mxu0 0.0
    %2817 = vmatpush.msra.mxu0 0.0
    %2818 = vmatpush.msra.mxu0 0.0
    %2819 = vmatpush.msra.mxu0 0.0
    %2820 = vmatpush.msra.mxu0 0.0
    %2821 = vmatpush.msra.mxu0 0.0
    %2822 = vmatpush.msra.mxu0 0.0
    %2823 = vmatpush.msra.mxu0 0.0
    %2824 = vmatpush.msra.mxu0 0.0
    %2825 = vmatpush.msra.mxu0 0.0
    %2826 = vmatpush.msra.mxu0 0.0
    %2827 = vmatpush.msra.mxu0 %v146
    %2828 = vmatpush.msra.mxu0 %v145
    %2829 = vmatpush.msra.mxu0 %v144
    %2830 = vmatpush.msra.mxu0 %v143
    %2831 = vmatmul.f32.gmra.mxu0 %v2659
    %v2832 = vpop.f32.mrf.mxu0
    %v2833 = vadd.f32 0.0, %v2832
    %2834 = vmatmul.f32.gmra.mxu0 %v2661
    %v2835 = vpop.f32.mrf.mxu0
    %v2836 = vadd.f32 0.0, %v2835
    %2837 = vmatmul.f32.gmra.mxu0 %v2663
    %v2838 = vpop.f32.mrf.mxu0
    %v2839 = vadd.f32 0.0, %v2838
    %2840 = vmatmul.f32.gmra.mxu0 %v2665
    %v2841 = vpop.f32.mrf.mxu0
    %v2842 = vadd.f32 0.0, %v2841
    %2843 = vdwg.mxu0
    %v2844 = vadd.f32 %v2804, %v2833
    %v2845 = vadd.f32 %v2807, %v2836
    %v2846 = vadd.f32 %v2810, %v2839
    %v2847 = vadd.f32 %v2813, %v2842
    %v2848 = vadd.f32 %v2844, %v149
    %v2849 = vadd.f32 %v2845, %v149
    %v2850 = vadd.f32 %v2846, %v149
    %v2851 = vadd.f32 %v2847, %v149
    %v2852 = vxor.u32 %v2848, 2147483648
    %v2853 = vxor.u32 %v2849, 2147483648
    %v2854 = vxor.u32 %v2850, 2147483648
    %v2855 = vxor.u32 %v2851, 2147483648
    %v2856 = vmul.f32 %v2852, 1.442695
    %v2857 = vpow.pop %v2856
    %v2858 = vmul.f32 %v2853, 1.442695
    %v2859 = vpow.pop %v2858
    %v2860 = vmul.f32 %v2854, 1.442695
    %v2861 = vpow.pop %v2860
    %v2862 = vmul.f32 %v2855, 1.442695
    %v2863 = vpow.pop %v2862
    %v2864 = vadd.f32 %v2857, 1.0
    %v2865 = vadd.f32 %v2859, 1.0
    %v2866 = vadd.f32 %v2861, 1.0
    %v2867 = vadd.f32 %v2863, 1.0
    %v2868 = vrcp.pop %v2864
    %v2869 = vmul.f32 %v2864, %v2868
    %v2870 = vsub.f32 1.0, %v2869
    %v2871 = vmul.f32 %v2868, %v2870
    %v2872 = vadd.f32 %v2868, %v2871
    %vm2873 = vweird.f32 %v2864
    %vm2874 = vweird.f32 %v2868
    %vm2875 = vmor %vm2873, %vm2874
    %v2876 = vsel %vm2875, %v2868, %v2872
    %v2877 = vand.u32 2147483647, %v2864
    %vm2878 = vcmp.eq.f32.partialorder %v2877, 8.507059e+37
    %v2879 = vand.u32 %v2864, 2147483648
    %v2880 = vor.u32 1.1754944e-38, %v2879
    %v2881 = vsel %vm2878, %v2880, %v2876
    %v2882 = vmul.f32 1.0, %v2881
    %v2883 = vrcp.pop %v2865
    %v2884 = vmul.f32 %v2865, %v2883
    %v2885 = vsub.f32 1.0, %v2884
    %v2886 = vmul.f32 %v2883, %v2885
    %v2887 = vadd.f32 %v2883, %v2886
    %vm2888 = vweird.f32 %v2865
    %vm2889 = vweird.f32 %v2883
    %vm2890 = vmor %vm2888, %vm2889
    %v2891 = vsel %vm2890, %v2883, %v2887
    %v2892 = vand.u32 2147483647, %v2865
    %vm2893 = vcmp.eq.f32.partialorder %v2892, 8.507059e+37
    %v2894 = vand.u32 %v2865, 2147483648
    %v2895 = vor.u32 1.1754944e-38, %v2894
    %v2896 = vsel %vm2893, %v2895, %v2891
    %v2897 = vmul.f32 1.0, %v2896
    %v2898 = vrcp.pop %v2866
    %v2899 = vmul.f32 %v2866, %v2898
    %v2900 = vsub.f32 1.0, %v2899
    %v2901 = vmul.f32 %v2898, %v2900
    %v2902 = vadd.f32 %v2898, %v2901
    %vm2903 = vweird.f32 %v2866
    %vm2904 = vweird.f32 %v2898
    %vm2905 = vmor %vm2903, %vm2904
    %v2906 = vsel %vm2905, %v2898, %v2902
    %v2907 = vand.u32 2147483647, %v2866
    %vm2908 = vcmp.eq.f32.partialorder %v2907, 8.507059e+37
    %v2909 = vand.u32 %v2866, 2147483648
    %v2910 = vor.u32 1.1754944e-38, %v2909
    %v2911 = vsel %vm2908, %v2910, %v2906
    %v2912 = vmul.f32 1.0, %v2911
    %v2913 = vrcp.pop %v2867
    %v2914 = vmul.f32 %v2867, %v2913
    %v2915 = vsub.f32 1.0, %v2914
    %v2916 = vmul.f32 %v2913, %v2915
    %v2917 = vadd.f32 %v2913, %v2916
    %vm2918 = vweird.f32 %v2867
    %vm2919 = vweird.f32 %v2913
    %vm2920 = vmor %vm2918, %vm2919
    %v2921 = vsel %vm2920, %v2913, %v2917
    %v2922 = vand.u32 2147483647, %v2867
    %vm2923 = vcmp.eq.f32.partialorder %v2922, 8.507059e+37
    %v2924 = vand.u32 %v2867, 2147483648
    %v2925 = vor.u32 1.1754944e-38, %v2924
    %v2926 = vsel %vm2923, %v2925, %v2921
    %v2927 = vmul.f32 1.0, %v2926
    %v2928 = vtanh.pop %v2848
    %v2929 = vtanh.pop %v2849
    %v2930 = vtanh.pop %v2850
    %v2931 = vtanh.pop %v2851
    %v2932 = vmul.f32 %v2610, %v2882
    %v2933 = vmul.f32 %v2611, %v2897
    %v2934 = vmul.f32 %v2612, %v2912
    %v2935 = vmul.f32 %v2613, %v2927
    %2940 = vrot.lane.b32.xlu0 %v2928, 32
    %v2941 = vpop.permute.xlu0 %2940
    %2942 = vrot.lane.b32.xlu0 %v2929, 32
    %v2943 = vpop.permute.xlu0 %2942
    %2944 = vrot.lane.b32.xlu0 %v2930, 32
    %v2945 = vpop.permute.xlu0 %2944
    %2946 = vrot.lane.b32.xlu0 %v2931, 32
    %v2947 = vpop.permute.xlu0 %2946
    %v2952 = vmul.f32 %v2882, %v2941
    %v2953 = vmul.f32 %v2897, %v2943
    %v2954 = vmul.f32 %v2912, %v2945
    %v2955 = vmul.f32 %v2927, %v2947
    %2960 = vrot.lane.b32.xlu0 %v2952, 32
    %v2961 = vpop.permute.xlu0 %2960
    %2962 = vrot.lane.b32.xlu0 %v2953, 32
    %v2963 = vpop.permute.xlu0 %2962
    %2964 = vrot.lane.b32.xlu0 %v2954, 32
    %v2965 = vpop.permute.xlu0 %2964
    %2966 = vrot.lane.b32.xlu0 %v2955, 32
    %v2967 = vpop.permute.xlu0 %2966
    %v2972 = vadd.f32 %v2932, %v2961
    %v2973 = vadd.f32 %v2933, %v2963
    %v2974 = vadd.f32 %v2934, %v2965
    %v2975 = vadd.f32 %v2935, %v2967
    %v2976 = vtanh.pop %v2972
    %v2977 = vtanh.pop %v2973
    %v2978 = vtanh.pop %v2974
    %v2979 = vtanh.pop %v2975
    %2984 = vrot.lane.b32.xlu0 %v2976, 32
    %v2985 = vpop.permute.xlu0 %2984
    %2986 = vrot.lane.b32.xlu0 %v2977, 32
    %v2987 = vpop.permute.xlu0 %2986
    %2988 = vrot.lane.b32.xlu0 %v2978, 32
    %v2989 = vpop.permute.xlu0 %2988
    %2990 = vrot.lane.b32.xlu0 %v2979, 32
    %v2991 = vpop.permute.xlu0 %2990
    %v2996 = vmul.f32 %v2882, %v2985
    %v2997 = vmul.f32 %v2897, %v2987
    %v2998 = vmul.f32 %v2912, %v2989
    %v2999 = vmul.f32 %v2927, %v2991
    %3004 = vrot.lane.b32.xlu0 %v2996, 64
    %v3005 = vpop.permute.xlu0 %3004
    %3006 = vrot.lane.b32.xlu0 %v2997, 64
    %v3007 = vpop.permute.xlu0 %3006
    %3008 = vrot.lane.b32.xlu0 %v2998, 64
    %v3009 = vpop.permute.xlu0 %3008
    %3010 = vrot.lane.b32.xlu0 %v2999, 64
    %v3011 = vpop.permute.xlu0 %3010
    %s3016 = scalar_lea.vmem [#allocation13], 224
    %3017 = vst.msk [vmem:[%s3016] sm:$0xff] %vm163, %v3005
    %3018 = vst.msk [vmem:[%s3016 + $0x8] sm:$0xff] %vm163, %v3007
    %3019 = vst.msk [vmem:[%s3016 + $0x10] sm:$0xff] %vm163, %v3009
    %3020 = vst.msk [vmem:[%s3016 + $0x18] sm:$0xff] %vm163, %v3011
    // Predicated region
    $region62: #{tpu_custom_call.1} parent=1 // pred_check
      _
    $region63: #{tpu_custom_call.1} parent=1 // pred_check_branch
      %3022 = sbr.rel (0) target = $region65
    $region64: #{tpu_custom_call.1} parent=1 // pred_region
      %3024 = vsyncadd [#allocation4], 0
      %s3025 = sshll.u32 [#allocation13], 4
      %s3026 = int_to_ptr.vmem [resolvable:$true] %s3025
      %s3027 = sshll.u32 %s9, 4
      %s3028 = int_to_ptr.hbm [resolvable:$true] %s3027
      %3033 = dma.vmem_to_hbm [thread:$0]  %s3026, 4096, %s3028, [#allocation4], 128, 128, 8
    $region65: #{tpu_custom_call.1} parent=1 // pred_fallthru
      _
    // Predicated region
    $region66: #{tpu_custom_call.1} parent=1 // pred_check
      _
    $region67: #{tpu_custom_call.1} parent=1 // pred_check_branch
      %3035 = sbr.rel (0) target = $region69
    $region68: #{tpu_custom_call.1} parent=1 // pred_region
      %3037 = dma.done [#allocation4], 4096
    $region69: #{tpu_custom_call.1} parent=1 // pred_fallthru
      _
    %3038 = vsyncpa [#allocation3], 1
    %3039 = vsyncpa [#allocation6], 1
    %3040 = vsyncpa [#allocation9], 1
    %3041 = vsyncpa [#allocation12], 1
    %3042 = vsyncpa [#allocation4], 1

</llo_original>
